<compile_context>
chip_gen: v7x
topology: tpu7x:2x2x1
jax: 0.10.0
libtpu: 0.0.40
codegen_flags: <defaults>
</compile_context>

<pallas_src>
import functools

import jax
import jax.numpy as jnp
from jax.experimental import pallas as pl
from jax.experimental.pallas import tpu as pltpu

MESH_COLOR = (128.0, 128.0, 128.0)  # stand-in for config.MESH_COLOR


# --------------------------------------------------------------------------------------
# Plain-JAX projection: perspective_proj_withz (quaternion rotate + perspective divide)
# --------------------------------------------------------------------------------------
def perspective_proj_withz(vertices, cams, offset_z, norm_f, norm_z, norm_f0):
    """vertices (B, N, 3); cams (B, 7) = [f_scale, tx, ty, qw, qx, qy, qz]."""
    vertices = vertices.astype(jnp.float32)
    cams = cams.astype(jnp.float32)
    sc, tx, ty = cams[:, 0:1], cams[:, 1:2], cams[:, 2:3]            # (B, 1)
    qw, qx, qy, qz = cams[:, 3], cams[:, 4], cams[:, 5], cams[:, 6]  # (B,)

    # Rotation matrix from unit quaternion (w, x, y, z), as in geom_utils.quat_rotate.
    r00 = 1.0 - 2.0 * (qy * qy + qz * qz)
    r01 = 2.0 * (qx * qy - qz * qw)
    r02 = 2.0 * (qx * qz + qy * qw)
    r10 = 2.0 * (qx * qy + qz * qw)
    r11 = 1.0 - 2.0 * (qx * qx + qz * qz)
    r12 = 2.0 * (qy * qz - qx * qw)
    r20 = 2.0 * (qx * qz - qy * qw)
    r21 = 2.0 * (qy * qz + qx * qw)
    r22 = 1.0 - 2.0 * (qx * qx + qy * qy)
    rot = jnp.stack([
        jnp.stack([r00, r01, r02], axis=-1),
        jnp.stack([r10, r11, r12], axis=-1),
        jnp.stack([r20, r21, r22], axis=-1)], axis=-2)               # (B, 3, 3)

    vrot = jnp.einsum('bij,bnj->bni', rot, vertices)                 # (B, N, 3)
    xr, yr, zr = vrot[..., 0], vrot[..., 1], vrot[..., 2]

    f = norm_f0 + sc * norm_f                                        # (B, 1)
    zc = norm_z + zr                                                 # (B, N)
    px = xr * f / zc + tx
    py = yr * f / zc + ty
    pz = zc + offset_z
    return jnp.stack([px, py, pz], axis=-1)                          # (B, N, 3)


def _edge_coefficients(proj, faces, img_size):
    """Sign-oriented per-face edge coefficients, already mapped to pixel space.

    Returns (B, F*9) float32 packed as [A0,B0,C0, A1,B1,C1, A2,B2,C2] per face, with
    edge_k(row, col) = A_k*col + B_k*row + C_k on raw integer pixel indices, oriented so
    that `inside <=> all edges >= 0`.  Degenerate faces (|area| <= 1e-9) never cover.
    Pixel (row, col) center maps to NDC px = (2/S)*(col+0.5) - 1, py = 1 - (2/S)*(row+0.5),
    i.e. image row 0 is the top of the image (y = +1), NMR convention.
    """
    B, F, _ = faces.shape
    px, py = proj[..., 0], proj[..., 1]                              # (B, N)
    idx = faces.reshape(B, F * 3).astype(jnp.int32)
    fx = jnp.take_along_axis(px, idx, axis=1).reshape(B, F, 3)
    fy = jnp.take_along_axis(py, idx, axis=1).reshape(B, F, 3)
    x0, x1, x2 = fx[..., 0], fx[..., 1], fx[..., 2]
    y0, y1, y2 = fy[..., 0], fy[..., 1], fy[..., 2]

    def edge(xa, ya, xb, yb):
        # e(p) = (xb - xa) * (py - ya) - (yb - ya) * (px - xa)
        return -(yb - ya), (xb - xa), (yb - ya) * xa - (xb - xa) * ya

    A0, B0, C0 = edge(x0, y0, x1, y1)
    A1, B1, C1 = edge(x1, y1, x2, y2)
    A2, B2, C2 = edge(x2, y2, x0, y0)

    area = (x1 - x0) * (y2 - y0) - (y1 - y0) * (x2 - x0)
    valid = jnp.abs(area) > 1e-9
    s = jnp.where(valid, jnp.sign(area), 0.0)                        # orient edges inward

    A = jnp.stack([A0, A1, A2], axis=-1) * s[..., None]              # (B, F, 3 edges)
    Bc = jnp.stack([B0, B1, B2], axis=-1) * s[..., None]
    Cc = jnp.stack([C0, C1, C2], axis=-1) * s[..., None]
    # Degenerate faces: make e0 == -1 < 0 everywhere so they never cover a pixel.
    Cc = Cc.at[..., 0].set(jnp.where(valid, Cc[..., 0], -1.0))

    # Fold the pixel-center -> NDC affine transform into the coefficients so the kernel
    # can multiply raw iota floats (col, row) directly.
    inv_s = 1.0 / float(img_size)
    Ap = A * (2.0 * inv_s)
    Bp = -Bc * (2.0 * inv_s)
    Cp = Cc + A * (inv_s - 1.0) + Bc * (1.0 - inv_s)

    coef = jnp.stack([Ap, Bp, Cp], axis=-1)                          # (B, F, 3, 3)
    return coef.reshape(B, F * 9).astype(jnp.float32)


# --------------------------------------------------------------------------------------
# Pallas kernel: silhouette rasterization (max over faces of min over 3 oriented edges)
# --------------------------------------------------------------------------------------
def _sil_kernel(coef_ref, o_ref, *, img_size, tile_h, num_faces):
    S = img_size
    strip_h = 8 if tile_h % 8 == 0 else tile_h       # vreg-aligned sublane strips
    n_strips = tile_h // strip_h

    bi = pl.program_id(0)
    row_base = (pl.program_id(1) * tile_h).astype(jnp.float32)   # scalar row offset of tile

    cols = jax.lax.broadcasted_iota(jnp.int32, (strip_h, S), 1).astype(jnp.float32)
    rows = jax.lax.broadcasted_iota(jnp.int32, (strip_h, S), 0).astype(jnp.float32)

    # Float coverage accumulator per strip: acc = max over faces of min over edges.
    acc = [jnp.full((strip_h, S), -3.0e38, jnp.float32) for _ in range(n_strips)]

    for f in range(num_faces):  # static unroll: num_faces small & compile-time constant
        base = f * 9
        a0 = coef_ref[bi, base + 0]
        b0 = coef_ref[bi, base + 1]
        c0 = coef_ref[bi, base + 2] + b0 * row_base      # scalar fold of tile row offset
        a1 = coef_ref[bi, base + 3]
        b1 = coef_ref[bi, base + 4]
        c1 = coef_ref[bi, base + 5] + b1 * row_base
        a2 = coef_ref[bi, base + 6]
        b2 = coef_ref[bi, base + 7]
        c2 = coef_ref[bi, base + 8] + b2 * row_base

        # Full edge evaluation on the first strip only; later strips add a constant.
        e0 = a0 * cols + (b0 * rows + c0)
        e1 = a1 * cols + (b1 * rows + c1)
        e2 = a2 * cols + (b2 * rows + c2)
        d0 = b0 * float(strip_h)
        d1 = b1 * float(strip_h)
        d2 = b2 * float(strip_h)

        for st in range(n_strips):
            if st > 0:
                e0 = e0 + d0
                e1 = e1 + d1
                e2 = e2 + d2
            acc[st] = jnp.maximum(acc[st], jnp.minimum(jnp.minimum(e0, e1), e2))

    # Single cast outside the face loop; lane-dense, vreg-aligned strip stores.
    for st in range(n_strips):
        o_ref[0, st * strip_h:(st + 1) * strip_h, :] = jnp.where(
            acc[st] >= 0.0, 1.0, 0.0).astype(jnp.float32)


def _tensorcores_per_chip():
    # v7x has 2 TensorCores sharing the parallel grid axes; v5e/v6e have 1.
    try:
        kind = jax.devices()[0].device_kind.lower()
    except Exception:
        return 1
    return 2 if "v7" in kind else 1


def _pick_tile_h(img_size, batch, num_cores):
    """Largest tile height (full image, or a multiple of 8 dividing img_size) such that
    the total grid step count batch * (img_size // TH) is at least num_cores."""
    cands = [img_size] + [th for th in range(img_size - 8, 7, -8) if img_size % th == 0]
    for th in cands:                      # descending: minimize per-grid-step overhead
        if batch * (img_size // th) >= num_cores:
            return th
    return cands[-1]


# --------------------------------------------------------------------------------------
# Wrapper mirroring the torch NeuralRenderer
# --------------------------------------------------------------------------------------
class NeuralRendererPallas:
    def __init__(self, img_size=128, norm_f=1.0, norm_z=0.0, norm_f0=0.0,
                 render_rgb=False, num_faces=12):
        self.img_size = int(img_size)
        self.norm_f = float(norm_f)
        self.norm_z = float(norm_z)
        self.norm_f0 = float(norm_f0)
        self.offset_z = -1.0
        self.render_rgb = render_rgb
        self._num_cores = _tensorcores_per_chip()
        # Mirrors `torch.ones(F, 4, 4, 4, 3) * MESH_COLOR / 255` (unused when render_rgb=False).
        self.textures = jnp.ones((num_faces, 4, 4, 4, 3), jnp.float32) * (
            jnp.asarray(MESH_COLOR, jnp.float32) / 255.0)

    def _render_silhouettes(self, coef):
        B = coef.shape[0]
        S = self.img_size
        TH = _pick_tile_h(S, B, self._num_cores)
        kernel = functools.partial(
            _sil_kernel, img_size=S, tile_h=TH, num_faces=coef.shape[1] // 9)
        return pl.pallas_call(
            kernel,
            out_shape=jax.ShapeDtypeStruct((B, S, S), jnp.float32),
            grid=(B, S // TH),
            in_specs=[pl.BlockSpec(memory_space=pltpu.MemorySpace.SMEM)],  # coef (B, F*9)
            out_specs=pl.BlockSpec((1, TH, S), lambda b, i: (b, i, 0)),
            compiler_params=pltpu.CompilerParams(
                dimension_semantics=("parallel", "parallel")),
        )(coef)

    def forward(self, vertices, faces, cams, textures=None):
        proj = perspective_proj_withz(vertices, cams, self.offset_z,
                                      self.norm_f, self.norm_z, self.norm_f0)
        coef = _edge_coefficients(proj, faces, self.img_size)
        img = None  # render_rgb == False in this configuration (RGB path untranslated)
        sil = self._render_silhouettes(coef)
        return img, sil

    __call__ = forward


# --------------------------------------------------------------------------------------
# Demo
# --------------------------------------------------------------------------------------
if __name__ == "__main__":
    key = jax.random.PRNGKey(0)
    kv, kq, kt, ks, kf = jax.random.split(key, 5)

    B, N, F, IMG = 2, 128, 12, 128

    # Vertices roughly in a unit box around the origin.
    vertices = jax.random.uniform(kv, (B, N, 3), jnp.float32, minval=-0.5, maxval=0.5)

    # Camera: [f-scale, tx, ty, quaternion(w, x, y, z)] — near-identity rotation.
    scale = 1.0 + 0.1 * jax.random.uniform(ks, (B, 1), jnp.float32)
    trans = 0.1 * jax.random.uniform(kt, (B, 2), jnp.float32, minval=-1.0, maxval=1.0)
    quat = jnp.array([1.0, 0.0, 0.0, 0.0], jnp.float32) + \
        0.1 * jax.random.normal(kq, (B, 4), jnp.float32)
    quat = quat / jnp.linalg.norm(quat, axis=-1, keepdims=True)
    cams = jnp.concatenate([scale, trans, quat], axis=1)  # (B, 7)

    # Random triangle faces (indices into the vertex list).
    faces = jax.random.randint(kf, (B, F, 3), 0, N, dtype=jnp.int32)

    # norm_f / norm_z chosen as in typical usage so that (norm_z + z_rot) stays positive.
    renderer = NeuralRendererPallas(img_size=IMG, norm_f=5.0, norm_z=5.0, norm_f0=0.0,
                                    render_rgb=False, num_faces=F)

    img, sil = renderer(vertices, faces, cams)
    sil = jax.block_until_ready(sil)

    assert img is None
    assert sil.shape == (B, IMG, IMG)
    assert sil.dtype == jnp.float32
    assert float(sil.min()) >= 0.0 and float(sil.max()) <= 1.0
    print("KERNEL_OK")
</pallas_src>

<mosaic_0001>
module attributes {stable_mosaic.version = 11 : i64} {
  func.func @_sil_kernel(%arg0: i32, %arg1: i32, %arg2: memref<2x108xf32, #tpu.memory_space<smem>>, %arg3: memref<1x128x128xf32, #tpu.memory_space<vmem>>) attributes {dimension_semantics = [#tpu.dimension_semantics<parallel>, #tpu.dimension_semantics<parallel>], iteration_bounds = array<i64: 2, 1>, scalar_prefetch = 0 : i64, scratch_operands = 0 : i64, tpu.core_type = #tpu.core_type<tc>, window_params = [{transform_indices = @transform_0, window_bounds = array<i64: 2, 108>}, {transform_indices = @transform_1, window_bounds = array<i64: 1, 128, 128>}]} {
    %c128_i32 = arith.constant 128 : i32
    %0 = arith.muli %arg1, %c128_i32 : i32
    %1 = arith.sitofp %0 : i32 to f32
    %2 = tpu.iota {dimensions = array<i32: 1>} : vector<8x128xi32>
    %3 = arith.sitofp %2 : vector<8x128xi32> to vector<8x128xf32>
    %4 = tpu.iota {dimensions = array<i32: 0>} : vector<8x128xi32>
    %5 = arith.sitofp %4 : vector<8x128xi32> to vector<8x128xf32>
    %cst = arith.constant -3.000000e+38 : f32
    %6 = vector.broadcast %cst : f32 to vector<8x128xf32>
    %cst_0 = arith.constant -3.000000e+38 : f32
    %7 = vector.broadcast %cst_0 : f32 to vector<8x128xf32>
    %cst_1 = arith.constant -3.000000e+38 : f32
    %8 = vector.broadcast %cst_1 : f32 to vector<8x128xf32>
    %cst_2 = arith.constant -3.000000e+38 : f32
    %9 = vector.broadcast %cst_2 : f32 to vector<8x128xf32>
    %cst_3 = arith.constant -3.000000e+38 : f32
    %10 = vector.broadcast %cst_3 : f32 to vector<8x128xf32>
    %cst_4 = arith.constant -3.000000e+38 : f32
    %11 = vector.broadcast %cst_4 : f32 to vector<8x128xf32>
    %cst_5 = arith.constant -3.000000e+38 : f32
    %12 = vector.broadcast %cst_5 : f32 to vector<8x128xf32>
    %cst_6 = arith.constant -3.000000e+38 : f32
    %13 = vector.broadcast %cst_6 : f32 to vector<8x128xf32>
    %cst_7 = arith.constant -3.000000e+38 : f32
    %14 = vector.broadcast %cst_7 : f32 to vector<8x128xf32>
    %cst_8 = arith.constant -3.000000e+38 : f32
    %15 = vector.broadcast %cst_8 : f32 to vector<8x128xf32>
    %cst_9 = arith.constant -3.000000e+38 : f32
    %16 = vector.broadcast %cst_9 : f32 to vector<8x128xf32>
    %cst_10 = arith.constant -3.000000e+38 : f32
    %17 = vector.broadcast %cst_10 : f32 to vector<8x128xf32>
    %cst_11 = arith.constant -3.000000e+38 : f32
    %18 = vector.broadcast %cst_11 : f32 to vector<8x128xf32>
    %cst_12 = arith.constant -3.000000e+38 : f32
    %19 = vector.broadcast %cst_12 : f32 to vector<8x128xf32>
    %cst_13 = arith.constant -3.000000e+38 : f32
    %20 = vector.broadcast %cst_13 : f32 to vector<8x128xf32>
    %cst_14 = arith.constant -3.000000e+38 : f32
    %21 = vector.broadcast %cst_14 : f32 to vector<8x128xf32>
    %22 = arith.index_cast %arg0 : i32 to index
    %c0 = arith.constant 0 : index
    %23 = memref.load %arg2[%22, %c0] : memref<2x108xf32, #tpu.memory_space<smem>>
    %24 = arith.index_cast %arg0 : i32 to index
    %c1 = arith.constant 1 : index
    %25 = memref.load %arg2[%24, %c1] : memref<2x108xf32, #tpu.memory_space<smem>>
    %26 = arith.index_cast %arg0 : i32 to index
    %c2 = arith.constant 2 : index
    %27 = memref.load %arg2[%26, %c2] : memref<2x108xf32, #tpu.memory_space<smem>>
    %28 = arith.mulf %25, %1 : f32
    %29 = arith.addf %27, %28 : f32
    %30 = arith.index_cast %arg0 : i32 to index
    %c3 = arith.constant 3 : index
    %31 = memref.load %arg2[%30, %c3] : memref<2x108xf32, #tpu.memory_space<smem>>
    %32 = arith.index_cast %arg0 : i32 to index
    %c4 = arith.constant 4 : index
    %33 = memref.load %arg2[%32, %c4] : memref<2x108xf32, #tpu.memory_space<smem>>
    %34 = arith.index_cast %arg0 : i32 to index
    %c5 = arith.constant 5 : index
    %35 = memref.load %arg2[%34, %c5] : memref<2x108xf32, #tpu.memory_space<smem>>
    %36 = arith.mulf %33, %1 : f32
    %37 = arith.addf %35, %36 : f32
    %38 = arith.index_cast %arg0 : i32 to index
    %c6 = arith.constant 6 : index
    %39 = memref.load %arg2[%38, %c6] : memref<2x108xf32, #tpu.memory_space<smem>>
    %40 = arith.index_cast %arg0 : i32 to index
    %c7 = arith.constant 7 : index
    %41 = memref.load %arg2[%40, %c7] : memref<2x108xf32, #tpu.memory_space<smem>>
    %42 = arith.index_cast %arg0 : i32 to index
    %c8 = arith.constant 8 : index
    %43 = memref.load %arg2[%42, %c8] : memref<2x108xf32, #tpu.memory_space<smem>>
    %44 = arith.mulf %41, %1 : f32
    %45 = arith.addf %43, %44 : f32
    %46 = vector.broadcast %23 : f32 to vector<8x128xf32>
    %47 = arith.mulf %46, %3 : vector<8x128xf32>
    %48 = vector.broadcast %25 : f32 to vector<8x128xf32>
    %49 = arith.mulf %48, %5 : vector<8x128xf32>
    %50 = vector.broadcast %29 : f32 to vector<8x128xf32>
    %51 = arith.addf %49, %50 : vector<8x128xf32>
    %52 = arith.addf %47, %51 : vector<8x128xf32>
    %53 = vector.broadcast %31 : f32 to vector<8x128xf32>
    %54 = arith.mulf %53, %3 : vector<8x128xf32>
    %55 = vector.broadcast %33 : f32 to vector<8x128xf32>
    %56 = arith.mulf %55, %5 : vector<8x128xf32>
    %57 = vector.broadcast %37 : f32 to vector<8x128xf32>
    %58 = arith.addf %56, %57 : vector<8x128xf32>
    %59 = arith.addf %54, %58 : vector<8x128xf32>
    %60 = vector.broadcast %39 : f32 to vector<8x128xf32>
    %61 = arith.mulf %60, %3 : vector<8x128xf32>
    %62 = vector.broadcast %41 : f32 to vector<8x128xf32>
    %63 = arith.mulf %62, %5 : vector<8x128xf32>
    %64 = vector.broadcast %45 : f32 to vector<8x128xf32>
    %65 = arith.addf %63, %64 : vector<8x128xf32>
    %66 = arith.addf %61, %65 : vector<8x128xf32>
    %cst_15 = arith.constant 8.000000e+00 : f32
    %67 = arith.mulf %25, %cst_15 : f32
    %cst_16 = arith.constant 8.000000e+00 : f32
    %68 = arith.mulf %33, %cst_16 : f32
    %cst_17 = arith.constant 8.000000e+00 : f32
    %69 = arith.mulf %41, %cst_17 : f32
    %70 = arith.minimumf %52, %59 : vector<8x128xf32>
    %71 = arith.minimumf %70, %66 : vector<8x128xf32>
    %72 = arith.maximumf %6, %71 : vector<8x128xf32>
    %73 = vector.broadcast %67 : f32 to vector<8x128xf32>
    %74 = arith.addf %52, %73 : vector<8x128xf32>
    %75 = vector.broadcast %68 : f32 to vector<8x128xf32>
    %76 = arith.addf %59, %75 : vector<8x128xf32>
    %77 = vector.broadcast %69 : f32 to vector<8x128xf32>
    %78 = arith.addf %66, %77 : vector<8x128xf32>
    %79 = arith.minimumf %74, %76 : vector<8x128xf32>
    %80 = arith.minimumf %79, %78 : vector<8x128xf32>
    %81 = arith.maximumf %7, %80 : vector<8x128xf32>
    %82 = vector.broadcast %67 : f32 to vector<8x128xf32>
    %83 = arith.addf %74, %82 : vector<8x128xf32>
    %84 = vector.broadcast %68 : f32 to vector<8x128xf32>
    %85 = arith.addf %76, %84 : vector<8x128xf32>
    %86 = vector.broadcast %69 : f32 to vector<8x128xf32>
    %87 = arith.addf %78, %86 : vector<8x128xf32>
    %88 = arith.minimumf %83, %85 : vector<8x128xf32>
    %89 = arith.minimumf %88, %87 : vector<8x128xf32>
    %90 = arith.maximumf %8, %89 : vector<8x128xf32>
    %91 = vector.broadcast %67 : f32 to vector<8x128xf32>
    %92 = arith.addf %83, %91 : vector<8x128xf32>
    %93 = vector.broadcast %68 : f32 to vector<8x128xf32>
    %94 = arith.addf %85, %93 : vector<8x128xf32>
    %95 = vector.broadcast %69 : f32 to vector<8x128xf32>
    %96 = arith.addf %87, %95 : vector<8x128xf32>
    %97 = arith.minimumf %92, %94 : vector<8x128xf32>
    %98 = arith.minimumf %97, %96 : vector<8x128xf32>
    %99 = arith.maximumf %9, %98 : vector<8x128xf32>
    %100 = vector.broadcast %67 : f32 to vector<8x128xf32>
    %101 = arith.addf %92, %100 : vector<8x128xf32>
    %102 = vector.broadcast %68 : f32 to vector<8x128xf32>
    %103 = arith.addf %94, %102 : vector<8x128xf32>
    %104 = vector.broadcast %69 : f32 to vector<8x128xf32>
    %105 = arith.addf %96, %104 : vector<8x128xf32>
    %106 = arith.minimumf %101, %103 : vector<8x128xf32>
    %107 = arith.minimumf %106, %105 : vector<8x128xf32>
    %108 = arith.maximumf %10, %107 : vector<8x128xf32>
    %109 = vector.broadcast %67 : f32 to vector<8x128xf32>
    %110 = arith.addf %101, %109 : vector<8x128xf32>
    %111 = vector.broadcast %68 : f32 to vector<8x128xf32>
    %112 = arith.addf %103, %111 : vector<8x128xf32>
    %113 = vector.broadcast %69 : f32 to vector<8x128xf32>
    %114 = arith.addf %105, %113 : vector<8x128xf32>
    %115 = arith.minimumf %110, %112 : vector<8x128xf32>
    %116 = arith.minimumf %115, %114 : vector<8x128xf32>
    %117 = arith.maximumf %11, %116 : vector<8x128xf32>
    %118 = vector.broadcast %67 : f32 to vector<8x128xf32>
    %119 = arith.addf %110, %118 : vector<8x128xf32>
    %120 = vector.broadcast %68 : f32 to vector<8x128xf32>
    %121 = arith.addf %112, %120 : vector<8x128xf32>
    %122 = vector.broadcast %69 : f32 to vector<8x128xf32>
    %123 = arith.addf %114, %122 : vector<8x128xf32>
    %124 = arith.minimumf %119, %121 : vector<8x128xf32>
    %125 = arith.minimumf %124, %123 : vector<8x128xf32>
    %126 = arith.maximumf %12, %125 : vector<8x128xf32>
    %127 = vector.broadcast %67 : f32 to vector<8x128xf32>
    %128 = arith.addf %119, %127 : vector<8x128xf32>
    %129 = vector.broadcast %68 : f32 to vector<8x128xf32>
    %130 = arith.addf %121, %129 : vector<8x128xf32>
    %131 = vector.broadcast %69 : f32 to vector<8x128xf32>
    %132 = arith.addf %123, %131 : vector<8x128xf32>
    %133 = arith.minimumf %128, %130 : vector<8x128xf32>
    %134 = arith.minimumf %133, %132 : vector<8x128xf32>
    %135 = arith.maximumf %13, %134 : vector<8x128xf32>
    %136 = vector.broadcast %67 : f32 to vector<8x128xf32>
    %137 = arith.addf %128, %136 : vector<8x128xf32>
    %138 = vector.broadcast %68 : f32 to vector<8x128xf32>
    %139 = arith.addf %130, %138 : vector<8x128xf32>
    %140 = vector.broadcast %69 : f32 to vector<8x128xf32>
    %141 = arith.addf %132, %140 : vector<8x128xf32>
    %142 = arith.minimumf %137, %139 : vector<8x128xf32>
    %143 = arith.minimumf %142, %141 : vector<8x128xf32>
    %144 = arith.maximumf %14, %143 : vector<8x128xf32>
    %145 = vector.broadcast %67 : f32 to vector<8x128xf32>
    %146 = arith.addf %137, %145 : vector<8x128xf32>
    %147 = vector.broadcast %68 : f32 to vector<8x128xf32>
    %148 = arith.addf %139, %147 : vector<8x128xf32>
    %149 = vector.broadcast %69 : f32 to vector<8x128xf32>
    %150 = arith.addf %141, %149 : vector<8x128xf32>
    %151 = arith.minimumf %146, %148 : vector<8x128xf32>
    %152 = arith.minimumf %151, %150 : vector<8x128xf32>
    %153 = arith.maximumf %15, %152 : vector<8x128xf32>
    %154 = vector.broadcast %67 : f32 to vector<8x128xf32>
    %155 = arith.addf %146, %154 : vector<8x128xf32>
    %156 = vector.broadcast %68 : f32 to vector<8x128xf32>
    %157 = arith.addf %148, %156 : vector<8x128xf32>
    %158 = vector.broadcast %69 : f32 to vector<8x128xf32>
    %159 = arith.addf %150, %158 : vector<8x128xf32>
    %160 = arith.minimumf %155, %157 : vector<8x128xf32>
    %161 = arith.minimumf %160, %159 : vector<8x128xf32>
    %162 = arith.maximumf %16, %161 : vector<8x128xf32>
    %163 = vector.broadcast %67 : f32 to vector<8x128xf32>
    %164 = arith.addf %155, %163 : vector<8x128xf32>
    %165 = vector.broadcast %68 : f32 to vector<8x128xf32>
    %166 = arith.addf %157, %165 : vector<8x128xf32>
    %167 = vector.broadcast %69 : f32 to vector<8x128xf32>
    %168 = arith.addf %159, %167 : vector<8x128xf32>
    %169 = arith.minimumf %164, %166 : vector<8x128xf32>
    %170 = arith.minimumf %169, %168 : vector<8x128xf32>
    %171 = arith.maximumf %17, %170 : vector<8x128xf32>
    %172 = vector.broadcast %67 : f32 to vector<8x128xf32>
    %173 = arith.addf %164, %172 : vector<8x128xf32>
    %174 = vector.broadcast %68 : f32 to vector<8x128xf32>
    %175 = arith.addf %166, %174 : vector<8x128xf32>
    %176 = vector.broadcast %69 : f32 to vector<8x128xf32>
    %177 = arith.addf %168, %176 : vector<8x128xf32>
    %178 = arith.minimumf %173, %175 : vector<8x128xf32>
    %179 = arith.minimumf %178, %177 : vector<8x128xf32>
    %180 = arith.maximumf %18, %179 : vector<8x128xf32>
    %181 = vector.broadcast %67 : f32 to vector<8x128xf32>
    %182 = arith.addf %173, %181 : vector<8x128xf32>
    %183 = vector.broadcast %68 : f32 to vector<8x128xf32>
    %184 = arith.addf %175, %183 : vector<8x128xf32>
    %185 = vector.broadcast %69 : f32 to vector<8x128xf32>
    %186 = arith.addf %177, %185 : vector<8x128xf32>
    %187 = arith.minimumf %182, %184 : vector<8x128xf32>
    %188 = arith.minimumf %187, %186 : vector<8x128xf32>
    %189 = arith.maximumf %19, %188 : vector<8x128xf32>
    %190 = vector.broadcast %67 : f32 to vector<8x128xf32>
    %191 = arith.addf %182, %190 : vector<8x128xf32>
    %192 = vector.broadcast %68 : f32 to vector<8x128xf32>
    %193 = arith.addf %184, %192 : vector<8x128xf32>
    %194 = vector.broadcast %69 : f32 to vector<8x128xf32>
    %195 = arith.addf %186, %194 : vector<8x128xf32>
    %196 = arith.minimumf %191, %193 : vector<8x128xf32>
    %197 = arith.minimumf %196, %195 : vector<8x128xf32>
    %198 = arith.maximumf %20, %197 : vector<8x128xf32>
    %199 = vector.broadcast %67 : f32 to vector<8x128xf32>
    %200 = arith.addf %191, %199 : vector<8x128xf32>
    %201 = vector.broadcast %68 : f32 to vector<8x128xf32>
    %202 = arith.addf %193, %201 : vector<8x128xf32>
    %203 = vector.broadcast %69 : f32 to vector<8x128xf32>
    %204 = arith.addf %195, %203 : vector<8x128xf32>
    %205 = arith.minimumf %200, %202 : vector<8x128xf32>
    %206 = arith.minimumf %205, %204 : vector<8x128xf32>
    %207 = arith.maximumf %21, %206 : vector<8x128xf32>
    %208 = arith.index_cast %arg0 : i32 to index
    %c9 = arith.constant 9 : index
    %209 = memref.load %arg2[%208, %c9] : memref<2x108xf32, #tpu.memory_space<smem>>
    %210 = arith.index_cast %arg0 : i32 to index
    %c10 = arith.constant 10 : index
    %211 = memref.load %arg2[%210, %c10] : memref<2x108xf32, #tpu.memory_space<smem>>
    %212 = arith.index_cast %arg0 : i32 to index
    %c11 = arith.constant 11 : index
    %213 = memref.load %arg2[%212, %c11] : memref<2x108xf32, #tpu.memory_space<smem>>
    %214 = arith.mulf %211, %1 : f32
    %215 = arith.addf %213, %214 : f32
    %216 = arith.index_cast %arg0 : i32 to index
    %c12 = arith.constant 12 : index
    %217 = memref.load %arg2[%216, %c12] : memref<2x108xf32, #tpu.memory_space<smem>>
    %218 = arith.index_cast %arg0 : i32 to index
    %c13 = arith.constant 13 : index
    %219 = memref.load %arg2[%218, %c13] : memref<2x108xf32, #tpu.memory_space<smem>>
    %220 = arith.index_cast %arg0 : i32 to index
    %c14 = arith.constant 14 : index
    %221 = memref.load %arg2[%220, %c14] : memref<2x108xf32, #tpu.memory_space<smem>>
    %222 = arith.mulf %219, %1 : f32
    %223 = arith.addf %221, %222 : f32
    %224 = arith.index_cast %arg0 : i32 to index
    %c15 = arith.constant 15 : index
    %225 = memref.load %arg2[%224, %c15] : memref<2x108xf32, #tpu.memory_space<smem>>
    %226 = arith.index_cast %arg0 : i32 to index
    %c16 = arith.constant 16 : index
    %227 = memref.load %arg2[%226, %c16] : memref<2x108xf32, #tpu.memory_space<smem>>
    %228 = arith.index_cast %arg0 : i32 to index
    %c17 = arith.constant 17 : index
    %229 = memref.load %arg2[%228, %c17] : memref<2x108xf32, #tpu.memory_space<smem>>
    %230 = arith.mulf %227, %1 : f32
    %231 = arith.addf %229, %230 : f32
    %232 = vector.broadcast %209 : f32 to vector<8x128xf32>
    %233 = arith.mulf %232, %3 : vector<8x128xf32>
    %234 = vector.broadcast %211 : f32 to vector<8x128xf32>
    %235 = arith.mulf %234, %5 : vector<8x128xf32>
    %236 = vector.broadcast %215 : f32 to vector<8x128xf32>
    %237 = arith.addf %235, %236 : vector<8x128xf32>
    %238 = arith.addf %233, %237 : vector<8x128xf32>
    %239 = vector.broadcast %217 : f32 to vector<8x128xf32>
    %240 = arith.mulf %239, %3 : vector<8x128xf32>
    %241 = vector.broadcast %219 : f32 to vector<8x128xf32>
    %242 = arith.mulf %241, %5 : vector<8x128xf32>
    %243 = vector.broadcast %223 : f32 to vector<8x128xf32>
    %244 = arith.addf %242, %243 : vector<8x128xf32>
    %245 = arith.addf %240, %244 : vector<8x128xf32>
    %246 = vector.broadcast %225 : f32 to vector<8x128xf32>
    %247 = arith.mulf %246, %3 : vector<8x128xf32>
    %248 = vector.broadcast %227 : f32 to vector<8x128xf32>
    %249 = arith.mulf %248, %5 : vector<8x128xf32>
    %250 = vector.broadcast %231 : f32 to vector<8x128xf32>
    %251 = arith.addf %249, %250 : vector<8x128xf32>
    %252 = arith.addf %247, %251 : vector<8x128xf32>
    %cst_18 = arith.constant 8.000000e+00 : f32
    %253 = arith.mulf %211, %cst_18 : f32
    %cst_19 = arith.constant 8.000000e+00 : f32
    %254 = arith.mulf %219, %cst_19 : f32
    %cst_20 = arith.constant 8.000000e+00 : f32
    %255 = arith.mulf %227, %cst_20 : f32
    %256 = arith.minimumf %238, %245 : vector<8x128xf32>
    %257 = arith.minimumf %256, %252 : vector<8x128xf32>
    %258 = arith.maximumf %72, %257 : vector<8x128xf32>
    %259 = vector.broadcast %253 : f32 to vector<8x128xf32>
    %260 = arith.addf %238, %259 : vector<8x128xf32>
    %261 = vector.broadcast %254 : f32 to vector<8x128xf32>
    %262 = arith.addf %245, %261 : vector<8x128xf32>
    %263 = vector.broadcast %255 : f32 to vector<8x128xf32>
    %264 = arith.addf %252, %263 : vector<8x128xf32>
    %265 = arith.minimumf %260, %262 : vector<8x128xf32>
    %266 = arith.minimumf %265, %264 : vector<8x128xf32>
    %267 = arith.maximumf %81, %266 : vector<8x128xf32>
    %268 = vector.broadcast %253 : f32 to vector<8x128xf32>
    %269 = arith.addf %260, %268 : vector<8x128xf32>
    %270 = vector.broadcast %254 : f32 to vector<8x128xf32>
    %271 = arith.addf %262, %270 : vector<8x128xf32>
    %272 = vector.broadcast %255 : f32 to vector<8x128xf32>
    %273 = arith.addf %264, %272 : vector<8x128xf32>
    %274 = arith.minimumf %269, %271 : vector<8x128xf32>
    %275 = arith.minimumf %274, %273 : vector<8x128xf32>
    %276 = arith.maximumf %90, %275 : vector<8x128xf32>
    %277 = vector.broadcast %253 : f32 to vector<8x128xf32>
    %278 = arith.addf %269, %277 : vector<8x128xf32>
    %279 = vector.broadcast %254 : f32 to vector<8x128xf32>
    %280 = arith.addf %271, %279 : vector<8x128xf32>
    %281 = vector.broadcast %255 : f32 to vector<8x128xf32>
    %282 = arith.addf %273, %281 : vector<8x128xf32>
    %283 = arith.minimumf %278, %280 : vector<8x128xf32>
    %284 = arith.minimumf %283, %282 : vector<8x128xf32>
    %285 = arith.maximumf %99, %284 : vector<8x128xf32>
    %286 = vector.broadcast %253 : f32 to vector<8x128xf32>
    %287 = arith.addf %278, %286 : vector<8x128xf32>
    %288 = vector.broadcast %254 : f32 to vector<8x128xf32>
    %289 = arith.addf %280, %288 : vector<8x128xf32>
    %290 = vector.broadcast %255 : f32 to vector<8x128xf32>
    %291 = arith.addf %282, %290 : vector<8x128xf32>
    %292 = arith.minimumf %287, %289 : vector<8x128xf32>
    %293 = arith.minimumf %292, %291 : vector<8x128xf32>
    %294 = arith.maximumf %108, %293 : vector<8x128xf32>
    %295 = vector.broadcast %253 : f32 to vector<8x128xf32>
    %296 = arith.addf %287, %295 : vector<8x128xf32>
    %297 = vector.broadcast %254 : f32 to vector<8x128xf32>
    %298 = arith.addf %289, %297 : vector<8x128xf32>
    %299 = vector.broadcast %255 : f32 to vector<8x128xf32>
    %300 = arith.addf %291, %299 : vector<8x128xf32>
    %301 = arith.minimumf %296, %298 : vector<8x128xf32>
    %302 = arith.minimumf %301, %300 : vector<8x128xf32>
    %303 = arith.maximumf %117, %302 : vector<8x128xf32>
    %304 = vector.broadcast %253 : f32 to vector<8x128xf32>
    %305 = arith.addf %296, %304 : vector<8x128xf32>
    %306 = vector.broadcast %254 : f32 to vector<8x128xf32>
    %307 = arith.addf %298, %306 : vector<8x128xf32>
    %308 = vector.broadcast %255 : f32 to vector<8x128xf32>
    %309 = arith.addf %300, %308 : vector<8x128xf32>
    %310 = arith.minimumf %305, %307 : vector<8x128xf32>
    %311 = arith.minimumf %310, %309 : vector<8x128xf32>
    %312 = arith.maximumf %126, %311 : vector<8x128xf32>
    %313 = vector.broadcast %253 : f32 to vector<8x128xf32>
    %314 = arith.addf %305, %313 : vector<8x128xf32>
    %315 = vector.broadcast %254 : f32 to vector<8x128xf32>
    %316 = arith.addf %307, %315 : vector<8x128xf32>
    %317 = vector.broadcast %255 : f32 to vector<8x128xf32>
    %318 = arith.addf %309, %317 : vector<8x128xf32>
    %319 = arith.minimumf %314, %316 : vector<8x128xf32>
    %320 = arith.minimumf %319, %318 : vector<8x128xf32>
    %321 = arith.maximumf %135, %320 : vector<8x128xf32>
    %322 = vector.broadcast %253 : f32 to vector<8x128xf32>
    %323 = arith.addf %314, %322 : vector<8x128xf32>
    %324 = vector.broadcast %254 : f32 to vector<8x128xf32>
    %325 = arith.addf %316, %324 : vector<8x128xf32>
    %326 = vector.broadcast %255 : f32 to vector<8x128xf32>
    %327 = arith.addf %318, %326 : vector<8x128xf32>
    %328 = arith.minimumf %323, %325 : vector<8x128xf32>
    %329 = arith.minimumf %328, %327 : vector<8x128xf32>
    %330 = arith.maximumf %144, %329 : vector<8x128xf32>
    %331 = vector.broadcast %253 : f32 to vector<8x128xf32>
    %332 = arith.addf %323, %331 : vector<8x128xf32>
    %333 = vector.broadcast %254 : f32 to vector<8x128xf32>
    %334 = arith.addf %325, %333 : vector<8x128xf32>
    %335 = vector.broadcast %255 : f32 to vector<8x128xf32>
    %336 = arith.addf %327, %335 : vector<8x128xf32>
    %337 = arith.minimumf %332, %334 : vector<8x128xf32>
    %338 = arith.minimumf %337, %336 : vector<8x128xf32>
    %339 = arith.maximumf %153, %338 : vector<8x128xf32>
    %340 = vector.broadcast %253 : f32 to vector<8x128xf32>
    %341 = arith.addf %332, %340 : vector<8x128xf32>
    %342 = vector.broadcast %254 : f32 to vector<8x128xf32>
    %343 = arith.addf %334, %342 : vector<8x128xf32>
    %344 = vector.broadcast %255 : f32 to vector<8x128xf32>
    %345 = arith.addf %336, %344 : vector<8x128xf32>
    %346 = arith.minimumf %341, %343 : vector<8x128xf32>
    %347 = arith.minimumf %346, %345 : vector<8x128xf32>
    %348 = arith.maximumf %162, %347 : vector<8x128xf32>
    %349 = vector.broadcast %253 : f32 to vector<8x128xf32>
    %350 = arith.addf %341, %349 : vector<8x128xf32>
    %351 = vector.broadcast %254 : f32 to vector<8x128xf32>
    %352 = arith.addf %343, %351 : vector<8x128xf32>
    %353 = vector.broadcast %255 : f32 to vector<8x128xf32>
    %354 = arith.addf %345, %353 : vector<8x128xf32>
    %355 = arith.minimumf %350, %352 : vector<8x128xf32>
    %356 = arith.minimumf %355, %354 : vector<8x128xf32>
    %357 = arith.maximumf %171, %356 : vector<8x128xf32>
    %358 = vector.broadcast %253 : f32 to vector<8x128xf32>
    %359 = arith.addf %350, %358 : vector<8x128xf32>
    %360 = vector.broadcast %254 : f32 to vector<8x128xf32>
    %361 = arith.addf %352, %360 : vector<8x128xf32>
    %362 = vector.broadcast %255 : f32 to vector<8x128xf32>
    %363 = arith.addf %354, %362 : vector<8x128xf32>
    %364 = arith.minimumf %359, %361 : vector<8x128xf32>
    %365 = arith.minimumf %364, %363 : vector<8x128xf32>
    %366 = arith.maximumf %180, %365 : vector<8x128xf32>
    %367 = vector.broadcast %253 : f32 to vector<8x128xf32>
    %368 = arith.addf %359, %367 : vector<8x128xf32>
    %369 = vector.broadcast %254 : f32 to vector<8x128xf32>
    %370 = arith.addf %361, %369 : vector<8x128xf32>
    %371 = vector.broadcast %255 : f32 to vector<8x128xf32>
    %372 = arith.addf %363, %371 : vector<8x128xf32>
    %373 = arith.minimumf %368, %370 : vector<8x128xf32>
    %374 = arith.minimumf %373, %372 : vector<8x128xf32>
    %375 = arith.maximumf %189, %374 : vector<8x128xf32>
    %376 = vector.broadcast %253 : f32 to vector<8x128xf32>
    %377 = arith.addf %368, %376 : vector<8x128xf32>
    %378 = vector.broadcast %254 : f32 to vector<8x128xf32>
    %379 = arith.addf %370, %378 : vector<8x128xf32>
    %380 = vector.broadcast %255 : f32 to vector<8x128xf32>
    %381 = arith.addf %372, %380 : vector<8x128xf32>
    %382 = arith.minimumf %377, %379 : vector<8x128xf32>
    %383 = arith.minimumf %382, %381 : vector<8x128xf32>
    %384 = arith.maximumf %198, %383 : vector<8x128xf32>
    %385 = vector.broadcast %253 : f32 to vector<8x128xf32>
    %386 = arith.addf %377, %385 : vector<8x128xf32>
    %387 = vector.broadcast %254 : f32 to vector<8x128xf32>
    %388 = arith.addf %379, %387 : vector<8x128xf32>
    %389 = vector.broadcast %255 : f32 to vector<8x128xf32>
    %390 = arith.addf %381, %389 : vector<8x128xf32>
    %391 = arith.minimumf %386, %388 : vector<8x128xf32>
    %392 = arith.minimumf %391, %390 : vector<8x128xf32>
    %393 = arith.maximumf %207, %392 : vector<8x128xf32>
    %394 = arith.index_cast %arg0 : i32 to index
    %c18 = arith.constant 18 : index
    %395 = memref.load %arg2[%394, %c18] : memref<2x108xf32, #tpu.memory_space<smem>>
    %396 = arith.index_cast %arg0 : i32 to index
    %c19 = arith.constant 19 : index
    %397 = memref.load %arg2[%396, %c19] : memref<2x108xf32, #tpu.memory_space<smem>>
    %398 = arith.index_cast %arg0 : i32 to index
    %c20 = arith.constant 20 : index
    %399 = memref.load %arg2[%398, %c20] : memref<2x108xf32, #tpu.memory_space<smem>>
    %400 = arith.mulf %397, %1 : f32
    %401 = arith.addf %399, %400 : f32
    %402 = arith.index_cast %arg0 : i32 to index
    %c21 = arith.constant 21 : index
    %403 = memref.load %arg2[%402, %c21] : memref<2x108xf32, #tpu.memory_space<smem>>
    %404 = arith.index_cast %arg0 : i32 to index
    %c22 = arith.constant 22 : index
    %405 = memref.load %arg2[%404, %c22] : memref<2x108xf32, #tpu.memory_space<smem>>
    %406 = arith.index_cast %arg0 : i32 to index
    %c23 = arith.constant 23 : index
    %407 = memref.load %arg2[%406, %c23] : memref<2x108xf32, #tpu.memory_space<smem>>
    %408 = arith.mulf %405, %1 : f32
    %409 = arith.addf %407, %408 : f32
    %410 = arith.index_cast %arg0 : i32 to index
    %c24 = arith.constant 24 : index
    %411 = memref.load %arg2[%410, %c24] : memref<2x108xf32, #tpu.memory_space<smem>>
    %412 = arith.index_cast %arg0 : i32 to index
    %c25 = arith.constant 25 : index
    %413 = memref.load %arg2[%412, %c25] : memref<2x108xf32, #tpu.memory_space<smem>>
    %414 = arith.index_cast %arg0 : i32 to index
    %c26 = arith.constant 26 : index
    %415 = memref.load %arg2[%414, %c26] : memref<2x108xf32, #tpu.memory_space<smem>>
    %416 = arith.mulf %413, %1 : f32
    %417 = arith.addf %415, %416 : f32
    %418 = vector.broadcast %395 : f32 to vector<8x128xf32>
    %419 = arith.mulf %418, %3 : vector<8x128xf32>
    %420 = vector.broadcast %397 : f32 to vector<8x128xf32>
    %421 = arith.mulf %420, %5 : vector<8x128xf32>
    %422 = vector.broadcast %401 : f32 to vector<8x128xf32>
    %423 = arith.addf %421, %422 : vector<8x128xf32>
    %424 = arith.addf %419, %423 : vector<8x128xf32>
    %425 = vector.broadcast %403 : f32 to vector<8x128xf32>
    %426 = arith.mulf %425, %3 : vector<8x128xf32>
    %427 = vector.broadcast %405 : f32 to vector<8x128xf32>
    %428 = arith.mulf %427, %5 : vector<8x128xf32>
    %429 = vector.broadcast %409 : f32 to vector<8x128xf32>
    %430 = arith.addf %428, %429 : vector<8x128xf32>
    %431 = arith.addf %426, %430 : vector<8x128xf32>
    %432 = vector.broadcast %411 : f32 to vector<8x128xf32>
    %433 = arith.mulf %432, %3 : vector<8x128xf32>
    %434 = vector.broadcast %413 : f32 to vector<8x128xf32>
    %435 = arith.mulf %434, %5 : vector<8x128xf32>
    %436 = vector.broadcast %417 : f32 to vector<8x128xf32>
    %437 = arith.addf %435, %436 : vector<8x128xf32>
    %438 = arith.addf %433, %437 : vector<8x128xf32>
    %cst_21 = arith.constant 8.000000e+00 : f32
    %439 = arith.mulf %397, %cst_21 : f32
    %cst_22 = arith.constant 8.000000e+00 : f32
    %440 = arith.mulf %405, %cst_22 : f32
    %cst_23 = arith.constant 8.000000e+00 : f32
    %441 = arith.mulf %413, %cst_23 : f32
    %442 = arith.minimumf %424, %431 : vector<8x128xf32>
    %443 = arith.minimumf %442, %438 : vector<8x128xf32>
    %444 = arith.maximumf %258, %443 : vector<8x128xf32>
    %445 = vector.broadcast %439 : f32 to vector<8x128xf32>
    %446 = arith.addf %424, %445 : vector<8x128xf32>
    %447 = vector.broadcast %440 : f32 to vector<8x128xf32>
    %448 = arith.addf %431, %447 : vector<8x128xf32>
    %449 = vector.broadcast %441 : f32 to vector<8x128xf32>
    %450 = arith.addf %438, %449 : vector<8x128xf32>
    %451 = arith.minimumf %446, %448 : vector<8x128xf32>
    %452 = arith.minimumf %451, %450 : vector<8x128xf32>
    %453 = arith.maximumf %267, %452 : vector<8x128xf32>
    %454 = vector.broadcast %439 : f32 to vector<8x128xf32>
    %455 = arith.addf %446, %454 : vector<8x128xf32>
    %456 = vector.broadcast %440 : f32 to vector<8x128xf32>
    %457 = arith.addf %448, %456 : vector<8x128xf32>
    %458 = vector.broadcast %441 : f32 to vector<8x128xf32>
    %459 = arith.addf %450, %458 : vector<8x128xf32>
    %460 = arith.minimumf %455, %457 : vector<8x128xf32>
    %461 = arith.minimumf %460, %459 : vector<8x128xf32>
    %462 = arith.maximumf %276, %461 : vector<8x128xf32>
    %463 = vector.broadcast %439 : f32 to vector<8x128xf32>
    %464 = arith.addf %455, %463 : vector<8x128xf32>
    %465 = vector.broadcast %440 : f32 to vector<8x128xf32>
    %466 = arith.addf %457, %465 : vector<8x128xf32>
    %467 = vector.broadcast %441 : f32 to vector<8x128xf32>
    %468 = arith.addf %459, %467 : vector<8x128xf32>
    %469 = arith.minimumf %464, %466 : vector<8x128xf32>
    %470 = arith.minimumf %469, %468 : vector<8x128xf32>
    %471 = arith.maximumf %285, %470 : vector<8x128xf32>
    %472 = vector.broadcast %439 : f32 to vector<8x128xf32>
    %473 = arith.addf %464, %472 : vector<8x128xf32>
    %474 = vector.broadcast %440 : f32 to vector<8x128xf32>
    %475 = arith.addf %466, %474 : vector<8x128xf32>
    %476 = vector.broadcast %441 : f32 to vector<8x128xf32>
    %477 = arith.addf %468, %476 : vector<8x128xf32>
    %478 = arith.minimumf %473, %475 : vector<8x128xf32>
    %479 = arith.minimumf %478, %477 : vector<8x128xf32>
    %480 = arith.maximumf %294, %479 : vector<8x128xf32>
    %481 = vector.broadcast %439 : f32 to vector<8x128xf32>
    %482 = arith.addf %473, %481 : vector<8x128xf32>
    %483 = vector.broadcast %440 : f32 to vector<8x128xf32>
    %484 = arith.addf %475, %483 : vector<8x128xf32>
    %485 = vector.broadcast %441 : f32 to vector<8x128xf32>
    %486 = arith.addf %477, %485 : vector<8x128xf32>
    %487 = arith.minimumf %482, %484 : vector<8x128xf32>
    %488 = arith.minimumf %487, %486 : vector<8x128xf32>
    %489 = arith.maximumf %303, %488 : vector<8x128xf32>
    %490 = vector.broadcast %439 : f32 to vector<8x128xf32>
    %491 = arith.addf %482, %490 : vector<8x128xf32>
    %492 = vector.broadcast %440 : f32 to vector<8x128xf32>
    %493 = arith.addf %484, %492 : vector<8x128xf32>
    %494 = vector.broadcast %441 : f32 to vector<8x128xf32>
    %495 = arith.addf %486, %494 : vector<8x128xf32>
    %496 = arith.minimumf %491, %493 : vector<8x128xf32>
    %497 = arith.minimumf %496, %495 : vector<8x128xf32>
    %498 = arith.maximumf %312, %497 : vector<8x128xf32>
    %499 = vector.broadcast %439 : f32 to vector<8x128xf32>
    %500 = arith.addf %491, %499 : vector<8x128xf32>
    %501 = vector.broadcast %440 : f32 to vector<8x128xf32>
    %502 = arith.addf %493, %501 : vector<8x128xf32>
    %503 = vector.broadcast %441 : f32 to vector<8x128xf32>
    %504 = arith.addf %495, %503 : vector<8x128xf32>
    %505 = arith.minimumf %500, %502 : vector<8x128xf32>
    %506 = arith.minimumf %505, %504 : vector<8x128xf32>
    %507 = arith.maximumf %321, %506 : vector<8x128xf32>
    %508 = vector.broadcast %439 : f32 to vector<8x128xf32>
    %509 = arith.addf %500, %508 : vector<8x128xf32>
    %510 = vector.broadcast %440 : f32 to vector<8x128xf32>
    %511 = arith.addf %502, %510 : vector<8x128xf32>
    %512 = vector.broadcast %441 : f32 to vector<8x128xf32>
    %513 = arith.addf %504, %512 : vector<8x128xf32>
    %514 = arith.minimumf %509, %511 : vector<8x128xf32>
    %515 = arith.minimumf %514, %513 : vector<8x128xf32>
    %516 = arith.maximumf %330, %515 : vector<8x128xf32>
    %517 = vector.broadcast %439 : f32 to vector<8x128xf32>
    %518 = arith.addf %509, %517 : vector<8x128xf32>
    %519 = vector.broadcast %440 : f32 to vector<8x128xf32>
    %520 = arith.addf %511, %519 : vector<8x128xf32>
    %521 = vector.broadcast %441 : f32 to vector<8x128xf32>
    %522 = arith.addf %513, %521 : vector<8x128xf32>
    %523 = arith.minimumf %518, %520 : vector<8x128xf32>
    %524 = arith.minimumf %523, %522 : vector<8x128xf32>
    %525 = arith.maximumf %339, %524 : vector<8x128xf32>
    %526 = vector.broadcast %439 : f32 to vector<8x128xf32>
    %527 = arith.addf %518, %526 : vector<8x128xf32>
    %528 = vector.broadcast %440 : f32 to vector<8x128xf32>
    %529 = arith.addf %520, %528 : vector<8x128xf32>
    %530 = vector.broadcast %441 : f32 to vector<8x128xf32>
    %531 = arith.addf %522, %530 : vector<8x128xf32>
    %532 = arith.minimumf %527, %529 : vector<8x128xf32>
    %533 = arith.minimumf %532, %531 : vector<8x128xf32>
    %534 = arith.maximumf %348, %533 : vector<8x128xf32>
    %535 = vector.broadcast %439 : f32 to vector<8x128xf32>
    %536 = arith.addf %527, %535 : vector<8x128xf32>
    %537 = vector.broadcast %440 : f32 to vector<8x128xf32>
    %538 = arith.addf %529, %537 : vector<8x128xf32>
    %539 = vector.broadcast %441 : f32 to vector<8x128xf32>
    %540 = arith.addf %531, %539 : vector<8x128xf32>
    %541 = arith.minimumf %536, %538 : vector<8x128xf32>
    %542 = arith.minimumf %541, %540 : vector<8x128xf32>
    %543 = arith.maximumf %357, %542 : vector<8x128xf32>
    %544 = vector.broadcast %439 : f32 to vector<8x128xf32>
    %545 = arith.addf %536, %544 : vector<8x128xf32>
    %546 = vector.broadcast %440 : f32 to vector<8x128xf32>
    %547 = arith.addf %538, %546 : vector<8x128xf32>
    %548 = vector.broadcast %441 : f32 to vector<8x128xf32>
    %549 = arith.addf %540, %548 : vector<8x128xf32>
    %550 = arith.minimumf %545, %547 : vector<8x128xf32>
    %551 = arith.minimumf %550, %549 : vector<8x128xf32>
    %552 = arith.maximumf %366, %551 : vector<8x128xf32>
    %553 = vector.broadcast %439 : f32 to vector<8x128xf32>
    %554 = arith.addf %545, %553 : vector<8x128xf32>
    %555 = vector.broadcast %440 : f32 to vector<8x128xf32>
    %556 = arith.addf %547, %555 : vector<8x128xf32>
    %557 = vector.broadcast %441 : f32 to vector<8x128xf32>
    %558 = arith.addf %549, %557 : vector<8x128xf32>
    %559 = arith.minimumf %554, %556 : vector<8x128xf32>
    %560 = arith.minimumf %559, %558 : vector<8x128xf32>
    %561 = arith.maximumf %375, %560 : vector<8x128xf32>
    %562 = vector.broadcast %439 : f32 to vector<8x128xf32>
    %563 = arith.addf %554, %562 : vector<8x128xf32>
    %564 = vector.broadcast %440 : f32 to vector<8x128xf32>
    %565 = arith.addf %556, %564 : vector<8x128xf32>
    %566 = vector.broadcast %441 : f32 to vector<8x128xf32>
    %567 = arith.addf %558, %566 : vector<8x128xf32>
    %568 = arith.minimumf %563, %565 : vector<8x128xf32>
    %569 = arith.minimumf %568, %567 : vector<8x128xf32>
    %570 = arith.maximumf %384, %569 : vector<8x128xf32>
    %571 = vector.broadcast %439 : f32 to vector<8x128xf32>
    %572 = arith.addf %563, %571 : vector<8x128xf32>
    %573 = vector.broadcast %440 : f32 to vector<8x128xf32>
    %574 = arith.addf %565, %573 : vector<8x128xf32>
    %575 = vector.broadcast %441 : f32 to vector<8x128xf32>
    %576 = arith.addf %567, %575 : vector<8x128xf32>
    %577 = arith.minimumf %572, %574 : vector<8x128xf32>
    %578 = arith.minimumf %577, %576 : vector<8x128xf32>
    %579 = arith.maximumf %393, %578 : vector<8x128xf32>
    %580 = arith.index_cast %arg0 : i32 to index
    %c27 = arith.constant 27 : index
    %581 = memref.load %arg2[%580, %c27] : memref<2x108xf32, #tpu.memory_space<smem>>
    %582 = arith.index_cast %arg0 : i32 to index
    %c28 = arith.constant 28 : index
    %583 = memref.load %arg2[%582, %c28] : memref<2x108xf32, #tpu.memory_space<smem>>
    %584 = arith.index_cast %arg0 : i32 to index
    %c29 = arith.constant 29 : index
    %585 = memref.load %arg2[%584, %c29] : memref<2x108xf32, #tpu.memory_space<smem>>
    %586 = arith.mulf %583, %1 : f32
    %587 = arith.addf %585, %586 : f32
    %588 = arith.index_cast %arg0 : i32 to index
    %c30 = arith.constant 30 : index
    %589 = memref.load %arg2[%588, %c30] : memref<2x108xf32, #tpu.memory_space<smem>>
    %590 = arith.index_cast %arg0 : i32 to index
    %c31 = arith.constant 31 : index
    %591 = memref.load %arg2[%590, %c31] : memref<2x108xf32, #tpu.memory_space<smem>>
    %592 = arith.index_cast %arg0 : i32 to index
    %c32 = arith.constant 32 : index
    %593 = memref.load %arg2[%592, %c32] : memref<2x108xf32, #tpu.memory_space<smem>>
    %594 = arith.mulf %591, %1 : f32
    %595 = arith.addf %593, %594 : f32
    %596 = arith.index_cast %arg0 : i32 to index
    %c33 = arith.constant 33 : index
    %597 = memref.load %arg2[%596, %c33] : memref<2x108xf32, #tpu.memory_space<smem>>
    %598 = arith.index_cast %arg0 : i32 to index
    %c34 = arith.constant 34 : index
    %599 = memref.load %arg2[%598, %c34] : memref<2x108xf32, #tpu.memory_space<smem>>
    %600 = arith.index_cast %arg0 : i32 to index
    %c35 = arith.constant 35 : index
    %601 = memref.load %arg2[%600, %c35] : memref<2x108xf32, #tpu.memory_space<smem>>
    %602 = arith.mulf %599, %1 : f32
    %603 = arith.addf %601, %602 : f32
    %604 = vector.broadcast %581 : f32 to vector<8x128xf32>
    %605 = arith.mulf %604, %3 : vector<8x128xf32>
    %606 = vector.broadcast %583 : f32 to vector<8x128xf32>
    %607 = arith.mulf %606, %5 : vector<8x128xf32>
    %608 = vector.broadcast %587 : f32 to vector<8x128xf32>
    %609 = arith.addf %607, %608 : vector<8x128xf32>
    %610 = arith.addf %605, %609 : vector<8x128xf32>
    %611 = vector.broadcast %589 : f32 to vector<8x128xf32>
    %612 = arith.mulf %611, %3 : vector<8x128xf32>
    %613 = vector.broadcast %591 : f32 to vector<8x128xf32>
    %614 = arith.mulf %613, %5 : vector<8x128xf32>
    %615 = vector.broadcast %595 : f32 to vector<8x128xf32>
    %616 = arith.addf %614, %615 : vector<8x128xf32>
    %617 = arith.addf %612, %616 : vector<8x128xf32>
    %618 = vector.broadcast %597 : f32 to vector<8x128xf32>
    %619 = arith.mulf %618, %3 : vector<8x128xf32>
    %620 = vector.broadcast %599 : f32 to vector<8x128xf32>
    %621 = arith.mulf %620, %5 : vector<8x128xf32>
    %622 = vector.broadcast %603 : f32 to vector<8x128xf32>
    %623 = arith.addf %621, %622 : vector<8x128xf32>
    %624 = arith.addf %619, %623 : vector<8x128xf32>
    %cst_24 = arith.constant 8.000000e+00 : f32
    %625 = arith.mulf %583, %cst_24 : f32
    %cst_25 = arith.constant 8.000000e+00 : f32
    %626 = arith.mulf %591, %cst_25 : f32
    %cst_26 = arith.constant 8.000000e+00 : f32
    %627 = arith.mulf %599, %cst_26 : f32
    %628 = arith.minimumf %610, %617 : vector<8x128xf32>
    %629 = arith.minimumf %628, %624 : vector<8x128xf32>
    %630 = arith.maximumf %444, %629 : vector<8x128xf32>
    %631 = vector.broadcast %625 : f32 to vector<8x128xf32>
    %632 = arith.addf %610, %631 : vector<8x128xf32>
    %633 = vector.broadcast %626 : f32 to vector<8x128xf32>
    %634 = arith.addf %617, %633 : vector<8x128xf32>
    %635 = vector.broadcast %627 : f32 to vector<8x128xf32>
    %636 = arith.addf %624, %635 : vector<8x128xf32>
    %637 = arith.minimumf %632, %634 : vector<8x128xf32>
    %638 = arith.minimumf %637, %636 : vector<8x128xf32>
    %639 = arith.maximumf %453, %638 : vector<8x128xf32>
    %640 = vector.broadcast %625 : f32 to vector<8x128xf32>
    %641 = arith.addf %632, %640 : vector<8x128xf32>
    %642 = vector.broadcast %626 : f32 to vector<8x128xf32>
    %643 = arith.addf %634, %642 : vector<8x128xf32>
    %644 = vector.broadcast %627 : f32 to vector<8x128xf32>
    %645 = arith.addf %636, %644 : vector<8x128xf32>
    %646 = arith.minimumf %641, %643 : vector<8x128xf32>
    %647 = arith.minimumf %646, %645 : vector<8x128xf32>
    %648 = arith.maximumf %462, %647 : vector<8x128xf32>
    %649 = vector.broadcast %625 : f32 to vector<8x128xf32>
    %650 = arith.addf %641, %649 : vector<8x128xf32>
    %651 = vector.broadcast %626 : f32 to vector<8x128xf32>
    %652 = arith.addf %643, %651 : vector<8x128xf32>
    %653 = vector.broadcast %627 : f32 to vector<8x128xf32>
    %654 = arith.addf %645, %653 : vector<8x128xf32>
    %655 = arith.minimumf %650, %652 : vector<8x128xf32>
    %656 = arith.minimumf %655, %654 : vector<8x128xf32>
    %657 = arith.maximumf %471, %656 : vector<8x128xf32>
    %658 = vector.broadcast %625 : f32 to vector<8x128xf32>
    %659 = arith.addf %650, %658 : vector<8x128xf32>
    %660 = vector.broadcast %626 : f32 to vector<8x128xf32>
    %661 = arith.addf %652, %660 : vector<8x128xf32>
    %662 = vector.broadcast %627 : f32 to vector<8x128xf32>
    %663 = arith.addf %654, %662 : vector<8x128xf32>
    %664 = arith.minimumf %659, %661 : vector<8x128xf32>
    %665 = arith.minimumf %664, %663 : vector<8x128xf32>
    %666 = arith.maximumf %480, %665 : vector<8x128xf32>
    %667 = vector.broadcast %625 : f32 to vector<8x128xf32>
    %668 = arith.addf %659, %667 : vector<8x128xf32>
    %669 = vector.broadcast %626 : f32 to vector<8x128xf32>
    %670 = arith.addf %661, %669 : vector<8x128xf32>
    %671 = vector.broadcast %627 : f32 to vector<8x128xf32>
    %672 = arith.addf %663, %671 : vector<8x128xf32>
    %673 = arith.minimumf %668, %670 : vector<8x128xf32>
    %674 = arith.minimumf %673, %672 : vector<8x128xf32>
    %675 = arith.maximumf %489, %674 : vector<8x128xf32>
    %676 = vector.broadcast %625 : f32 to vector<8x128xf32>
    %677 = arith.addf %668, %676 : vector<8x128xf32>
    %678 = vector.broadcast %626 : f32 to vector<8x128xf32>
    %679 = arith.addf %670, %678 : vector<8x128xf32>
    %680 = vector.broadcast %627 : f32 to vector<8x128xf32>
    %681 = arith.addf %672, %680 : vector<8x128xf32>
    %682 = arith.minimumf %677, %679 : vector<8x128xf32>
    %683 = arith.minimumf %682, %681 : vector<8x128xf32>
    %684 = arith.maximumf %498, %683 : vector<8x128xf32>
    %685 = vector.broadcast %625 : f32 to vector<8x128xf32>
    %686 = arith.addf %677, %685 : vector<8x128xf32>
    %687 = vector.broadcast %626 : f32 to vector<8x128xf32>
    %688 = arith.addf %679, %687 : vector<8x128xf32>
    %689 = vector.broadcast %627 : f32 to vector<8x128xf32>
    %690 = arith.addf %681, %689 : vector<8x128xf32>
    %691 = arith.minimumf %686, %688 : vector<8x128xf32>
    %692 = arith.minimumf %691, %690 : vector<8x128xf32>
    %693 = arith.maximumf %507, %692 : vector<8x128xf32>
    %694 = vector.broadcast %625 : f32 to vector<8x128xf32>
    %695 = arith.addf %686, %694 : vector<8x128xf32>
    %696 = vector.broadcast %626 : f32 to vector<8x128xf32>
    %697 = arith.addf %688, %696 : vector<8x128xf32>
    %698 = vector.broadcast %627 : f32 to vector<8x128xf32>
    %699 = arith.addf %690, %698 : vector<8x128xf32>
    %700 = arith.minimumf %695, %697 : vector<8x128xf32>
    %701 = arith.minimumf %700, %699 : vector<8x128xf32>
    %702 = arith.maximumf %516, %701 : vector<8x128xf32>
    %703 = vector.broadcast %625 : f32 to vector<8x128xf32>
    %704 = arith.addf %695, %703 : vector<8x128xf32>
    %705 = vector.broadcast %626 : f32 to vector<8x128xf32>
    %706 = arith.addf %697, %705 : vector<8x128xf32>
    %707 = vector.broadcast %627 : f32 to vector<8x128xf32>
    %708 = arith.addf %699, %707 : vector<8x128xf32>
    %709 = arith.minimumf %704, %706 : vector<8x128xf32>
    %710 = arith.minimumf %709, %708 : vector<8x128xf32>
    %711 = arith.maximumf %525, %710 : vector<8x128xf32>
    %712 = vector.broadcast %625 : f32 to vector<8x128xf32>
    %713 = arith.addf %704, %712 : vector<8x128xf32>
    %714 = vector.broadcast %626 : f32 to vector<8x128xf32>
    %715 = arith.addf %706, %714 : vector<8x128xf32>
    %716 = vector.broadcast %627 : f32 to vector<8x128xf32>
    %717 = arith.addf %708, %716 : vector<8x128xf32>
    %718 = arith.minimumf %713, %715 : vector<8x128xf32>
    %719 = arith.minimumf %718, %717 : vector<8x128xf32>
    %720 = arith.maximumf %534, %719 : vector<8x128xf32>
    %721 = vector.broadcast %625 : f32 to vector<8x128xf32>
    %722 = arith.addf %713, %721 : vector<8x128xf32>
    %723 = vector.broadcast %626 : f32 to vector<8x128xf32>
    %724 = arith.addf %715, %723 : vector<8x128xf32>
    %725 = vector.broadcast %627 : f32 to vector<8x128xf32>
    %726 = arith.addf %717, %725 : vector<8x128xf32>
    %727 = arith.minimumf %722, %724 : vector<8x128xf32>
    %728 = arith.minimumf %727, %726 : vector<8x128xf32>
    %729 = arith.maximumf %543, %728 : vector<8x128xf32>
    %730 = vector.broadcast %625 : f32 to vector<8x128xf32>
    %731 = arith.addf %722, %730 : vector<8x128xf32>
    %732 = vector.broadcast %626 : f32 to vector<8x128xf32>
    %733 = arith.addf %724, %732 : vector<8x128xf32>
    %734 = vector.broadcast %627 : f32 to vector<8x128xf32>
    %735 = arith.addf %726, %734 : vector<8x128xf32>
    %736 = arith.minimumf %731, %733 : vector<8x128xf32>
    %737 = arith.minimumf %736, %735 : vector<8x128xf32>
    %738 = arith.maximumf %552, %737 : vector<8x128xf32>
    %739 = vector.broadcast %625 : f32 to vector<8x128xf32>
    %740 = arith.addf %731, %739 : vector<8x128xf32>
    %741 = vector.broadcast %626 : f32 to vector<8x128xf32>
    %742 = arith.addf %733, %741 : vector<8x128xf32>
    %743 = vector.broadcast %627 : f32 to vector<8x128xf32>
    %744 = arith.addf %735, %743 : vector<8x128xf32>
    %745 = arith.minimumf %740, %742 : vector<8x128xf32>
    %746 = arith.minimumf %745, %744 : vector<8x128xf32>
    %747 = arith.maximumf %561, %746 : vector<8x128xf32>
    %748 = vector.broadcast %625 : f32 to vector<8x128xf32>
    %749 = arith.addf %740, %748 : vector<8x128xf32>
    %750 = vector.broadcast %626 : f32 to vector<8x128xf32>
    %751 = arith.addf %742, %750 : vector<8x128xf32>
    %752 = vector.broadcast %627 : f32 to vector<8x128xf32>
    %753 = arith.addf %744, %752 : vector<8x128xf32>
    %754 = arith.minimumf %749, %751 : vector<8x128xf32>
    %755 = arith.minimumf %754, %753 : vector<8x128xf32>
    %756 = arith.maximumf %570, %755 : vector<8x128xf32>
    %757 = vector.broadcast %625 : f32 to vector<8x128xf32>
    %758 = arith.addf %749, %757 : vector<8x128xf32>
    %759 = vector.broadcast %626 : f32 to vector<8x128xf32>
    %760 = arith.addf %751, %759 : vector<8x128xf32>
    %761 = vector.broadcast %627 : f32 to vector<8x128xf32>
    %762 = arith.addf %753, %761 : vector<8x128xf32>
    %763 = arith.minimumf %758, %760 : vector<8x128xf32>
    %764 = arith.minimumf %763, %762 : vector<8x128xf32>
    %765 = arith.maximumf %579, %764 : vector<8x128xf32>
    %766 = arith.index_cast %arg0 : i32 to index
    %c36 = arith.constant 36 : index
    %767 = memref.load %arg2[%766, %c36] : memref<2x108xf32, #tpu.memory_space<smem>>
    %768 = arith.index_cast %arg0 : i32 to index
    %c37 = arith.constant 37 : index
    %769 = memref.load %arg2[%768, %c37] : memref<2x108xf32, #tpu.memory_space<smem>>
    %770 = arith.index_cast %arg0 : i32 to index
    %c38 = arith.constant 38 : index
    %771 = memref.load %arg2[%770, %c38] : memref<2x108xf32, #tpu.memory_space<smem>>
    %772 = arith.mulf %769, %1 : f32
    %773 = arith.addf %771, %772 : f32
    %774 = arith.index_cast %arg0 : i32 to index
    %c39 = arith.constant 39 : index
    %775 = memref.load %arg2[%774, %c39] : memref<2x108xf32, #tpu.memory_space<smem>>
    %776 = arith.index_cast %arg0 : i32 to index
    %c40 = arith.constant 40 : index
    %777 = memref.load %arg2[%776, %c40] : memref<2x108xf32, #tpu.memory_space<smem>>
    %778 = arith.index_cast %arg0 : i32 to index
    %c41 = arith.constant 41 : index
    %779 = memref.load %arg2[%778, %c41] : memref<2x108xf32, #tpu.memory_space<smem>>
    %780 = arith.mulf %777, %1 : f32
    %781 = arith.addf %779, %780 : f32
    %782 = arith.index_cast %arg0 : i32 to index
    %c42 = arith.constant 42 : index
    %783 = memref.load %arg2[%782, %c42] : memref<2x108xf32, #tpu.memory_space<smem>>
    %784 = arith.index_cast %arg0 : i32 to index
    %c43 = arith.constant 43 : index
    %785 = memref.load %arg2[%784, %c43] : memref<2x108xf32, #tpu.memory_space<smem>>
    %786 = arith.index_cast %arg0 : i32 to index
    %c44 = arith.constant 44 : index
    %787 = memref.load %arg2[%786, %c44] : memref<2x108xf32, #tpu.memory_space<smem>>
    %788 = arith.mulf %785, %1 : f32
    %789 = arith.addf %787, %788 : f32
    %790 = vector.broadcast %767 : f32 to vector<8x128xf32>
    %791 = arith.mulf %790, %3 : vector<8x128xf32>
    %792 = vector.broadcast %769 : f32 to vector<8x128xf32>
    %793 = arith.mulf %792, %5 : vector<8x128xf32>
    %794 = vector.broadcast %773 : f32 to vector<8x128xf32>
    %795 = arith.addf %793, %794 : vector<8x128xf32>
    %796 = arith.addf %791, %795 : vector<8x128xf32>
    %797 = vector.broadcast %775 : f32 to vector<8x128xf32>
    %798 = arith.mulf %797, %3 : vector<8x128xf32>
    %799 = vector.broadcast %777 : f32 to vector<8x128xf32>
    %800 = arith.mulf %799, %5 : vector<8x128xf32>
    %801 = vector.broadcast %781 : f32 to vector<8x128xf32>
    %802 = arith.addf %800, %801 : vector<8x128xf32>
    %803 = arith.addf %798, %802 : vector<8x128xf32>
    %804 = vector.broadcast %783 : f32 to vector<8x128xf32>
    %805 = arith.mulf %804, %3 : vector<8x128xf32>
    %806 = vector.broadcast %785 : f32 to vector<8x128xf32>
    %807 = arith.mulf %806, %5 : vector<8x128xf32>
    %808 = vector.broadcast %789 : f32 to vector<8x128xf32>
    %809 = arith.addf %807, %808 : vector<8x128xf32>
    %810 = arith.addf %805, %809 : vector<8x128xf32>
    %cst_27 = arith.constant 8.000000e+00 : f32
    %811 = arith.mulf %769, %cst_27 : f32
    %cst_28 = arith.constant 8.000000e+00 : f32
    %812 = arith.mulf %777, %cst_28 : f32
    %cst_29 = arith.constant 8.000000e+00 : f32
    %813 = arith.mulf %785, %cst_29 : f32
    %814 = arith.minimumf %796, %803 : vector<8x128xf32>
    %815 = arith.minimumf %814, %810 : vector<8x128xf32>
    %816 = arith.maximumf %630, %815 : vector<8x128xf32>
    %817 = vector.broadcast %811 : f32 to vector<8x128xf32>
    %818 = arith.addf %796, %817 : vector<8x128xf32>
    %819 = vector.broadcast %812 : f32 to vector<8x128xf32>
    %820 = arith.addf %803, %819 : vector<8x128xf32>
    %821 = vector.broadcast %813 : f32 to vector<8x128xf32>
    %822 = arith.addf %810, %821 : vector<8x128xf32>
    %823 = arith.minimumf %818, %820 : vector<8x128xf32>
    %824 = arith.minimumf %823, %822 : vector<8x128xf32>
    %825 = arith.maximumf %639, %824 : vector<8x128xf32>
    %826 = vector.broadcast %811 : f32 to vector<8x128xf32>
    %827 = arith.addf %818, %826 : vector<8x128xf32>
    %828 = vector.broadcast %812 : f32 to vector<8x128xf32>
    %829 = arith.addf %820, %828 : vector<8x128xf32>
    %830 = vector.broadcast %813 : f32 to vector<8x128xf32>
    %831 = arith.addf %822, %830 : vector<8x128xf32>
    %832 = arith.minimumf %827, %829 : vector<8x128xf32>
    %833 = arith.minimumf %832, %831 : vector<8x128xf32>
    %834 = arith.maximumf %648, %833 : vector<8x128xf32>
    %835 = vector.broadcast %811 : f32 to vector<8x128xf32>
    %836 = arith.addf %827, %835 : vector<8x128xf32>
    %837 = vector.broadcast %812 : f32 to vector<8x128xf32>
    %838 = arith.addf %829, %837 : vector<8x128xf32>
    %839 = vector.broadcast %813 : f32 to vector<8x128xf32>
    %840 = arith.addf %831, %839 : vector<8x128xf32>
    %841 = arith.minimumf %836, %838 : vector<8x128xf32>
    %842 = arith.minimumf %841, %840 : vector<8x128xf32>
    %843 = arith.maximumf %657, %842 : vector<8x128xf32>
    %844 = vector.broadcast %811 : f32 to vector<8x128xf32>
    %845 = arith.addf %836, %844 : vector<8x128xf32>
    %846 = vector.broadcast %812 : f32 to vector<8x128xf32>
    %847 = arith.addf %838, %846 : vector<8x128xf32>
    %848 = vector.broadcast %813 : f32 to vector<8x128xf32>
    %849 = arith.addf %840, %848 : vector<8x128xf32>
    %850 = arith.minimumf %845, %847 : vector<8x128xf32>
    %851 = arith.minimumf %850, %849 : vector<8x128xf32>
    %852 = arith.maximumf %666, %851 : vector<8x128xf32>
    %853 = vector.broadcast %811 : f32 to vector<8x128xf32>
    %854 = arith.addf %845, %853 : vector<8x128xf32>
    %855 = vector.broadcast %812 : f32 to vector<8x128xf32>
    %856 = arith.addf %847, %855 : vector<8x128xf32>
    %857 = vector.broadcast %813 : f32 to vector<8x128xf32>
    %858 = arith.addf %849, %857 : vector<8x128xf32>
    %859 = arith.minimumf %854, %856 : vector<8x128xf32>
    %860 = arith.minimumf %859, %858 : vector<8x128xf32>
    %861 = arith.maximumf %675, %860 : vector<8x128xf32>
    %862 = vector.broadcast %811 : f32 to vector<8x128xf32>
    %863 = arith.addf %854, %862 : vector<8x128xf32>
    %864 = vector.broadcast %812 : f32 to vector<8x128xf32>
    %865 = arith.addf %856, %864 : vector<8x128xf32>
    %866 = vector.broadcast %813 : f32 to vector<8x128xf32>
    %867 = arith.addf %858, %866 : vector<8x128xf32>
    %868 = arith.minimumf %863, %865 : vector<8x128xf32>
    %869 = arith.minimumf %868, %867 : vector<8x128xf32>
    %870 = arith.maximumf %684, %869 : vector<8x128xf32>
    %871 = vector.broadcast %811 : f32 to vector<8x128xf32>
    %872 = arith.addf %863, %871 : vector<8x128xf32>
    %873 = vector.broadcast %812 : f32 to vector<8x128xf32>
    %874 = arith.addf %865, %873 : vector<8x128xf32>
    %875 = vector.broadcast %813 : f32 to vector<8x128xf32>
    %876 = arith.addf %867, %875 : vector<8x128xf32>
    %877 = arith.minimumf %872, %874 : vector<8x128xf32>
    %878 = arith.minimumf %877, %876 : vector<8x128xf32>
    %879 = arith.maximumf %693, %878 : vector<8x128xf32>
    %880 = vector.broadcast %811 : f32 to vector<8x128xf32>
    %881 = arith.addf %872, %880 : vector<8x128xf32>
    %882 = vector.broadcast %812 : f32 to vector<8x128xf32>
    %883 = arith.addf %874, %882 : vector<8x128xf32>
    %884 = vector.broadcast %813 : f32 to vector<8x128xf32>
    %885 = arith.addf %876, %884 : vector<8x128xf32>
    %886 = arith.minimumf %881, %883 : vector<8x128xf32>
    %887 = arith.minimumf %886, %885 : vector<8x128xf32>
    %888 = arith.maximumf %702, %887 : vector<8x128xf32>
    %889 = vector.broadcast %811 : f32 to vector<8x128xf32>
    %890 = arith.addf %881, %889 : vector<8x128xf32>
    %891 = vector.broadcast %812 : f32 to vector<8x128xf32>
    %892 = arith.addf %883, %891 : vector<8x128xf32>
    %893 = vector.broadcast %813 : f32 to vector<8x128xf32>
    %894 = arith.addf %885, %893 : vector<8x128xf32>
    %895 = arith.minimumf %890, %892 : vector<8x128xf32>
    %896 = arith.minimumf %895, %894 : vector<8x128xf32>
    %897 = arith.maximumf %711, %896 : vector<8x128xf32>
    %898 = vector.broadcast %811 : f32 to vector<8x128xf32>
    %899 = arith.addf %890, %898 : vector<8x128xf32>
    %900 = vector.broadcast %812 : f32 to vector<8x128xf32>
    %901 = arith.addf %892, %900 : vector<8x128xf32>
    %902 = vector.broadcast %813 : f32 to vector<8x128xf32>
    %903 = arith.addf %894, %902 : vector<8x128xf32>
    %904 = arith.minimumf %899, %901 : vector<8x128xf32>
    %905 = arith.minimumf %904, %903 : vector<8x128xf32>
    %906 = arith.maximumf %720, %905 : vector<8x128xf32>
    %907 = vector.broadcast %811 : f32 to vector<8x128xf32>
    %908 = arith.addf %899, %907 : vector<8x128xf32>
    %909 = vector.broadcast %812 : f32 to vector<8x128xf32>
    %910 = arith.addf %901, %909 : vector<8x128xf32>
    %911 = vector.broadcast %813 : f32 to vector<8x128xf32>
    %912 = arith.addf %903, %911 : vector<8x128xf32>
    %913 = arith.minimumf %908, %910 : vector<8x128xf32>
    %914 = arith.minimumf %913, %912 : vector<8x128xf32>
    %915 = arith.maximumf %729, %914 : vector<8x128xf32>
    %916 = vector.broadcast %811 : f32 to vector<8x128xf32>
    %917 = arith.addf %908, %916 : vector<8x128xf32>
    %918 = vector.broadcast %812 : f32 to vector<8x128xf32>
    %919 = arith.addf %910, %918 : vector<8x128xf32>
    %920 = vector.broadcast %813 : f32 to vector<8x128xf32>
    %921 = arith.addf %912, %920 : vector<8x128xf32>
    %922 = arith.minimumf %917, %919 : vector<8x128xf32>
    %923 = arith.minimumf %922, %921 : vector<8x128xf32>
    %924 = arith.maximumf %738, %923 : vector<8x128xf32>
    %925 = vector.broadcast %811 : f32 to vector<8x128xf32>
    %926 = arith.addf %917, %925 : vector<8x128xf32>
    %927 = vector.broadcast %812 : f32 to vector<8x128xf32>
    %928 = arith.addf %919, %927 : vector<8x128xf32>
    %929 = vector.broadcast %813 : f32 to vector<8x128xf32>
    %930 = arith.addf %921, %929 : vector<8x128xf32>
    %931 = arith.minimumf %926, %928 : vector<8x128xf32>
    %932 = arith.minimumf %931, %930 : vector<8x128xf32>
    %933 = arith.maximumf %747, %932 : vector<8x128xf32>
    %934 = vector.broadcast %811 : f32 to vector<8x128xf32>
    %935 = arith.addf %926, %934 : vector<8x128xf32>
    %936 = vector.broadcast %812 : f32 to vector<8x128xf32>
    %937 = arith.addf %928, %936 : vector<8x128xf32>
    %938 = vector.broadcast %813 : f32 to vector<8x128xf32>
    %939 = arith.addf %930, %938 : vector<8x128xf32>
    %940 = arith.minimumf %935, %937 : vector<8x128xf32>
    %941 = arith.minimumf %940, %939 : vector<8x128xf32>
    %942 = arith.maximumf %756, %941 : vector<8x128xf32>
    %943 = vector.broadcast %811 : f32 to vector<8x128xf32>
    %944 = arith.addf %935, %943 : vector<8x128xf32>
    %945 = vector.broadcast %812 : f32 to vector<8x128xf32>
    %946 = arith.addf %937, %945 : vector<8x128xf32>
    %947 = vector.broadcast %813 : f32 to vector<8x128xf32>
    %948 = arith.addf %939, %947 : vector<8x128xf32>
    %949 = arith.minimumf %944, %946 : vector<8x128xf32>
    %950 = arith.minimumf %949, %948 : vector<8x128xf32>
    %951 = arith.maximumf %765, %950 : vector<8x128xf32>
    %952 = arith.index_cast %arg0 : i32 to index
    %c45 = arith.constant 45 : index
    %953 = memref.load %arg2[%952, %c45] : memref<2x108xf32, #tpu.memory_space<smem>>
    %954 = arith.index_cast %arg0 : i32 to index
    %c46 = arith.constant 46 : index
    %955 = memref.load %arg2[%954, %c46] : memref<2x108xf32, #tpu.memory_space<smem>>
    %956 = arith.index_cast %arg0 : i32 to index
    %c47 = arith.constant 47 : index
    %957 = memref.load %arg2[%956, %c47] : memref<2x108xf32, #tpu.memory_space<smem>>
    %958 = arith.mulf %955, %1 : f32
    %959 = arith.addf %957, %958 : f32
    %960 = arith.index_cast %arg0 : i32 to index
    %c48 = arith.constant 48 : index
    %961 = memref.load %arg2[%960, %c48] : memref<2x108xf32, #tpu.memory_space<smem>>
    %962 = arith.index_cast %arg0 : i32 to index
    %c49 = arith.constant 49 : index
    %963 = memref.load %arg2[%962, %c49] : memref<2x108xf32, #tpu.memory_space<smem>>
    %964 = arith.index_cast %arg0 : i32 to index
    %c50 = arith.constant 50 : index
    %965 = memref.load %arg2[%964, %c50] : memref<2x108xf32, #tpu.memory_space<smem>>
    %966 = arith.mulf %963, %1 : f32
    %967 = arith.addf %965, %966 : f32
    %968 = arith.index_cast %arg0 : i32 to index
    %c51 = arith.constant 51 : index
    %969 = memref.load %arg2[%968, %c51] : memref<2x108xf32, #tpu.memory_space<smem>>
    %970 = arith.index_cast %arg0 : i32 to index
    %c52 = arith.constant 52 : index
    %971 = memref.load %arg2[%970, %c52] : memref<2x108xf32, #tpu.memory_space<smem>>
    %972 = arith.index_cast %arg0 : i32 to index
    %c53 = arith.constant 53 : index
    %973 = memref.load %arg2[%972, %c53] : memref<2x108xf32, #tpu.memory_space<smem>>
    %974 = arith.mulf %971, %1 : f32
    %975 = arith.addf %973, %974 : f32
    %976 = vector.broadcast %953 : f32 to vector<8x128xf32>
    %977 = arith.mulf %976, %3 : vector<8x128xf32>
    %978 = vector.broadcast %955 : f32 to vector<8x128xf32>
    %979 = arith.mulf %978, %5 : vector<8x128xf32>
    %980 = vector.broadcast %959 : f32 to vector<8x128xf32>
    %981 = arith.addf %979, %980 : vector<8x128xf32>
    %982 = arith.addf %977, %981 : vector<8x128xf32>
    %983 = vector.broadcast %961 : f32 to vector<8x128xf32>
    %984 = arith.mulf %983, %3 : vector<8x128xf32>
    %985 = vector.broadcast %963 : f32 to vector<8x128xf32>
    %986 = arith.mulf %985, %5 : vector<8x128xf32>
    %987 = vector.broadcast %967 : f32 to vector<8x128xf32>
    %988 = arith.addf %986, %987 : vector<8x128xf32>
    %989 = arith.addf %984, %988 : vector<8x128xf32>
    %990 = vector.broadcast %969 : f32 to vector<8x128xf32>
    %991 = arith.mulf %990, %3 : vector<8x128xf32>
    %992 = vector.broadcast %971 : f32 to vector<8x128xf32>
    %993 = arith.mulf %992, %5 : vector<8x128xf32>
    %994 = vector.broadcast %975 : f32 to vector<8x128xf32>
    %995 = arith.addf %993, %994 : vector<8x128xf32>
    %996 = arith.addf %991, %995 : vector<8x128xf32>
    %cst_30 = arith.constant 8.000000e+00 : f32
    %997 = arith.mulf %955, %cst_30 : f32
    %cst_31 = arith.constant 8.000000e+00 : f32
    %998 = arith.mulf %963, %cst_31 : f32
    %cst_32 = arith.constant 8.000000e+00 : f32
    %999 = arith.mulf %971, %cst_32 : f32
    %1000 = arith.minimumf %982, %989 : vector<8x128xf32>
    %1001 = arith.minimumf %1000, %996 : vector<8x128xf32>
    %1002 = arith.maximumf %816, %1001 : vector<8x128xf32>
    %1003 = vector.broadcast %997 : f32 to vector<8x128xf32>
    %1004 = arith.addf %982, %1003 : vector<8x128xf32>
    %1005 = vector.broadcast %998 : f32 to vector<8x128xf32>
    %1006 = arith.addf %989, %1005 : vector<8x128xf32>
    %1007 = vector.broadcast %999 : f32 to vector<8x128xf32>
    %1008 = arith.addf %996, %1007 : vector<8x128xf32>
    %1009 = arith.minimumf %1004, %1006 : vector<8x128xf32>
    %1010 = arith.minimumf %1009, %1008 : vector<8x128xf32>
    %1011 = arith.maximumf %825, %1010 : vector<8x128xf32>
    %1012 = vector.broadcast %997 : f32 to vector<8x128xf32>
    %1013 = arith.addf %1004, %1012 : vector<8x128xf32>
    %1014 = vector.broadcast %998 : f32 to vector<8x128xf32>
    %1015 = arith.addf %1006, %1014 : vector<8x128xf32>
    %1016 = vector.broadcast %999 : f32 to vector<8x128xf32>
    %1017 = arith.addf %1008, %1016 : vector<8x128xf32>
    %1018 = arith.minimumf %1013, %1015 : vector<8x128xf32>
    %1019 = arith.minimumf %1018, %1017 : vector<8x128xf32>
    %1020 = arith.maximumf %834, %1019 : vector<8x128xf32>
    %1021 = vector.broadcast %997 : f32 to vector<8x128xf32>
    %1022 = arith.addf %1013, %1021 : vector<8x128xf32>
    %1023 = vector.broadcast %998 : f32 to vector<8x128xf32>
    %1024 = arith.addf %1015, %1023 : vector<8x128xf32>
    %1025 = vector.broadcast %999 : f32 to vector<8x128xf32>
    %1026 = arith.addf %1017, %1025 : vector<8x128xf32>
    %1027 = arith.minimumf %1022, %1024 : vector<8x128xf32>
    %1028 = arith.minimumf %1027, %1026 : vector<8x128xf32>
    %1029 = arith.maximumf %843, %1028 : vector<8x128xf32>
    %1030 = vector.broadcast %997 : f32 to vector<8x128xf32>
    %1031 = arith.addf %1022, %1030 : vector<8x128xf32>
    %1032 = vector.broadcast %998 : f32 to vector<8x128xf32>
    %1033 = arith.addf %1024, %1032 : vector<8x128xf32>
    %1034 = vector.broadcast %999 : f32 to vector<8x128xf32>
    %1035 = arith.addf %1026, %1034 : vector<8x128xf32>
    %1036 = arith.minimumf %1031, %1033 : vector<8x128xf32>
    %1037 = arith.minimumf %1036, %1035 : vector<8x128xf32>
    %1038 = arith.maximumf %852, %1037 : vector<8x128xf32>
    %1039 = vector.broadcast %997 : f32 to vector<8x128xf32>
    %1040 = arith.addf %1031, %1039 : vector<8x128xf32>
    %1041 = vector.broadcast %998 : f32 to vector<8x128xf32>
    %1042 = arith.addf %1033, %1041 : vector<8x128xf32>
    %1043 = vector.broadcast %999 : f32 to vector<8x128xf32>
    %1044 = arith.addf %1035, %1043 : vector<8x128xf32>
    %1045 = arith.minimumf %1040, %1042 : vector<8x128xf32>
    %1046 = arith.minimumf %1045, %1044 : vector<8x128xf32>
    %1047 = arith.maximumf %861, %1046 : vector<8x128xf32>
    %1048 = vector.broadcast %997 : f32 to vector<8x128xf32>
    %1049 = arith.addf %1040, %1048 : vector<8x128xf32>
    %1050 = vector.broadcast %998 : f32 to vector<8x128xf32>
    %1051 = arith.addf %1042, %1050 : vector<8x128xf32>
    %1052 = vector.broadcast %999 : f32 to vector<8x128xf32>
    %1053 = arith.addf %1044, %1052 : vector<8x128xf32>
    %1054 = arith.minimumf %1049, %1051 : vector<8x128xf32>
    %1055 = arith.minimumf %1054, %1053 : vector<8x128xf32>
    %1056 = arith.maximumf %870, %1055 : vector<8x128xf32>
    %1057 = vector.broadcast %997 : f32 to vector<8x128xf32>
    %1058 = arith.addf %1049, %1057 : vector<8x128xf32>
    %1059 = vector.broadcast %998 : f32 to vector<8x128xf32>
    %1060 = arith.addf %1051, %1059 : vector<8x128xf32>
    %1061 = vector.broadcast %999 : f32 to vector<8x128xf32>
    %1062 = arith.addf %1053, %1061 : vector<8x128xf32>
    %1063 = arith.minimumf %1058, %1060 : vector<8x128xf32>
    %1064 = arith.minimumf %1063, %1062 : vector<8x128xf32>
    %1065 = arith.maximumf %879, %1064 : vector<8x128xf32>
    %1066 = vector.broadcast %997 : f32 to vector<8x128xf32>
    %1067 = arith.addf %1058, %1066 : vector<8x128xf32>
    %1068 = vector.broadcast %998 : f32 to vector<8x128xf32>
    %1069 = arith.addf %1060, %1068 : vector<8x128xf32>
    %1070 = vector.broadcast %999 : f32 to vector<8x128xf32>
    %1071 = arith.addf %1062, %1070 : vector<8x128xf32>
    %1072 = arith.minimumf %1067, %1069 : vector<8x128xf32>
    %1073 = arith.minimumf %1072, %1071 : vector<8x128xf32>
    %1074 = arith.maximumf %888, %1073 : vector<8x128xf32>
    %1075 = vector.broadcast %997 : f32 to vector<8x128xf32>
    %1076 = arith.addf %1067, %1075 : vector<8x128xf32>
    %1077 = vector.broadcast %998 : f32 to vector<8x128xf32>
    %1078 = arith.addf %1069, %1077 : vector<8x128xf32>
    %1079 = vector.broadcast %999 : f32 to vector<8x128xf32>
    %1080 = arith.addf %1071, %1079 : vector<8x128xf32>
    %1081 = arith.minimumf %1076, %1078 : vector<8x128xf32>
    %1082 = arith.minimumf %1081, %1080 : vector<8x128xf32>
    %1083 = arith.maximumf %897, %1082 : vector<8x128xf32>
    %1084 = vector.broadcast %997 : f32 to vector<8x128xf32>
    %1085 = arith.addf %1076, %1084 : vector<8x128xf32>
    %1086 = vector.broadcast %998 : f32 to vector<8x128xf32>
    %1087 = arith.addf %1078, %1086 : vector<8x128xf32>
    %1088 = vector.broadcast %999 : f32 to vector<8x128xf32>
    %1089 = arith.addf %1080, %1088 : vector<8x128xf32>
    %1090 = arith.minimumf %1085, %1087 : vector<8x128xf32>
    %1091 = arith.minimumf %1090, %1089 : vector<8x128xf32>
    %1092 = arith.maximumf %906, %1091 : vector<8x128xf32>
    %1093 = vector.broadcast %997 : f32 to vector<8x128xf32>
    %1094 = arith.addf %1085, %1093 : vector<8x128xf32>
    %1095 = vector.broadcast %998 : f32 to vector<8x128xf32>
    %1096 = arith.addf %1087, %1095 : vector<8x128xf32>
    %1097 = vector.broadcast %999 : f32 to vector<8x128xf32>
    %1098 = arith.addf %1089, %1097 : vector<8x128xf32>
    %1099 = arith.minimumf %1094, %1096 : vector<8x128xf32>
    %1100 = arith.minimumf %1099, %1098 : vector<8x128xf32>
    %1101 = arith.maximumf %915, %1100 : vector<8x128xf32>
    %1102 = vector.broadcast %997 : f32 to vector<8x128xf32>
    %1103 = arith.addf %1094, %1102 : vector<8x128xf32>
    %1104 = vector.broadcast %998 : f32 to vector<8x128xf32>
    %1105 = arith.addf %1096, %1104 : vector<8x128xf32>
    %1106 = vector.broadcast %999 : f32 to vector<8x128xf32>
    %1107 = arith.addf %1098, %1106 : vector<8x128xf32>
    %1108 = arith.minimumf %1103, %1105 : vector<8x128xf32>
    %1109 = arith.minimumf %1108, %1107 : vector<8x128xf32>
    %1110 = arith.maximumf %924, %1109 : vector<8x128xf32>
    %1111 = vector.broadcast %997 : f32 to vector<8x128xf32>
    %1112 = arith.addf %1103, %1111 : vector<8x128xf32>
    %1113 = vector.broadcast %998 : f32 to vector<8x128xf32>
    %1114 = arith.addf %1105, %1113 : vector<8x128xf32>
    %1115 = vector.broadcast %999 : f32 to vector<8x128xf32>
    %1116 = arith.addf %1107, %1115 : vector<8x128xf32>
    %1117 = arith.minimumf %1112, %1114 : vector<8x128xf32>
    %1118 = arith.minimumf %1117, %1116 : vector<8x128xf32>
    %1119 = arith.maximumf %933, %1118 : vector<8x128xf32>
    %1120 = vector.broadcast %997 : f32 to vector<8x128xf32>
    %1121 = arith.addf %1112, %1120 : vector<8x128xf32>
    %1122 = vector.broadcast %998 : f32 to vector<8x128xf32>
    %1123 = arith.addf %1114, %1122 : vector<8x128xf32>
    %1124 = vector.broadcast %999 : f32 to vector<8x128xf32>
    %1125 = arith.addf %1116, %1124 : vector<8x128xf32>
    %1126 = arith.minimumf %1121, %1123 : vector<8x128xf32>
    %1127 = arith.minimumf %1126, %1125 : vector<8x128xf32>
    %1128 = arith.maximumf %942, %1127 : vector<8x128xf32>
    %1129 = vector.broadcast %997 : f32 to vector<8x128xf32>
    %1130 = arith.addf %1121, %1129 : vector<8x128xf32>
    %1131 = vector.broadcast %998 : f32 to vector<8x128xf32>
    %1132 = arith.addf %1123, %1131 : vector<8x128xf32>
    %1133 = vector.broadcast %999 : f32 to vector<8x128xf32>
    %1134 = arith.addf %1125, %1133 : vector<8x128xf32>
    %1135 = arith.minimumf %1130, %1132 : vector<8x128xf32>
    %1136 = arith.minimumf %1135, %1134 : vector<8x128xf32>
    %1137 = arith.maximumf %951, %1136 : vector<8x128xf32>
    %1138 = arith.index_cast %arg0 : i32 to index
    %c54 = arith.constant 54 : index
    %1139 = memref.load %arg2[%1138, %c54] : memref<2x108xf32, #tpu.memory_space<smem>>
    %1140 = arith.index_cast %arg0 : i32 to index
    %c55 = arith.constant 55 : index
    %1141 = memref.load %arg2[%1140, %c55] : memref<2x108xf32, #tpu.memory_space<smem>>
    %1142 = arith.index_cast %arg0 : i32 to index
    %c56 = arith.constant 56 : index
    %1143 = memref.load %arg2[%1142, %c56] : memref<2x108xf32, #tpu.memory_space<smem>>
    %1144 = arith.mulf %1141, %1 : f32
    %1145 = arith.addf %1143, %1144 : f32
    %1146 = arith.index_cast %arg0 : i32 to index
    %c57 = arith.constant 57 : index
    %1147 = memref.load %arg2[%1146, %c57] : memref<2x108xf32, #tpu.memory_space<smem>>
    %1148 = arith.index_cast %arg0 : i32 to index
    %c58 = arith.constant 58 : index
    %1149 = memref.load %arg2[%1148, %c58] : memref<2x108xf32, #tpu.memory_space<smem>>
    %1150 = arith.index_cast %arg0 : i32 to index
    %c59 = arith.constant 59 : index
    %1151 = memref.load %arg2[%1150, %c59] : memref<2x108xf32, #tpu.memory_space<smem>>
    %1152 = arith.mulf %1149, %1 : f32
    %1153 = arith.addf %1151, %1152 : f32
    %1154 = arith.index_cast %arg0 : i32 to index
    %c60 = arith.constant 60 : index
    %1155 = memref.load %arg2[%1154, %c60] : memref<2x108xf32, #tpu.memory_space<smem>>
    %1156 = arith.index_cast %arg0 : i32 to index
    %c61 = arith.constant 61 : index
    %1157 = memref.load %arg2[%1156, %c61] : memref<2x108xf32, #tpu.memory_space<smem>>
    %1158 = arith.index_cast %arg0 : i32 to index
    %c62 = arith.constant 62 : index
    %1159 = memref.load %arg2[%1158, %c62] : memref<2x108xf32, #tpu.memory_space<smem>>
    %1160 = arith.mulf %1157, %1 : f32
    %1161 = arith.addf %1159, %1160 : f32
    %1162 = vector.broadcast %1139 : f32 to vector<8x128xf32>
    %1163 = arith.mulf %1162, %3 : vector<8x128xf32>
    %1164 = vector.broadcast %1141 : f32 to vector<8x128xf32>
    %1165 = arith.mulf %1164, %5 : vector<8x128xf32>
    %1166 = vector.broadcast %1145 : f32 to vector<8x128xf32>
    %1167 = arith.addf %1165, %1166 : vector<8x128xf32>
    %1168 = arith.addf %1163, %1167 : vector<8x128xf32>
    %1169 = vector.broadcast %1147 : f32 to vector<8x128xf32>
    %1170 = arith.mulf %1169, %3 : vector<8x128xf32>
    %1171 = vector.broadcast %1149 : f32 to vector<8x128xf32>
    %1172 = arith.mulf %1171, %5 : vector<8x128xf32>
    %1173 = vector.broadcast %1153 : f32 to vector<8x128xf32>
    %1174 = arith.addf %1172, %1173 : vector<8x128xf32>
    %1175 = arith.addf %1170, %1174 : vector<8x128xf32>
    %1176 = vector.broadcast %1155 : f32 to vector<8x128xf32>
    %1177 = arith.mulf %1176, %3 : vector<8x128xf32>
    %1178 = vector.broadcast %1157 : f32 to vector<8x128xf32>
    %1179 = arith.mulf %1178, %5 : vector<8x128xf32>
    %1180 = vector.broadcast %1161 : f32 to vector<8x128xf32>
    %1181 = arith.addf %1179, %1180 : vector<8x128xf32>
    %1182 = arith.addf %1177, %1181 : vector<8x128xf32>
    %cst_33 = arith.constant 8.000000e+00 : f32
    %1183 = arith.mulf %1141, %cst_33 : f32
    %cst_34 = arith.constant 8.000000e+00 : f32
    %1184 = arith.mulf %1149, %cst_34 : f32
    %cst_35 = arith.constant 8.000000e+00 : f32
    %1185 = arith.mulf %1157, %cst_35 : f32
    %1186 = arith.minimumf %1168, %1175 : vector<8x128xf32>
    %1187 = arith.minimumf %1186, %1182 : vector<8x128xf32>
    %1188 = arith.maximumf %1002, %1187 : vector<8x128xf32>
    %1189 = vector.broadcast %1183 : f32 to vector<8x128xf32>
    %1190 = arith.addf %1168, %1189 : vector<8x128xf32>
    %1191 = vector.broadcast %1184 : f32 to vector<8x128xf32>
    %1192 = arith.addf %1175, %1191 : vector<8x128xf32>
    %1193 = vector.broadcast %1185 : f32 to vector<8x128xf32>
    %1194 = arith.addf %1182, %1193 : vector<8x128xf32>
    %1195 = arith.minimumf %1190, %1192 : vector<8x128xf32>
    %1196 = arith.minimumf %1195, %1194 : vector<8x128xf32>
    %1197 = arith.maximumf %1011, %1196 : vector<8x128xf32>
    %1198 = vector.broadcast %1183 : f32 to vector<8x128xf32>
    %1199 = arith.addf %1190, %1198 : vector<8x128xf32>
    %1200 = vector.broadcast %1184 : f32 to vector<8x128xf32>
    %1201 = arith.addf %1192, %1200 : vector<8x128xf32>
    %1202 = vector.broadcast %1185 : f32 to vector<8x128xf32>
    %1203 = arith.addf %1194, %1202 : vector<8x128xf32>
    %1204 = arith.minimumf %1199, %1201 : vector<8x128xf32>
    %1205 = arith.minimumf %1204, %1203 : vector<8x128xf32>
    %1206 = arith.maximumf %1020, %1205 : vector<8x128xf32>
    %1207 = vector.broadcast %1183 : f32 to vector<8x128xf32>
    %1208 = arith.addf %1199, %1207 : vector<8x128xf32>
    %1209 = vector.broadcast %1184 : f32 to vector<8x128xf32>
    %1210 = arith.addf %1201, %1209 : vector<8x128xf32>
    %1211 = vector.broadcast %1185 : f32 to vector<8x128xf32>
    %1212 = arith.addf %1203, %1211 : vector<8x128xf32>
    %1213 = arith.minimumf %1208, %1210 : vector<8x128xf32>
    %1214 = arith.minimumf %1213, %1212 : vector<8x128xf32>
    %1215 = arith.maximumf %1029, %1214 : vector<8x128xf32>
    %1216 = vector.broadcast %1183 : f32 to vector<8x128xf32>
    %1217 = arith.addf %1208, %1216 : vector<8x128xf32>
    %1218 = vector.broadcast %1184 : f32 to vector<8x128xf32>
    %1219 = arith.addf %1210, %1218 : vector<8x128xf32>
    %1220 = vector.broadcast %1185 : f32 to vector<8x128xf32>
    %1221 = arith.addf %1212, %1220 : vector<8x128xf32>
    %1222 = arith.minimumf %1217, %1219 : vector<8x128xf32>
    %1223 = arith.minimumf %1222, %1221 : vector<8x128xf32>
    %1224 = arith.maximumf %1038, %1223 : vector<8x128xf32>
    %1225 = vector.broadcast %1183 : f32 to vector<8x128xf32>
    %1226 = arith.addf %1217, %1225 : vector<8x128xf32>
    %1227 = vector.broadcast %1184 : f32 to vector<8x128xf32>
    %1228 = arith.addf %1219, %1227 : vector<8x128xf32>
    %1229 = vector.broadcast %1185 : f32 to vector<8x128xf32>
    %1230 = arith.addf %1221, %1229 : vector<8x128xf32>
    %1231 = arith.minimumf %1226, %1228 : vector<8x128xf32>
    %1232 = arith.minimumf %1231, %1230 : vector<8x128xf32>
    %1233 = arith.maximumf %1047, %1232 : vector<8x128xf32>
    %1234 = vector.broadcast %1183 : f32 to vector<8x128xf32>
    %1235 = arith.addf %1226, %1234 : vector<8x128xf32>
    %1236 = vector.broadcast %1184 : f32 to vector<8x128xf32>
    %1237 = arith.addf %1228, %1236 : vector<8x128xf32>
    %1238 = vector.broadcast %1185 : f32 to vector<8x128xf32>
    %1239 = arith.addf %1230, %1238 : vector<8x128xf32>
    %1240 = arith.minimumf %1235, %1237 : vector<8x128xf32>
    %1241 = arith.minimumf %1240, %1239 : vector<8x128xf32>
    %1242 = arith.maximumf %1056, %1241 : vector<8x128xf32>
    %1243 = vector.broadcast %1183 : f32 to vector<8x128xf32>
    %1244 = arith.addf %1235, %1243 : vector<8x128xf32>
    %1245 = vector.broadcast %1184 : f32 to vector<8x128xf32>
    %1246 = arith.addf %1237, %1245 : vector<8x128xf32>
    %1247 = vector.broadcast %1185 : f32 to vector<8x128xf32>
    %1248 = arith.addf %1239, %1247 : vector<8x128xf32>
    %1249 = arith.minimumf %1244, %1246 : vector<8x128xf32>
    %1250 = arith.minimumf %1249, %1248 : vector<8x128xf32>
    %1251 = arith.maximumf %1065, %1250 : vector<8x128xf32>
    %1252 = vector.broadcast %1183 : f32 to vector<8x128xf32>
    %1253 = arith.addf %1244, %1252 : vector<8x128xf32>
    %1254 = vector.broadcast %1184 : f32 to vector<8x128xf32>
    %1255 = arith.addf %1246, %1254 : vector<8x128xf32>
    %1256 = vector.broadcast %1185 : f32 to vector<8x128xf32>
    %1257 = arith.addf %1248, %1256 : vector<8x128xf32>
    %1258 = arith.minimumf %1253, %1255 : vector<8x128xf32>
    %1259 = arith.minimumf %1258, %1257 : vector<8x128xf32>
    %1260 = arith.maximumf %1074, %1259 : vector<8x128xf32>
    %1261 = vector.broadcast %1183 : f32 to vector<8x128xf32>
    %1262 = arith.addf %1253, %1261 : vector<8x128xf32>
    %1263 = vector.broadcast %1184 : f32 to vector<8x128xf32>
    %1264 = arith.addf %1255, %1263 : vector<8x128xf32>
    %1265 = vector.broadcast %1185 : f32 to vector<8x128xf32>
    %1266 = arith.addf %1257, %1265 : vector<8x128xf32>
    %1267 = arith.minimumf %1262, %1264 : vector<8x128xf32>
    %1268 = arith.minimumf %1267, %1266 : vector<8x128xf32>
    %1269 = arith.maximumf %1083, %1268 : vector<8x128xf32>
    %1270 = vector.broadcast %1183 : f32 to vector<8x128xf32>
    %1271 = arith.addf %1262, %1270 : vector<8x128xf32>
    %1272 = vector.broadcast %1184 : f32 to vector<8x128xf32>
    %1273 = arith.addf %1264, %1272 : vector<8x128xf32>
    %1274 = vector.broadcast %1185 : f32 to vector<8x128xf32>
    %1275 = arith.addf %1266, %1274 : vector<8x128xf32>
    %1276 = arith.minimumf %1271, %1273 : vector<8x128xf32>
    %1277 = arith.minimumf %1276, %1275 : vector<8x128xf32>
    %1278 = arith.maximumf %1092, %1277 : vector<8x128xf32>
    %1279 = vector.broadcast %1183 : f32 to vector<8x128xf32>
    %1280 = arith.addf %1271, %1279 : vector<8x128xf32>
    %1281 = vector.broadcast %1184 : f32 to vector<8x128xf32>
    %1282 = arith.addf %1273, %1281 : vector<8x128xf32>
    %1283 = vector.broadcast %1185 : f32 to vector<8x128xf32>
    %1284 = arith.addf %1275, %1283 : vector<8x128xf32>
    %1285 = arith.minimumf %1280, %1282 : vector<8x128xf32>
    %1286 = arith.minimumf %1285, %1284 : vector<8x128xf32>
    %1287 = arith.maximumf %1101, %1286 : vector<8x128xf32>
    %1288 = vector.broadcast %1183 : f32 to vector<8x128xf32>
    %1289 = arith.addf %1280, %1288 : vector<8x128xf32>
    %1290 = vector.broadcast %1184 : f32 to vector<8x128xf32>
    %1291 = arith.addf %1282, %1290 : vector<8x128xf32>
    %1292 = vector.broadcast %1185 : f32 to vector<8x128xf32>
    %1293 = arith.addf %1284, %1292 : vector<8x128xf32>
    %1294 = arith.minimumf %1289, %1291 : vector<8x128xf32>
    %1295 = arith.minimumf %1294, %1293 : vector<8x128xf32>
    %1296 = arith.maximumf %1110, %1295 : vector<8x128xf32>
    %1297 = vector.broadcast %1183 : f32 to vector<8x128xf32>
    %1298 = arith.addf %1289, %1297 : vector<8x128xf32>
    %1299 = vector.broadcast %1184 : f32 to vector<8x128xf32>
    %1300 = arith.addf %1291, %1299 : vector<8x128xf32>
    %1301 = vector.broadcast %1185 : f32 to vector<8x128xf32>
    %1302 = arith.addf %1293, %1301 : vector<8x128xf32>
    %1303 = arith.minimumf %1298, %1300 : vector<8x128xf32>
    %1304 = arith.minimumf %1303, %1302 : vector<8x128xf32>
    %1305 = arith.maximumf %1119, %1304 : vector<8x128xf32>
    %1306 = vector.broadcast %1183 : f32 to vector<8x128xf32>
    %1307 = arith.addf %1298, %1306 : vector<8x128xf32>
    %1308 = vector.broadcast %1184 : f32 to vector<8x128xf32>
    %1309 = arith.addf %1300, %1308 : vector<8x128xf32>
    %1310 = vector.broadcast %1185 : f32 to vector<8x128xf32>
    %1311 = arith.addf %1302, %1310 : vector<8x128xf32>
    %1312 = arith.minimumf %1307, %1309 : vector<8x128xf32>
    %1313 = arith.minimumf %1312, %1311 : vector<8x128xf32>
    %1314 = arith.maximumf %1128, %1313 : vector<8x128xf32>
    %1315 = vector.broadcast %1183 : f32 to vector<8x128xf32>
    %1316 = arith.addf %1307, %1315 : vector<8x128xf32>
    %1317 = vector.broadcast %1184 : f32 to vector<8x128xf32>
    %1318 = arith.addf %1309, %1317 : vector<8x128xf32>
    %1319 = vector.broadcast %1185 : f32 to vector<8x128xf32>
    %1320 = arith.addf %1311, %1319 : vector<8x128xf32>
    %1321 = arith.minimumf %1316, %1318 : vector<8x128xf32>
    %1322 = arith.minimumf %1321, %1320 : vector<8x128xf32>
    %1323 = arith.maximumf %1137, %1322 : vector<8x128xf32>
    %1324 = arith.index_cast %arg0 : i32 to index
    %c63 = arith.constant 63 : index
    %1325 = memref.load %arg2[%1324, %c63] : memref<2x108xf32, #tpu.memory_space<smem>>
    %1326 = arith.index_cast %arg0 : i32 to index
    %c64 = arith.constant 64 : index
    %1327 = memref.load %arg2[%1326, %c64] : memref<2x108xf32, #tpu.memory_space<smem>>
    %1328 = arith.index_cast %arg0 : i32 to index
    %c65 = arith.constant 65 : index
    %1329 = memref.load %arg2[%1328, %c65] : memref<2x108xf32, #tpu.memory_space<smem>>
    %1330 = arith.mulf %1327, %1 : f32
    %1331 = arith.addf %1329, %1330 : f32
    %1332 = arith.index_cast %arg0 : i32 to index
    %c66 = arith.constant 66 : index
    %1333 = memref.load %arg2[%1332, %c66] : memref<2x108xf32, #tpu.memory_space<smem>>
    %1334 = arith.index_cast %arg0 : i32 to index
    %c67 = arith.constant 67 : index
    %1335 = memref.load %arg2[%1334, %c67] : memref<2x108xf32, #tpu.memory_space<smem>>
    %1336 = arith.index_cast %arg0 : i32 to index
    %c68 = arith.constant 68 : index
    %1337 = memref.load %arg2[%1336, %c68] : memref<2x108xf32, #tpu.memory_space<smem>>
    %1338 = arith.mulf %1335, %1 : f32
    %1339 = arith.addf %1337, %1338 : f32
    %1340 = arith.index_cast %arg0 : i32 to index
    %c69 = arith.constant 69 : index
    %1341 = memref.load %arg2[%1340, %c69] : memref<2x108xf32, #tpu.memory_space<smem>>
    %1342 = arith.index_cast %arg0 : i32 to index
    %c70 = arith.constant 70 : index
    %1343 = memref.load %arg2[%1342, %c70] : memref<2x108xf32, #tpu.memory_space<smem>>
    %1344 = arith.index_cast %arg0 : i32 to index
    %c71 = arith.constant 71 : index
    %1345 = memref.load %arg2[%1344, %c71] : memref<2x108xf32, #tpu.memory_space<smem>>
    %1346 = arith.mulf %1343, %1 : f32
    %1347 = arith.addf %1345, %1346 : f32
    %1348 = vector.broadcast %1325 : f32 to vector<8x128xf32>
    %1349 = arith.mulf %1348, %3 : vector<8x128xf32>
    %1350 = vector.broadcast %1327 : f32 to vector<8x128xf32>
    %1351 = arith.mulf %1350, %5 : vector<8x128xf32>
    %1352 = vector.broadcast %1331 : f32 to vector<8x128xf32>
    %1353 = arith.addf %1351, %1352 : vector<8x128xf32>
    %1354 = arith.addf %1349, %1353 : vector<8x128xf32>
    %1355 = vector.broadcast %1333 : f32 to vector<8x128xf32>
    %1356 = arith.mulf %1355, %3 : vector<8x128xf32>
    %1357 = vector.broadcast %1335 : f32 to vector<8x128xf32>
    %1358 = arith.mulf %1357, %5 : vector<8x128xf32>
    %1359 = vector.broadcast %1339 : f32 to vector<8x128xf32>
    %1360 = arith.addf %1358, %1359 : vector<8x128xf32>
    %1361 = arith.addf %1356, %1360 : vector<8x128xf32>
    %1362 = vector.broadcast %1341 : f32 to vector<8x128xf32>
    %1363 = arith.mulf %1362, %3 : vector<8x128xf32>
    %1364 = vector.broadcast %1343 : f32 to vector<8x128xf32>
    %1365 = arith.mulf %1364, %5 : vector<8x128xf32>
    %1366 = vector.broadcast %1347 : f32 to vector<8x128xf32>
    %1367 = arith.addf %1365, %1366 : vector<8x128xf32>
    %1368 = arith.addf %1363, %1367 : vector<8x128xf32>
    %cst_36 = arith.constant 8.000000e+00 : f32
    %1369 = arith.mulf %1327, %cst_36 : f32
    %cst_37 = arith.constant 8.000000e+00 : f32
    %1370 = arith.mulf %1335, %cst_37 : f32
    %cst_38 = arith.constant 8.000000e+00 : f32
    %1371 = arith.mulf %1343, %cst_38 : f32
    %1372 = arith.minimumf %1354, %1361 : vector<8x128xf32>
    %1373 = arith.minimumf %1372, %1368 : vector<8x128xf32>
    %1374 = arith.maximumf %1188, %1373 : vector<8x128xf32>
    %1375 = vector.broadcast %1369 : f32 to vector<8x128xf32>
    %1376 = arith.addf %1354, %1375 : vector<8x128xf32>
    %1377 = vector.broadcast %1370 : f32 to vector<8x128xf32>
    %1378 = arith.addf %1361, %1377 : vector<8x128xf32>
    %1379 = vector.broadcast %1371 : f32 to vector<8x128xf32>
    %1380 = arith.addf %1368, %1379 : vector<8x128xf32>
    %1381 = arith.minimumf %1376, %1378 : vector<8x128xf32>
    %1382 = arith.minimumf %1381, %1380 : vector<8x128xf32>
    %1383 = arith.maximumf %1197, %1382 : vector<8x128xf32>
    %1384 = vector.broadcast %1369 : f32 to vector<8x128xf32>
    %1385 = arith.addf %1376, %1384 : vector<8x128xf32>
    %1386 = vector.broadcast %1370 : f32 to vector<8x128xf32>
    %1387 = arith.addf %1378, %1386 : vector<8x128xf32>
    %1388 = vector.broadcast %1371 : f32 to vector<8x128xf32>
    %1389 = arith.addf %1380, %1388 : vector<8x128xf32>
    %1390 = arith.minimumf %1385, %1387 : vector<8x128xf32>
    %1391 = arith.minimumf %1390, %1389 : vector<8x128xf32>
    %1392 = arith.maximumf %1206, %1391 : vector<8x128xf32>
    %1393 = vector.broadcast %1369 : f32 to vector<8x128xf32>
    %1394 = arith.addf %1385, %1393 : vector<8x128xf32>
    %1395 = vector.broadcast %1370 : f32 to vector<8x128xf32>
    %1396 = arith.addf %1387, %1395 : vector<8x128xf32>
    %1397 = vector.broadcast %1371 : f32 to vector<8x128xf32>
    %1398 = arith.addf %1389, %1397 : vector<8x128xf32>
    %1399 = arith.minimumf %1394, %1396 : vector<8x128xf32>
    %1400 = arith.minimumf %1399, %1398 : vector<8x128xf32>
    %1401 = arith.maximumf %1215, %1400 : vector<8x128xf32>
    %1402 = vector.broadcast %1369 : f32 to vector<8x128xf32>
    %1403 = arith.addf %1394, %1402 : vector<8x128xf32>
    %1404 = vector.broadcast %1370 : f32 to vector<8x128xf32>
    %1405 = arith.addf %1396, %1404 : vector<8x128xf32>
    %1406 = vector.broadcast %1371 : f32 to vector<8x128xf32>
    %1407 = arith.addf %1398, %1406 : vector<8x128xf32>
    %1408 = arith.minimumf %1403, %1405 : vector<8x128xf32>
    %1409 = arith.minimumf %1408, %1407 : vector<8x128xf32>
    %1410 = arith.maximumf %1224, %1409 : vector<8x128xf32>
    %1411 = vector.broadcast %1369 : f32 to vector<8x128xf32>
    %1412 = arith.addf %1403, %1411 : vector<8x128xf32>
    %1413 = vector.broadcast %1370 : f32 to vector<8x128xf32>
    %1414 = arith.addf %1405, %1413 : vector<8x128xf32>
    %1415 = vector.broadcast %1371 : f32 to vector<8x128xf32>
    %1416 = arith.addf %1407, %1415 : vector<8x128xf32>
    %1417 = arith.minimumf %1412, %1414 : vector<8x128xf32>
    %1418 = arith.minimumf %1417, %1416 : vector<8x128xf32>
    %1419 = arith.maximumf %1233, %1418 : vector<8x128xf32>
    %1420 = vector.broadcast %1369 : f32 to vector<8x128xf32>
    %1421 = arith.addf %1412, %1420 : vector<8x128xf32>
    %1422 = vector.broadcast %1370 : f32 to vector<8x128xf32>
    %1423 = arith.addf %1414, %1422 : vector<8x128xf32>
    %1424 = vector.broadcast %1371 : f32 to vector<8x128xf32>
    %1425 = arith.addf %1416, %1424 : vector<8x128xf32>
    %1426 = arith.minimumf %1421, %1423 : vector<8x128xf32>
    %1427 = arith.minimumf %1426, %1425 : vector<8x128xf32>
    %1428 = arith.maximumf %1242, %1427 : vector<8x128xf32>
    %1429 = vector.broadcast %1369 : f32 to vector<8x128xf32>
    %1430 = arith.addf %1421, %1429 : vector<8x128xf32>
    %1431 = vector.broadcast %1370 : f32 to vector<8x128xf32>
    %1432 = arith.addf %1423, %1431 : vector<8x128xf32>
    %1433 = vector.broadcast %1371 : f32 to vector<8x128xf32>
    %1434 = arith.addf %1425, %1433 : vector<8x128xf32>
    %1435 = arith.minimumf %1430, %1432 : vector<8x128xf32>
    %1436 = arith.minimumf %1435, %1434 : vector<8x128xf32>
    %1437 = arith.maximumf %1251, %1436 : vector<8x128xf32>
    %1438 = vector.broadcast %1369 : f32 to vector<8x128xf32>
    %1439 = arith.addf %1430, %1438 : vector<8x128xf32>
    %1440 = vector.broadcast %1370 : f32 to vector<8x128xf32>
    %1441 = arith.addf %1432, %1440 : vector<8x128xf32>
    %1442 = vector.broadcast %1371 : f32 to vector<8x128xf32>
    %1443 = arith.addf %1434, %1442 : vector<8x128xf32>
    %1444 = arith.minimumf %1439, %1441 : vector<8x128xf32>
    %1445 = arith.minimumf %1444, %1443 : vector<8x128xf32>
    %1446 = arith.maximumf %1260, %1445 : vector<8x128xf32>
    %1447 = vector.broadcast %1369 : f32 to vector<8x128xf32>
    %1448 = arith.addf %1439, %1447 : vector<8x128xf32>
    %1449 = vector.broadcast %1370 : f32 to vector<8x128xf32>
    %1450 = arith.addf %1441, %1449 : vector<8x128xf32>
    %1451 = vector.broadcast %1371 : f32 to vector<8x128xf32>
    %1452 = arith.addf %1443, %1451 : vector<8x128xf32>
    %1453 = arith.minimumf %1448, %1450 : vector<8x128xf32>
    %1454 = arith.minimumf %1453, %1452 : vector<8x128xf32>
    %1455 = arith.maximumf %1269, %1454 : vector<8x128xf32>
    %1456 = vector.broadcast %1369 : f32 to vector<8x128xf32>
    %1457 = arith.addf %1448, %1456 : vector<8x128xf32>
    %1458 = vector.broadcast %1370 : f32 to vector<8x128xf32>
    %1459 = arith.addf %1450, %1458 : vector<8x128xf32>
    %1460 = vector.broadcast %1371 : f32 to vector<8x128xf32>
    %1461 = arith.addf %1452, %1460 : vector<8x128xf32>
    %1462 = arith.minimumf %1457, %1459 : vector<8x128xf32>
    %1463 = arith.minimumf %1462, %1461 : vector<8x128xf32>
    %1464 = arith.maximumf %1278, %1463 : vector<8x128xf32>
    %1465 = vector.broadcast %1369 : f32 to vector<8x128xf32>
    %1466 = arith.addf %1457, %1465 : vector<8x128xf32>
    %1467 = vector.broadcast %1370 : f32 to vector<8x128xf32>
    %1468 = arith.addf %1459, %1467 : vector<8x128xf32>
    %1469 = vector.broadcast %1371 : f32 to vector<8x128xf32>
    %1470 = arith.addf %1461, %1469 : vector<8x128xf32>
    %1471 = arith.minimumf %1466, %1468 : vector<8x128xf32>
    %1472 = arith.minimumf %1471, %1470 : vector<8x128xf32>
    %1473 = arith.maximumf %1287, %1472 : vector<8x128xf32>
    %1474 = vector.broadcast %1369 : f32 to vector<8x128xf32>
    %1475 = arith.addf %1466, %1474 : vector<8x128xf32>
    %1476 = vector.broadcast %1370 : f32 to vector<8x128xf32>
    %1477 = arith.addf %1468, %1476 : vector<8x128xf32>
    %1478 = vector.broadcast %1371 : f32 to vector<8x128xf32>
    %1479 = arith.addf %1470, %1478 : vector<8x128xf32>
    %1480 = arith.minimumf %1475, %1477 : vector<8x128xf32>
    %1481 = arith.minimumf %1480, %1479 : vector<8x128xf32>
    %1482 = arith.maximumf %1296, %1481 : vector<8x128xf32>
    %1483 = vector.broadcast %1369 : f32 to vector<8x128xf32>
    %1484 = arith.addf %1475, %1483 : vector<8x128xf32>
    %1485 = vector.broadcast %1370 : f32 to vector<8x128xf32>
    %1486 = arith.addf %1477, %1485 : vector<8x128xf32>
    %1487 = vector.broadcast %1371 : f32 to vector<8x128xf32>
    %1488 = arith.addf %1479, %1487 : vector<8x128xf32>
    %1489 = arith.minimumf %1484, %1486 : vector<8x128xf32>
    %1490 = arith.minimumf %1489, %1488 : vector<8x128xf32>
    %1491 = arith.maximumf %1305, %1490 : vector<8x128xf32>
    %1492 = vector.broadcast %1369 : f32 to vector<8x128xf32>
    %1493 = arith.addf %1484, %1492 : vector<8x128xf32>
    %1494 = vector.broadcast %1370 : f32 to vector<8x128xf32>
    %1495 = arith.addf %1486, %1494 : vector<8x128xf32>
    %1496 = vector.broadcast %1371 : f32 to vector<8x128xf32>
    %1497 = arith.addf %1488, %1496 : vector<8x128xf32>
    %1498 = arith.minimumf %1493, %1495 : vector<8x128xf32>
    %1499 = arith.minimumf %1498, %1497 : vector<8x128xf32>
    %1500 = arith.maximumf %1314, %1499 : vector<8x128xf32>
    %1501 = vector.broadcast %1369 : f32 to vector<8x128xf32>
    %1502 = arith.addf %1493, %1501 : vector<8x128xf32>
    %1503 = vector.broadcast %1370 : f32 to vector<8x128xf32>
    %1504 = arith.addf %1495, %1503 : vector<8x128xf32>
    %1505 = vector.broadcast %1371 : f32 to vector<8x128xf32>
    %1506 = arith.addf %1497, %1505 : vector<8x128xf32>
    %1507 = arith.minimumf %1502, %1504 : vector<8x128xf32>
    %1508 = arith.minimumf %1507, %1506 : vector<8x128xf32>
    %1509 = arith.maximumf %1323, %1508 : vector<8x128xf32>
    %1510 = arith.index_cast %arg0 : i32 to index
    %c72 = arith.constant 72 : index
    %1511 = memref.load %arg2[%1510, %c72] : memref<2x108xf32, #tpu.memory_space<smem>>
    %1512 = arith.index_cast %arg0 : i32 to index
    %c73 = arith.constant 73 : index
    %1513 = memref.load %arg2[%1512, %c73] : memref<2x108xf32, #tpu.memory_space<smem>>
    %1514 = arith.index_cast %arg0 : i32 to index
    %c74 = arith.constant 74 : index
    %1515 = memref.load %arg2[%1514, %c74] : memref<2x108xf32, #tpu.memory_space<smem>>
    %1516 = arith.mulf %1513, %1 : f32
    %1517 = arith.addf %1515, %1516 : f32
    %1518 = arith.index_cast %arg0 : i32 to index
    %c75 = arith.constant 75 : index
    %1519 = memref.load %arg2[%1518, %c75] : memref<2x108xf32, #tpu.memory_space<smem>>
    %1520 = arith.index_cast %arg0 : i32 to index
    %c76 = arith.constant 76 : index
    %1521 = memref.load %arg2[%1520, %c76] : memref<2x108xf32, #tpu.memory_space<smem>>
    %1522 = arith.index_cast %arg0 : i32 to index
    %c77 = arith.constant 77 : index
    %1523 = memref.load %arg2[%1522, %c77] : memref<2x108xf32, #tpu.memory_space<smem>>
    %1524 = arith.mulf %1521, %1 : f32
    %1525 = arith.addf %1523, %1524 : f32
    %1526 = arith.index_cast %arg0 : i32 to index
    %c78 = arith.constant 78 : index
    %1527 = memref.load %arg2[%1526, %c78] : memref<2x108xf32, #tpu.memory_space<smem>>
    %1528 = arith.index_cast %arg0 : i32 to index
    %c79 = arith.constant 79 : index
    %1529 = memref.load %arg2[%1528, %c79] : memref<2x108xf32, #tpu.memory_space<smem>>
    %1530 = arith.index_cast %arg0 : i32 to index
    %c80 = arith.constant 80 : index
    %1531 = memref.load %arg2[%1530, %c80] : memref<2x108xf32, #tpu.memory_space<smem>>
    %1532 = arith.mulf %1529, %1 : f32
    %1533 = arith.addf %1531, %1532 : f32
    %1534 = vector.broadcast %1511 : f32 to vector<8x128xf32>
    %1535 = arith.mulf %1534, %3 : vector<8x128xf32>
    %1536 = vector.broadcast %1513 : f32 to vector<8x128xf32>
    %1537 = arith.mulf %1536, %5 : vector<8x128xf32>
    %1538 = vector.broadcast %1517 : f32 to vector<8x128xf32>
    %1539 = arith.addf %1537, %1538 : vector<8x128xf32>
    %1540 = arith.addf %1535, %1539 : vector<8x128xf32>
    %1541 = vector.broadcast %1519 : f32 to vector<8x128xf32>
    %1542 = arith.mulf %1541, %3 : vector<8x128xf32>
    %1543 = vector.broadcast %1521 : f32 to vector<8x128xf32>
    %1544 = arith.mulf %1543, %5 : vector<8x128xf32>
    %1545 = vector.broadcast %1525 : f32 to vector<8x128xf32>
    %1546 = arith.addf %1544, %1545 : vector<8x128xf32>
    %1547 = arith.addf %1542, %1546 : vector<8x128xf32>
    %1548 = vector.broadcast %1527 : f32 to vector<8x128xf32>
    %1549 = arith.mulf %1548, %3 : vector<8x128xf32>
    %1550 = vector.broadcast %1529 : f32 to vector<8x128xf32>
    %1551 = arith.mulf %1550, %5 : vector<8x128xf32>
    %1552 = vector.broadcast %1533 : f32 to vector<8x128xf32>
    %1553 = arith.addf %1551, %1552 : vector<8x128xf32>
    %1554 = arith.addf %1549, %1553 : vector<8x128xf32>
    %cst_39 = arith.constant 8.000000e+00 : f32
    %1555 = arith.mulf %1513, %cst_39 : f32
    %cst_40 = arith.constant 8.000000e+00 : f32
    %1556 = arith.mulf %1521, %cst_40 : f32
    %cst_41 = arith.constant 8.000000e+00 : f32
    %1557 = arith.mulf %1529, %cst_41 : f32
    %1558 = arith.minimumf %1540, %1547 : vector<8x128xf32>
    %1559 = arith.minimumf %1558, %1554 : vector<8x128xf32>
    %1560 = arith.maximumf %1374, %1559 : vector<8x128xf32>
    %1561 = vector.broadcast %1555 : f32 to vector<8x128xf32>
    %1562 = arith.addf %1540, %1561 : vector<8x128xf32>
    %1563 = vector.broadcast %1556 : f32 to vector<8x128xf32>
    %1564 = arith.addf %1547, %1563 : vector<8x128xf32>
    %1565 = vector.broadcast %1557 : f32 to vector<8x128xf32>
    %1566 = arith.addf %1554, %1565 : vector<8x128xf32>
    %1567 = arith.minimumf %1562, %1564 : vector<8x128xf32>
    %1568 = arith.minimumf %1567, %1566 : vector<8x128xf32>
    %1569 = arith.maximumf %1383, %1568 : vector<8x128xf32>
    %1570 = vector.broadcast %1555 : f32 to vector<8x128xf32>
    %1571 = arith.addf %1562, %1570 : vector<8x128xf32>
    %1572 = vector.broadcast %1556 : f32 to vector<8x128xf32>
    %1573 = arith.addf %1564, %1572 : vector<8x128xf32>
    %1574 = vector.broadcast %1557 : f32 to vector<8x128xf32>
    %1575 = arith.addf %1566, %1574 : vector<8x128xf32>
    %1576 = arith.minimumf %1571, %1573 : vector<8x128xf32>
    %1577 = arith.minimumf %1576, %1575 : vector<8x128xf32>
    %1578 = arith.maximumf %1392, %1577 : vector<8x128xf32>
    %1579 = vector.broadcast %1555 : f32 to vector<8x128xf32>
    %1580 = arith.addf %1571, %1579 : vector<8x128xf32>
    %1581 = vector.broadcast %1556 : f32 to vector<8x128xf32>
    %1582 = arith.addf %1573, %1581 : vector<8x128xf32>
    %1583 = vector.broadcast %1557 : f32 to vector<8x128xf32>
    %1584 = arith.addf %1575, %1583 : vector<8x128xf32>
    %1585 = arith.minimumf %1580, %1582 : vector<8x128xf32>
    %1586 = arith.minimumf %1585, %1584 : vector<8x128xf32>
    %1587 = arith.maximumf %1401, %1586 : vector<8x128xf32>
    %1588 = vector.broadcast %1555 : f32 to vector<8x128xf32>
    %1589 = arith.addf %1580, %1588 : vector<8x128xf32>
    %1590 = vector.broadcast %1556 : f32 to vector<8x128xf32>
    %1591 = arith.addf %1582, %1590 : vector<8x128xf32>
    %1592 = vector.broadcast %1557 : f32 to vector<8x128xf32>
    %1593 = arith.addf %1584, %1592 : vector<8x128xf32>
    %1594 = arith.minimumf %1589, %1591 : vector<8x128xf32>
    %1595 = arith.minimumf %1594, %1593 : vector<8x128xf32>
    %1596 = arith.maximumf %1410, %1595 : vector<8x128xf32>
    %1597 = vector.broadcast %1555 : f32 to vector<8x128xf32>
    %1598 = arith.addf %1589, %1597 : vector<8x128xf32>
    %1599 = vector.broadcast %1556 : f32 to vector<8x128xf32>
    %1600 = arith.addf %1591, %1599 : vector<8x128xf32>
    %1601 = vector.broadcast %1557 : f32 to vector<8x128xf32>
    %1602 = arith.addf %1593, %1601 : vector<8x128xf32>
    %1603 = arith.minimumf %1598, %1600 : vector<8x128xf32>
    %1604 = arith.minimumf %1603, %1602 : vector<8x128xf32>
    %1605 = arith.maximumf %1419, %1604 : vector<8x128xf32>
    %1606 = vector.broadcast %1555 : f32 to vector<8x128xf32>
    %1607 = arith.addf %1598, %1606 : vector<8x128xf32>
    %1608 = vector.broadcast %1556 : f32 to vector<8x128xf32>
    %1609 = arith.addf %1600, %1608 : vector<8x128xf32>
    %1610 = vector.broadcast %1557 : f32 to vector<8x128xf32>
    %1611 = arith.addf %1602, %1610 : vector<8x128xf32>
    %1612 = arith.minimumf %1607, %1609 : vector<8x128xf32>
    %1613 = arith.minimumf %1612, %1611 : vector<8x128xf32>
    %1614 = arith.maximumf %1428, %1613 : vector<8x128xf32>
    %1615 = vector.broadcast %1555 : f32 to vector<8x128xf32>
    %1616 = arith.addf %1607, %1615 : vector<8x128xf32>
    %1617 = vector.broadcast %1556 : f32 to vector<8x128xf32>
    %1618 = arith.addf %1609, %1617 : vector<8x128xf32>
    %1619 = vector.broadcast %1557 : f32 to vector<8x128xf32>
    %1620 = arith.addf %1611, %1619 : vector<8x128xf32>
    %1621 = arith.minimumf %1616, %1618 : vector<8x128xf32>
    %1622 = arith.minimumf %1621, %1620 : vector<8x128xf32>
    %1623 = arith.maximumf %1437, %1622 : vector<8x128xf32>
    %1624 = vector.broadcast %1555 : f32 to vector<8x128xf32>
    %1625 = arith.addf %1616, %1624 : vector<8x128xf32>
    %1626 = vector.broadcast %1556 : f32 to vector<8x128xf32>
    %1627 = arith.addf %1618, %1626 : vector<8x128xf32>
    %1628 = vector.broadcast %1557 : f32 to vector<8x128xf32>
    %1629 = arith.addf %1620, %1628 : vector<8x128xf32>
    %1630 = arith.minimumf %1625, %1627 : vector<8x128xf32>
    %1631 = arith.minimumf %1630, %1629 : vector<8x128xf32>
    %1632 = arith.maximumf %1446, %1631 : vector<8x128xf32>
    %1633 = vector.broadcast %1555 : f32 to vector<8x128xf32>
    %1634 = arith.addf %1625, %1633 : vector<8x128xf32>
    %1635 = vector.broadcast %1556 : f32 to vector<8x128xf32>
    %1636 = arith.addf %1627, %1635 : vector<8x128xf32>
    %1637 = vector.broadcast %1557 : f32 to vector<8x128xf32>
    %1638 = arith.addf %1629, %1637 : vector<8x128xf32>
    %1639 = arith.minimumf %1634, %1636 : vector<8x128xf32>
    %1640 = arith.minimumf %1639, %1638 : vector<8x128xf32>
    %1641 = arith.maximumf %1455, %1640 : vector<8x128xf32>
    %1642 = vector.broadcast %1555 : f32 to vector<8x128xf32>
    %1643 = arith.addf %1634, %1642 : vector<8x128xf32>
    %1644 = vector.broadcast %1556 : f32 to vector<8x128xf32>
    %1645 = arith.addf %1636, %1644 : vector<8x128xf32>
    %1646 = vector.broadcast %1557 : f32 to vector<8x128xf32>
    %1647 = arith.addf %1638, %1646 : vector<8x128xf32>
    %1648 = arith.minimumf %1643, %1645 : vector<8x128xf32>
    %1649 = arith.minimumf %1648, %1647 : vector<8x128xf32>
    %1650 = arith.maximumf %1464, %1649 : vector<8x128xf32>
    %1651 = vector.broadcast %1555 : f32 to vector<8x128xf32>
    %1652 = arith.addf %1643, %1651 : vector<8x128xf32>
    %1653 = vector.broadcast %1556 : f32 to vector<8x128xf32>
    %1654 = arith.addf %1645, %1653 : vector<8x128xf32>
    %1655 = vector.broadcast %1557 : f32 to vector<8x128xf32>
    %1656 = arith.addf %1647, %1655 : vector<8x128xf32>
    %1657 = arith.minimumf %1652, %1654 : vector<8x128xf32>
    %1658 = arith.minimumf %1657, %1656 : vector<8x128xf32>
    %1659 = arith.maximumf %1473, %1658 : vector<8x128xf32>
    %1660 = vector.broadcast %1555 : f32 to vector<8x128xf32>
    %1661 = arith.addf %1652, %1660 : vector<8x128xf32>
    %1662 = vector.broadcast %1556 : f32 to vector<8x128xf32>
    %1663 = arith.addf %1654, %1662 : vector<8x128xf32>
    %1664 = vector.broadcast %1557 : f32 to vector<8x128xf32>
    %1665 = arith.addf %1656, %1664 : vector<8x128xf32>
    %1666 = arith.minimumf %1661, %1663 : vector<8x128xf32>
    %1667 = arith.minimumf %1666, %1665 : vector<8x128xf32>
    %1668 = arith.maximumf %1482, %1667 : vector<8x128xf32>
    %1669 = vector.broadcast %1555 : f32 to vector<8x128xf32>
    %1670 = arith.addf %1661, %1669 : vector<8x128xf32>
    %1671 = vector.broadcast %1556 : f32 to vector<8x128xf32>
    %1672 = arith.addf %1663, %1671 : vector<8x128xf32>
    %1673 = vector.broadcast %1557 : f32 to vector<8x128xf32>
    %1674 = arith.addf %1665, %1673 : vector<8x128xf32>
    %1675 = arith.minimumf %1670, %1672 : vector<8x128xf32>
    %1676 = arith.minimumf %1675, %1674 : vector<8x128xf32>
    %1677 = arith.maximumf %1491, %1676 : vector<8x128xf32>
    %1678 = vector.broadcast %1555 : f32 to vector<8x128xf32>
    %1679 = arith.addf %1670, %1678 : vector<8x128xf32>
    %1680 = vector.broadcast %1556 : f32 to vector<8x128xf32>
    %1681 = arith.addf %1672, %1680 : vector<8x128xf32>
    %1682 = vector.broadcast %1557 : f32 to vector<8x128xf32>
    %1683 = arith.addf %1674, %1682 : vector<8x128xf32>
    %1684 = arith.minimumf %1679, %1681 : vector<8x128xf32>
    %1685 = arith.minimumf %1684, %1683 : vector<8x128xf32>
    %1686 = arith.maximumf %1500, %1685 : vector<8x128xf32>
    %1687 = vector.broadcast %1555 : f32 to vector<8x128xf32>
    %1688 = arith.addf %1679, %1687 : vector<8x128xf32>
    %1689 = vector.broadcast %1556 : f32 to vector<8x128xf32>
    %1690 = arith.addf %1681, %1689 : vector<8x128xf32>
    %1691 = vector.broadcast %1557 : f32 to vector<8x128xf32>
    %1692 = arith.addf %1683, %1691 : vector<8x128xf32>
    %1693 = arith.minimumf %1688, %1690 : vector<8x128xf32>
    %1694 = arith.minimumf %1693, %1692 : vector<8x128xf32>
    %1695 = arith.maximumf %1509, %1694 : vector<8x128xf32>
    %1696 = arith.index_cast %arg0 : i32 to index
    %c81 = arith.constant 81 : index
    %1697 = memref.load %arg2[%1696, %c81] : memref<2x108xf32, #tpu.memory_space<smem>>
    %1698 = arith.index_cast %arg0 : i32 to index
    %c82 = arith.constant 82 : index
    %1699 = memref.load %arg2[%1698, %c82] : memref<2x108xf32, #tpu.memory_space<smem>>
    %1700 = arith.index_cast %arg0 : i32 to index
    %c83 = arith.constant 83 : index
    %1701 = memref.load %arg2[%1700, %c83] : memref<2x108xf32, #tpu.memory_space<smem>>
    %1702 = arith.mulf %1699, %1 : f32
    %1703 = arith.addf %1701, %1702 : f32
    %1704 = arith.index_cast %arg0 : i32 to index
    %c84 = arith.constant 84 : index
    %1705 = memref.load %arg2[%1704, %c84] : memref<2x108xf32, #tpu.memory_space<smem>>
    %1706 = arith.index_cast %arg0 : i32 to index
    %c85 = arith.constant 85 : index
    %1707 = memref.load %arg2[%1706, %c85] : memref<2x108xf32, #tpu.memory_space<smem>>
    %1708 = arith.index_cast %arg0 : i32 to index
    %c86 = arith.constant 86 : index
    %1709 = memref.load %arg2[%1708, %c86] : memref<2x108xf32, #tpu.memory_space<smem>>
    %1710 = arith.mulf %1707, %1 : f32
    %1711 = arith.addf %1709, %1710 : f32
    %1712 = arith.index_cast %arg0 : i32 to index
    %c87 = arith.constant 87 : index
    %1713 = memref.load %arg2[%1712, %c87] : memref<2x108xf32, #tpu.memory_space<smem>>
    %1714 = arith.index_cast %arg0 : i32 to index
    %c88 = arith.constant 88 : index
    %1715 = memref.load %arg2[%1714, %c88] : memref<2x108xf32, #tpu.memory_space<smem>>
    %1716 = arith.index_cast %arg0 : i32 to index
    %c89 = arith.constant 89 : index
    %1717 = memref.load %arg2[%1716, %c89] : memref<2x108xf32, #tpu.memory_space<smem>>
    %1718 = arith.mulf %1715, %1 : f32
    %1719 = arith.addf %1717, %1718 : f32
    %1720 = vector.broadcast %1697 : f32 to vector<8x128xf32>
    %1721 = arith.mulf %1720, %3 : vector<8x128xf32>
    %1722 = vector.broadcast %1699 : f32 to vector<8x128xf32>
    %1723 = arith.mulf %1722, %5 : vector<8x128xf32>
    %1724 = vector.broadcast %1703 : f32 to vector<8x128xf32>
    %1725 = arith.addf %1723, %1724 : vector<8x128xf32>
    %1726 = arith.addf %1721, %1725 : vector<8x128xf32>
    %1727 = vector.broadcast %1705 : f32 to vector<8x128xf32>
    %1728 = arith.mulf %1727, %3 : vector<8x128xf32>
    %1729 = vector.broadcast %1707 : f32 to vector<8x128xf32>
    %1730 = arith.mulf %1729, %5 : vector<8x128xf32>
    %1731 = vector.broadcast %1711 : f32 to vector<8x128xf32>
    %1732 = arith.addf %1730, %1731 : vector<8x128xf32>
    %1733 = arith.addf %1728, %1732 : vector<8x128xf32>
    %1734 = vector.broadcast %1713 : f32 to vector<8x128xf32>
    %1735 = arith.mulf %1734, %3 : vector<8x128xf32>
    %1736 = vector.broadcast %1715 : f32 to vector<8x128xf32>
    %1737 = arith.mulf %1736, %5 : vector<8x128xf32>
    %1738 = vector.broadcast %1719 : f32 to vector<8x128xf32>
    %1739 = arith.addf %1737, %1738 : vector<8x128xf32>
    %1740 = arith.addf %1735, %1739 : vector<8x128xf32>
    %cst_42 = arith.constant 8.000000e+00 : f32
    %1741 = arith.mulf %1699, %cst_42 : f32
    %cst_43 = arith.constant 8.000000e+00 : f32
    %1742 = arith.mulf %1707, %cst_43 : f32
    %cst_44 = arith.constant 8.000000e+00 : f32
    %1743 = arith.mulf %1715, %cst_44 : f32
    %1744 = arith.minimumf %1726, %1733 : vector<8x128xf32>
    %1745 = arith.minimumf %1744, %1740 : vector<8x128xf32>
    %1746 = arith.maximumf %1560, %1745 : vector<8x128xf32>
    %1747 = vector.broadcast %1741 : f32 to vector<8x128xf32>
    %1748 = arith.addf %1726, %1747 : vector<8x128xf32>
    %1749 = vector.broadcast %1742 : f32 to vector<8x128xf32>
    %1750 = arith.addf %1733, %1749 : vector<8x128xf32>
    %1751 = vector.broadcast %1743 : f32 to vector<8x128xf32>
    %1752 = arith.addf %1740, %1751 : vector<8x128xf32>
    %1753 = arith.minimumf %1748, %1750 : vector<8x128xf32>
    %1754 = arith.minimumf %1753, %1752 : vector<8x128xf32>
    %1755 = arith.maximumf %1569, %1754 : vector<8x128xf32>
    %1756 = vector.broadcast %1741 : f32 to vector<8x128xf32>
    %1757 = arith.addf %1748, %1756 : vector<8x128xf32>
    %1758 = vector.broadcast %1742 : f32 to vector<8x128xf32>
    %1759 = arith.addf %1750, %1758 : vector<8x128xf32>
    %1760 = vector.broadcast %1743 : f32 to vector<8x128xf32>
    %1761 = arith.addf %1752, %1760 : vector<8x128xf32>
    %1762 = arith.minimumf %1757, %1759 : vector<8x128xf32>
    %1763 = arith.minimumf %1762, %1761 : vector<8x128xf32>
    %1764 = arith.maximumf %1578, %1763 : vector<8x128xf32>
    %1765 = vector.broadcast %1741 : f32 to vector<8x128xf32>
    %1766 = arith.addf %1757, %1765 : vector<8x128xf32>
    %1767 = vector.broadcast %1742 : f32 to vector<8x128xf32>
    %1768 = arith.addf %1759, %1767 : vector<8x128xf32>
    %1769 = vector.broadcast %1743 : f32 to vector<8x128xf32>
    %1770 = arith.addf %1761, %1769 : vector<8x128xf32>
    %1771 = arith.minimumf %1766, %1768 : vector<8x128xf32>
    %1772 = arith.minimumf %1771, %1770 : vector<8x128xf32>
    %1773 = arith.maximumf %1587, %1772 : vector<8x128xf32>
    %1774 = vector.broadcast %1741 : f32 to vector<8x128xf32>
    %1775 = arith.addf %1766, %1774 : vector<8x128xf32>
    %1776 = vector.broadcast %1742 : f32 to vector<8x128xf32>
    %1777 = arith.addf %1768, %1776 : vector<8x128xf32>
    %1778 = vector.broadcast %1743 : f32 to vector<8x128xf32>
    %1779 = arith.addf %1770, %1778 : vector<8x128xf32>
    %1780 = arith.minimumf %1775, %1777 : vector<8x128xf32>
    %1781 = arith.minimumf %1780, %1779 : vector<8x128xf32>
    %1782 = arith.maximumf %1596, %1781 : vector<8x128xf32>
    %1783 = vector.broadcast %1741 : f32 to vector<8x128xf32>
    %1784 = arith.addf %1775, %1783 : vector<8x128xf32>
    %1785 = vector.broadcast %1742 : f32 to vector<8x128xf32>
    %1786 = arith.addf %1777, %1785 : vector<8x128xf32>
    %1787 = vector.broadcast %1743 : f32 to vector<8x128xf32>
    %1788 = arith.addf %1779, %1787 : vector<8x128xf32>
    %1789 = arith.minimumf %1784, %1786 : vector<8x128xf32>
    %1790 = arith.minimumf %1789, %1788 : vector<8x128xf32>
    %1791 = arith.maximumf %1605, %1790 : vector<8x128xf32>
    %1792 = vector.broadcast %1741 : f32 to vector<8x128xf32>
    %1793 = arith.addf %1784, %1792 : vector<8x128xf32>
    %1794 = vector.broadcast %1742 : f32 to vector<8x128xf32>
    %1795 = arith.addf %1786, %1794 : vector<8x128xf32>
    %1796 = vector.broadcast %1743 : f32 to vector<8x128xf32>
    %1797 = arith.addf %1788, %1796 : vector<8x128xf32>
    %1798 = arith.minimumf %1793, %1795 : vector<8x128xf32>
    %1799 = arith.minimumf %1798, %1797 : vector<8x128xf32>
    %1800 = arith.maximumf %1614, %1799 : vector<8x128xf32>
    %1801 = vector.broadcast %1741 : f32 to vector<8x128xf32>
    %1802 = arith.addf %1793, %1801 : vector<8x128xf32>
    %1803 = vector.broadcast %1742 : f32 to vector<8x128xf32>
    %1804 = arith.addf %1795, %1803 : vector<8x128xf32>
    %1805 = vector.broadcast %1743 : f32 to vector<8x128xf32>
    %1806 = arith.addf %1797, %1805 : vector<8x128xf32>
    %1807 = arith.minimumf %1802, %1804 : vector<8x128xf32>
    %1808 = arith.minimumf %1807, %1806 : vector<8x128xf32>
    %1809 = arith.maximumf %1623, %1808 : vector<8x128xf32>
    %1810 = vector.broadcast %1741 : f32 to vector<8x128xf32>
    %1811 = arith.addf %1802, %1810 : vector<8x128xf32>
    %1812 = vector.broadcast %1742 : f32 to vector<8x128xf32>
    %1813 = arith.addf %1804, %1812 : vector<8x128xf32>
    %1814 = vector.broadcast %1743 : f32 to vector<8x128xf32>
    %1815 = arith.addf %1806, %1814 : vector<8x128xf32>
    %1816 = arith.minimumf %1811, %1813 : vector<8x128xf32>
    %1817 = arith.minimumf %1816, %1815 : vector<8x128xf32>
    %1818 = arith.maximumf %1632, %1817 : vector<8x128xf32>
    %1819 = vector.broadcast %1741 : f32 to vector<8x128xf32>
    %1820 = arith.addf %1811, %1819 : vector<8x128xf32>
    %1821 = vector.broadcast %1742 : f32 to vector<8x128xf32>
    %1822 = arith.addf %1813, %1821 : vector<8x128xf32>
    %1823 = vector.broadcast %1743 : f32 to vector<8x128xf32>
    %1824 = arith.addf %1815, %1823 : vector<8x128xf32>
    %1825 = arith.minimumf %1820, %1822 : vector<8x128xf32>
    %1826 = arith.minimumf %1825, %1824 : vector<8x128xf32>
    %1827 = arith.maximumf %1641, %1826 : vector<8x128xf32>
    %1828 = vector.broadcast %1741 : f32 to vector<8x128xf32>
    %1829 = arith.addf %1820, %1828 : vector<8x128xf32>
    %1830 = vector.broadcast %1742 : f32 to vector<8x128xf32>
    %1831 = arith.addf %1822, %1830 : vector<8x128xf32>
    %1832 = vector.broadcast %1743 : f32 to vector<8x128xf32>
    %1833 = arith.addf %1824, %1832 : vector<8x128xf32>
    %1834 = arith.minimumf %1829, %1831 : vector<8x128xf32>
    %1835 = arith.minimumf %1834, %1833 : vector<8x128xf32>
    %1836 = arith.maximumf %1650, %1835 : vector<8x128xf32>
    %1837 = vector.broadcast %1741 : f32 to vector<8x128xf32>
    %1838 = arith.addf %1829, %1837 : vector<8x128xf32>
    %1839 = vector.broadcast %1742 : f32 to vector<8x128xf32>
    %1840 = arith.addf %1831, %1839 : vector<8x128xf32>
    %1841 = vector.broadcast %1743 : f32 to vector<8x128xf32>
    %1842 = arith.addf %1833, %1841 : vector<8x128xf32>
    %1843 = arith.minimumf %1838, %1840 : vector<8x128xf32>
    %1844 = arith.minimumf %1843, %1842 : vector<8x128xf32>
    %1845 = arith.maximumf %1659, %1844 : vector<8x128xf32>
    %1846 = vector.broadcast %1741 : f32 to vector<8x128xf32>
    %1847 = arith.addf %1838, %1846 : vector<8x128xf32>
    %1848 = vector.broadcast %1742 : f32 to vector<8x128xf32>
    %1849 = arith.addf %1840, %1848 : vector<8x128xf32>
    %1850 = vector.broadcast %1743 : f32 to vector<8x128xf32>
    %1851 = arith.addf %1842, %1850 : vector<8x128xf32>
    %1852 = arith.minimumf %1847, %1849 : vector<8x128xf32>
    %1853 = arith.minimumf %1852, %1851 : vector<8x128xf32>
    %1854 = arith.maximumf %1668, %1853 : vector<8x128xf32>
    %1855 = vector.broadcast %1741 : f32 to vector<8x128xf32>
    %1856 = arith.addf %1847, %1855 : vector<8x128xf32>
    %1857 = vector.broadcast %1742 : f32 to vector<8x128xf32>
    %1858 = arith.addf %1849, %1857 : vector<8x128xf32>
    %1859 = vector.broadcast %1743 : f32 to vector<8x128xf32>
    %1860 = arith.addf %1851, %1859 : vector<8x128xf32>
    %1861 = arith.minimumf %1856, %1858 : vector<8x128xf32>
    %1862 = arith.minimumf %1861, %1860 : vector<8x128xf32>
    %1863 = arith.maximumf %1677, %1862 : vector<8x128xf32>
    %1864 = vector.broadcast %1741 : f32 to vector<8x128xf32>
    %1865 = arith.addf %1856, %1864 : vector<8x128xf32>
    %1866 = vector.broadcast %1742 : f32 to vector<8x128xf32>
    %1867 = arith.addf %1858, %1866 : vector<8x128xf32>
    %1868 = vector.broadcast %1743 : f32 to vector<8x128xf32>
    %1869 = arith.addf %1860, %1868 : vector<8x128xf32>
    %1870 = arith.minimumf %1865, %1867 : vector<8x128xf32>
    %1871 = arith.minimumf %1870, %1869 : vector<8x128xf32>
    %1872 = arith.maximumf %1686, %1871 : vector<8x128xf32>
    %1873 = vector.broadcast %1741 : f32 to vector<8x128xf32>
    %1874 = arith.addf %1865, %1873 : vector<8x128xf32>
    %1875 = vector.broadcast %1742 : f32 to vector<8x128xf32>
    %1876 = arith.addf %1867, %1875 : vector<8x128xf32>
    %1877 = vector.broadcast %1743 : f32 to vector<8x128xf32>
    %1878 = arith.addf %1869, %1877 : vector<8x128xf32>
    %1879 = arith.minimumf %1874, %1876 : vector<8x128xf32>
    %1880 = arith.minimumf %1879, %1878 : vector<8x128xf32>
    %1881 = arith.maximumf %1695, %1880 : vector<8x128xf32>
    %1882 = arith.index_cast %arg0 : i32 to index
    %c90 = arith.constant 90 : index
    %1883 = memref.load %arg2[%1882, %c90] : memref<2x108xf32, #tpu.memory_space<smem>>
    %1884 = arith.index_cast %arg0 : i32 to index
    %c91 = arith.constant 91 : index
    %1885 = memref.load %arg2[%1884, %c91] : memref<2x108xf32, #tpu.memory_space<smem>>
    %1886 = arith.index_cast %arg0 : i32 to index
    %c92 = arith.constant 92 : index
    %1887 = memref.load %arg2[%1886, %c92] : memref<2x108xf32, #tpu.memory_space<smem>>
    %1888 = arith.mulf %1885, %1 : f32
    %1889 = arith.addf %1887, %1888 : f32
    %1890 = arith.index_cast %arg0 : i32 to index
    %c93 = arith.constant 93 : index
    %1891 = memref.load %arg2[%1890, %c93] : memref<2x108xf32, #tpu.memory_space<smem>>
    %1892 = arith.index_cast %arg0 : i32 to index
    %c94 = arith.constant 94 : index
    %1893 = memref.load %arg2[%1892, %c94] : memref<2x108xf32, #tpu.memory_space<smem>>
    %1894 = arith.index_cast %arg0 : i32 to index
    %c95 = arith.constant 95 : index
    %1895 = memref.load %arg2[%1894, %c95] : memref<2x108xf32, #tpu.memory_space<smem>>
    %1896 = arith.mulf %1893, %1 : f32
    %1897 = arith.addf %1895, %1896 : f32
    %1898 = arith.index_cast %arg0 : i32 to index
    %c96 = arith.constant 96 : index
    %1899 = memref.load %arg2[%1898, %c96] : memref<2x108xf32, #tpu.memory_space<smem>>
    %1900 = arith.index_cast %arg0 : i32 to index
    %c97 = arith.constant 97 : index
    %1901 = memref.load %arg2[%1900, %c97] : memref<2x108xf32, #tpu.memory_space<smem>>
    %1902 = arith.index_cast %arg0 : i32 to index
    %c98 = arith.constant 98 : index
    %1903 = memref.load %arg2[%1902, %c98] : memref<2x108xf32, #tpu.memory_space<smem>>
    %1904 = arith.mulf %1901, %1 : f32
    %1905 = arith.addf %1903, %1904 : f32
    %1906 = vector.broadcast %1883 : f32 to vector<8x128xf32>
    %1907 = arith.mulf %1906, %3 : vector<8x128xf32>
    %1908 = vector.broadcast %1885 : f32 to vector<8x128xf32>
    %1909 = arith.mulf %1908, %5 : vector<8x128xf32>
    %1910 = vector.broadcast %1889 : f32 to vector<8x128xf32>
    %1911 = arith.addf %1909, %1910 : vector<8x128xf32>
    %1912 = arith.addf %1907, %1911 : vector<8x128xf32>
    %1913 = vector.broadcast %1891 : f32 to vector<8x128xf32>
    %1914 = arith.mulf %1913, %3 : vector<8x128xf32>
    %1915 = vector.broadcast %1893 : f32 to vector<8x128xf32>
    %1916 = arith.mulf %1915, %5 : vector<8x128xf32>
    %1917 = vector.broadcast %1897 : f32 to vector<8x128xf32>
    %1918 = arith.addf %1916, %1917 : vector<8x128xf32>
    %1919 = arith.addf %1914, %1918 : vector<8x128xf32>
    %1920 = vector.broadcast %1899 : f32 to vector<8x128xf32>
    %1921 = arith.mulf %1920, %3 : vector<8x128xf32>
    %1922 = vector.broadcast %1901 : f32 to vector<8x128xf32>
    %1923 = arith.mulf %1922, %5 : vector<8x128xf32>
    %1924 = vector.broadcast %1905 : f32 to vector<8x128xf32>
    %1925 = arith.addf %1923, %1924 : vector<8x128xf32>
    %1926 = arith.addf %1921, %1925 : vector<8x128xf32>
    %cst_45 = arith.constant 8.000000e+00 : f32
    %1927 = arith.mulf %1885, %cst_45 : f32
    %cst_46 = arith.constant 8.000000e+00 : f32
    %1928 = arith.mulf %1893, %cst_46 : f32
    %cst_47 = arith.constant 8.000000e+00 : f32
    %1929 = arith.mulf %1901, %cst_47 : f32
    %1930 = arith.minimumf %1912, %1919 : vector<8x128xf32>
    %1931 = arith.minimumf %1930, %1926 : vector<8x128xf32>
    %1932 = arith.maximumf %1746, %1931 : vector<8x128xf32>
    %1933 = vector.broadcast %1927 : f32 to vector<8x128xf32>
    %1934 = arith.addf %1912, %1933 : vector<8x128xf32>
    %1935 = vector.broadcast %1928 : f32 to vector<8x128xf32>
    %1936 = arith.addf %1919, %1935 : vector<8x128xf32>
    %1937 = vector.broadcast %1929 : f32 to vector<8x128xf32>
    %1938 = arith.addf %1926, %1937 : vector<8x128xf32>
    %1939 = arith.minimumf %1934, %1936 : vector<8x128xf32>
    %1940 = arith.minimumf %1939, %1938 : vector<8x128xf32>
    %1941 = arith.maximumf %1755, %1940 : vector<8x128xf32>
    %1942 = vector.broadcast %1927 : f32 to vector<8x128xf32>
    %1943 = arith.addf %1934, %1942 : vector<8x128xf32>
    %1944 = vector.broadcast %1928 : f32 to vector<8x128xf32>
    %1945 = arith.addf %1936, %1944 : vector<8x128xf32>
    %1946 = vector.broadcast %1929 : f32 to vector<8x128xf32>
    %1947 = arith.addf %1938, %1946 : vector<8x128xf32>
    %1948 = arith.minimumf %1943, %1945 : vector<8x128xf32>
    %1949 = arith.minimumf %1948, %1947 : vector<8x128xf32>
    %1950 = arith.maximumf %1764, %1949 : vector<8x128xf32>
    %1951 = vector.broadcast %1927 : f32 to vector<8x128xf32>
    %1952 = arith.addf %1943, %1951 : vector<8x128xf32>
    %1953 = vector.broadcast %1928 : f32 to vector<8x128xf32>
    %1954 = arith.addf %1945, %1953 : vector<8x128xf32>
    %1955 = vector.broadcast %1929 : f32 to vector<8x128xf32>
    %1956 = arith.addf %1947, %1955 : vector<8x128xf32>
    %1957 = arith.minimumf %1952, %1954 : vector<8x128xf32>
    %1958 = arith.minimumf %1957, %1956 : vector<8x128xf32>
    %1959 = arith.maximumf %1773, %1958 : vector<8x128xf32>
    %1960 = vector.broadcast %1927 : f32 to vector<8x128xf32>
    %1961 = arith.addf %1952, %1960 : vector<8x128xf32>
    %1962 = vector.broadcast %1928 : f32 to vector<8x128xf32>
    %1963 = arith.addf %1954, %1962 : vector<8x128xf32>
    %1964 = vector.broadcast %1929 : f32 to vector<8x128xf32>
    %1965 = arith.addf %1956, %1964 : vector<8x128xf32>
    %1966 = arith.minimumf %1961, %1963 : vector<8x128xf32>
    %1967 = arith.minimumf %1966, %1965 : vector<8x128xf32>
    %1968 = arith.maximumf %1782, %1967 : vector<8x128xf32>
    %1969 = vector.broadcast %1927 : f32 to vector<8x128xf32>
    %1970 = arith.addf %1961, %1969 : vector<8x128xf32>
    %1971 = vector.broadcast %1928 : f32 to vector<8x128xf32>
    %1972 = arith.addf %1963, %1971 : vector<8x128xf32>
    %1973 = vector.broadcast %1929 : f32 to vector<8x128xf32>
    %1974 = arith.addf %1965, %1973 : vector<8x128xf32>
    %1975 = arith.minimumf %1970, %1972 : vector<8x128xf32>
    %1976 = arith.minimumf %1975, %1974 : vector<8x128xf32>
    %1977 = arith.maximumf %1791, %1976 : vector<8x128xf32>
    %1978 = vector.broadcast %1927 : f32 to vector<8x128xf32>
    %1979 = arith.addf %1970, %1978 : vector<8x128xf32>
    %1980 = vector.broadcast %1928 : f32 to vector<8x128xf32>
    %1981 = arith.addf %1972, %1980 : vector<8x128xf32>
    %1982 = vector.broadcast %1929 : f32 to vector<8x128xf32>
    %1983 = arith.addf %1974, %1982 : vector<8x128xf32>
    %1984 = arith.minimumf %1979, %1981 : vector<8x128xf32>
    %1985 = arith.minimumf %1984, %1983 : vector<8x128xf32>
    %1986 = arith.maximumf %1800, %1985 : vector<8x128xf32>
    %1987 = vector.broadcast %1927 : f32 to vector<8x128xf32>
    %1988 = arith.addf %1979, %1987 : vector<8x128xf32>
    %1989 = vector.broadcast %1928 : f32 to vector<8x128xf32>
    %1990 = arith.addf %1981, %1989 : vector<8x128xf32>
    %1991 = vector.broadcast %1929 : f32 to vector<8x128xf32>
    %1992 = arith.addf %1983, %1991 : vector<8x128xf32>
    %1993 = arith.minimumf %1988, %1990 : vector<8x128xf32>
    %1994 = arith.minimumf %1993, %1992 : vector<8x128xf32>
    %1995 = arith.maximumf %1809, %1994 : vector<8x128xf32>
    %1996 = vector.broadcast %1927 : f32 to vector<8x128xf32>
    %1997 = arith.addf %1988, %1996 : vector<8x128xf32>
    %1998 = vector.broadcast %1928 : f32 to vector<8x128xf32>
    %1999 = arith.addf %1990, %1998 : vector<8x128xf32>
    %2000 = vector.broadcast %1929 : f32 to vector<8x128xf32>
    %2001 = arith.addf %1992, %2000 : vector<8x128xf32>
    %2002 = arith.minimumf %1997, %1999 : vector<8x128xf32>
    %2003 = arith.minimumf %2002, %2001 : vector<8x128xf32>
    %2004 = arith.maximumf %1818, %2003 : vector<8x128xf32>
    %2005 = vector.broadcast %1927 : f32 to vector<8x128xf32>
    %2006 = arith.addf %1997, %2005 : vector<8x128xf32>
    %2007 = vector.broadcast %1928 : f32 to vector<8x128xf32>
    %2008 = arith.addf %1999, %2007 : vector<8x128xf32>
    %2009 = vector.broadcast %1929 : f32 to vector<8x128xf32>
    %2010 = arith.addf %2001, %2009 : vector<8x128xf32>
    %2011 = arith.minimumf %2006, %2008 : vector<8x128xf32>
    %2012 = arith.minimumf %2011, %2010 : vector<8x128xf32>
    %2013 = arith.maximumf %1827, %2012 : vector<8x128xf32>
    %2014 = vector.broadcast %1927 : f32 to vector<8x128xf32>
    %2015 = arith.addf %2006, %2014 : vector<8x128xf32>
    %2016 = vector.broadcast %1928 : f32 to vector<8x128xf32>
    %2017 = arith.addf %2008, %2016 : vector<8x128xf32>
    %2018 = vector.broadcast %1929 : f32 to vector<8x128xf32>
    %2019 = arith.addf %2010, %2018 : vector<8x128xf32>
    %2020 = arith.minimumf %2015, %2017 : vector<8x128xf32>
    %2021 = arith.minimumf %2020, %2019 : vector<8x128xf32>
    %2022 = arith.maximumf %1836, %2021 : vector<8x128xf32>
    %2023 = vector.broadcast %1927 : f32 to vector<8x128xf32>
    %2024 = arith.addf %2015, %2023 : vector<8x128xf32>
    %2025 = vector.broadcast %1928 : f32 to vector<8x128xf32>
    %2026 = arith.addf %2017, %2025 : vector<8x128xf32>
    %2027 = vector.broadcast %1929 : f32 to vector<8x128xf32>
    %2028 = arith.addf %2019, %2027 : vector<8x128xf32>
    %2029 = arith.minimumf %2024, %2026 : vector<8x128xf32>
    %2030 = arith.minimumf %2029, %2028 : vector<8x128xf32>
    %2031 = arith.maximumf %1845, %2030 : vector<8x128xf32>
    %2032 = vector.broadcast %1927 : f32 to vector<8x128xf32>
    %2033 = arith.addf %2024, %2032 : vector<8x128xf32>
    %2034 = vector.broadcast %1928 : f32 to vector<8x128xf32>
    %2035 = arith.addf %2026, %2034 : vector<8x128xf32>
    %2036 = vector.broadcast %1929 : f32 to vector<8x128xf32>
    %2037 = arith.addf %2028, %2036 : vector<8x128xf32>
    %2038 = arith.minimumf %2033, %2035 : vector<8x128xf32>
    %2039 = arith.minimumf %2038, %2037 : vector<8x128xf32>
    %2040 = arith.maximumf %1854, %2039 : vector<8x128xf32>
    %2041 = vector.broadcast %1927 : f32 to vector<8x128xf32>
    %2042 = arith.addf %2033, %2041 : vector<8x128xf32>
    %2043 = vector.broadcast %1928 : f32 to vector<8x128xf32>
    %2044 = arith.addf %2035, %2043 : vector<8x128xf32>
    %2045 = vector.broadcast %1929 : f32 to vector<8x128xf32>
    %2046 = arith.addf %2037, %2045 : vector<8x128xf32>
    %2047 = arith.minimumf %2042, %2044 : vector<8x128xf32>
    %2048 = arith.minimumf %2047, %2046 : vector<8x128xf32>
    %2049 = arith.maximumf %1863, %2048 : vector<8x128xf32>
    %2050 = vector.broadcast %1927 : f32 to vector<8x128xf32>
    %2051 = arith.addf %2042, %2050 : vector<8x128xf32>
    %2052 = vector.broadcast %1928 : f32 to vector<8x128xf32>
    %2053 = arith.addf %2044, %2052 : vector<8x128xf32>
    %2054 = vector.broadcast %1929 : f32 to vector<8x128xf32>
    %2055 = arith.addf %2046, %2054 : vector<8x128xf32>
    %2056 = arith.minimumf %2051, %2053 : vector<8x128xf32>
    %2057 = arith.minimumf %2056, %2055 : vector<8x128xf32>
    %2058 = arith.maximumf %1872, %2057 : vector<8x128xf32>
    %2059 = vector.broadcast %1927 : f32 to vector<8x128xf32>
    %2060 = arith.addf %2051, %2059 : vector<8x128xf32>
    %2061 = vector.broadcast %1928 : f32 to vector<8x128xf32>
    %2062 = arith.addf %2053, %2061 : vector<8x128xf32>
    %2063 = vector.broadcast %1929 : f32 to vector<8x128xf32>
    %2064 = arith.addf %2055, %2063 : vector<8x128xf32>
    %2065 = arith.minimumf %2060, %2062 : vector<8x128xf32>
    %2066 = arith.minimumf %2065, %2064 : vector<8x128xf32>
    %2067 = arith.maximumf %1881, %2066 : vector<8x128xf32>
    %2068 = arith.index_cast %arg0 : i32 to index
    %c99 = arith.constant 99 : index
    %2069 = memref.load %arg2[%2068, %c99] : memref<2x108xf32, #tpu.memory_space<smem>>
    %2070 = arith.index_cast %arg0 : i32 to index
    %c100 = arith.constant 100 : index
    %2071 = memref.load %arg2[%2070, %c100] : memref<2x108xf32, #tpu.memory_space<smem>>
    %2072 = arith.index_cast %arg0 : i32 to index
    %c101 = arith.constant 101 : index
    %2073 = memref.load %arg2[%2072, %c101] : memref<2x108xf32, #tpu.memory_space<smem>>
    %2074 = arith.mulf %2071, %1 : f32
    %2075 = arith.addf %2073, %2074 : f32
    %2076 = arith.index_cast %arg0 : i32 to index
    %c102 = arith.constant 102 : index
    %2077 = memref.load %arg2[%2076, %c102] : memref<2x108xf32, #tpu.memory_space<smem>>
    %2078 = arith.index_cast %arg0 : i32 to index
    %c103 = arith.constant 103 : index
    %2079 = memref.load %arg2[%2078, %c103] : memref<2x108xf32, #tpu.memory_space<smem>>
    %2080 = arith.index_cast %arg0 : i32 to index
    %c104 = arith.constant 104 : index
    %2081 = memref.load %arg2[%2080, %c104] : memref<2x108xf32, #tpu.memory_space<smem>>
    %2082 = arith.mulf %2079, %1 : f32
    %2083 = arith.addf %2081, %2082 : f32
    %2084 = arith.index_cast %arg0 : i32 to index
    %c105 = arith.constant 105 : index
    %2085 = memref.load %arg2[%2084, %c105] : memref<2x108xf32, #tpu.memory_space<smem>>
    %2086 = arith.index_cast %arg0 : i32 to index
    %c106 = arith.constant 106 : index
    %2087 = memref.load %arg2[%2086, %c106] : memref<2x108xf32, #tpu.memory_space<smem>>
    %2088 = arith.index_cast %arg0 : i32 to index
    %c107 = arith.constant 107 : index
    %2089 = memref.load %arg2[%2088, %c107] : memref<2x108xf32, #tpu.memory_space<smem>>
    %2090 = arith.mulf %2087, %1 : f32
    %2091 = arith.addf %2089, %2090 : f32
    %2092 = vector.broadcast %2069 : f32 to vector<8x128xf32>
    %2093 = arith.mulf %2092, %3 : vector<8x128xf32>
    %2094 = vector.broadcast %2071 : f32 to vector<8x128xf32>
    %2095 = arith.mulf %2094, %5 : vector<8x128xf32>
    %2096 = vector.broadcast %2075 : f32 to vector<8x128xf32>
    %2097 = arith.addf %2095, %2096 : vector<8x128xf32>
    %2098 = arith.addf %2093, %2097 : vector<8x128xf32>
    %2099 = vector.broadcast %2077 : f32 to vector<8x128xf32>
    %2100 = arith.mulf %2099, %3 : vector<8x128xf32>
    %2101 = vector.broadcast %2079 : f32 to vector<8x128xf32>
    %2102 = arith.mulf %2101, %5 : vector<8x128xf32>
    %2103 = vector.broadcast %2083 : f32 to vector<8x128xf32>
    %2104 = arith.addf %2102, %2103 : vector<8x128xf32>
    %2105 = arith.addf %2100, %2104 : vector<8x128xf32>
    %2106 = vector.broadcast %2085 : f32 to vector<8x128xf32>
    %2107 = arith.mulf %2106, %3 : vector<8x128xf32>
    %2108 = vector.broadcast %2087 : f32 to vector<8x128xf32>
    %2109 = arith.mulf %2108, %5 : vector<8x128xf32>
    %2110 = vector.broadcast %2091 : f32 to vector<8x128xf32>
    %2111 = arith.addf %2109, %2110 : vector<8x128xf32>
    %2112 = arith.addf %2107, %2111 : vector<8x128xf32>
    %cst_48 = arith.constant 8.000000e+00 : f32
    %2113 = arith.mulf %2071, %cst_48 : f32
    %cst_49 = arith.constant 8.000000e+00 : f32
    %2114 = arith.mulf %2079, %cst_49 : f32
    %cst_50 = arith.constant 8.000000e+00 : f32
    %2115 = arith.mulf %2087, %cst_50 : f32
    %2116 = arith.minimumf %2098, %2105 : vector<8x128xf32>
    %2117 = arith.minimumf %2116, %2112 : vector<8x128xf32>
    %2118 = arith.maximumf %1932, %2117 : vector<8x128xf32>
    %2119 = vector.broadcast %2113 : f32 to vector<8x128xf32>
    %2120 = arith.addf %2098, %2119 : vector<8x128xf32>
    %2121 = vector.broadcast %2114 : f32 to vector<8x128xf32>
    %2122 = arith.addf %2105, %2121 : vector<8x128xf32>
    %2123 = vector.broadcast %2115 : f32 to vector<8x128xf32>
    %2124 = arith.addf %2112, %2123 : vector<8x128xf32>
    %2125 = arith.minimumf %2120, %2122 : vector<8x128xf32>
    %2126 = arith.minimumf %2125, %2124 : vector<8x128xf32>
    %2127 = arith.maximumf %1941, %2126 : vector<8x128xf32>
    %2128 = vector.broadcast %2113 : f32 to vector<8x128xf32>
    %2129 = arith.addf %2120, %2128 : vector<8x128xf32>
    %2130 = vector.broadcast %2114 : f32 to vector<8x128xf32>
    %2131 = arith.addf %2122, %2130 : vector<8x128xf32>
    %2132 = vector.broadcast %2115 : f32 to vector<8x128xf32>
    %2133 = arith.addf %2124, %2132 : vector<8x128xf32>
    %2134 = arith.minimumf %2129, %2131 : vector<8x128xf32>
    %2135 = arith.minimumf %2134, %2133 : vector<8x128xf32>
    %2136 = arith.maximumf %1950, %2135 : vector<8x128xf32>
    %2137 = vector.broadcast %2113 : f32 to vector<8x128xf32>
    %2138 = arith.addf %2129, %2137 : vector<8x128xf32>
    %2139 = vector.broadcast %2114 : f32 to vector<8x128xf32>
    %2140 = arith.addf %2131, %2139 : vector<8x128xf32>
    %2141 = vector.broadcast %2115 : f32 to vector<8x128xf32>
    %2142 = arith.addf %2133, %2141 : vector<8x128xf32>
    %2143 = arith.minimumf %2138, %2140 : vector<8x128xf32>
    %2144 = arith.minimumf %2143, %2142 : vector<8x128xf32>
    %2145 = arith.maximumf %1959, %2144 : vector<8x128xf32>
    %2146 = vector.broadcast %2113 : f32 to vector<8x128xf32>
    %2147 = arith.addf %2138, %2146 : vector<8x128xf32>
    %2148 = vector.broadcast %2114 : f32 to vector<8x128xf32>
    %2149 = arith.addf %2140, %2148 : vector<8x128xf32>
    %2150 = vector.broadcast %2115 : f32 to vector<8x128xf32>
    %2151 = arith.addf %2142, %2150 : vector<8x128xf32>
    %2152 = arith.minimumf %2147, %2149 : vector<8x128xf32>
    %2153 = arith.minimumf %2152, %2151 : vector<8x128xf32>
    %2154 = arith.maximumf %1968, %2153 : vector<8x128xf32>
    %2155 = vector.broadcast %2113 : f32 to vector<8x128xf32>
    %2156 = arith.addf %2147, %2155 : vector<8x128xf32>
    %2157 = vector.broadcast %2114 : f32 to vector<8x128xf32>
    %2158 = arith.addf %2149, %2157 : vector<8x128xf32>
    %2159 = vector.broadcast %2115 : f32 to vector<8x128xf32>
    %2160 = arith.addf %2151, %2159 : vector<8x128xf32>
    %2161 = arith.minimumf %2156, %2158 : vector<8x128xf32>
    %2162 = arith.minimumf %2161, %2160 : vector<8x128xf32>
    %2163 = arith.maximumf %1977, %2162 : vector<8x128xf32>
    %2164 = vector.broadcast %2113 : f32 to vector<8x128xf32>
    %2165 = arith.addf %2156, %2164 : vector<8x128xf32>
    %2166 = vector.broadcast %2114 : f32 to vector<8x128xf32>
    %2167 = arith.addf %2158, %2166 : vector<8x128xf32>
    %2168 = vector.broadcast %2115 : f32 to vector<8x128xf32>
    %2169 = arith.addf %2160, %2168 : vector<8x128xf32>
    %2170 = arith.minimumf %2165, %2167 : vector<8x128xf32>
    %2171 = arith.minimumf %2170, %2169 : vector<8x128xf32>
    %2172 = arith.maximumf %1986, %2171 : vector<8x128xf32>
    %2173 = vector.broadcast %2113 : f32 to vector<8x128xf32>
    %2174 = arith.addf %2165, %2173 : vector<8x128xf32>
    %2175 = vector.broadcast %2114 : f32 to vector<8x128xf32>
    %2176 = arith.addf %2167, %2175 : vector<8x128xf32>
    %2177 = vector.broadcast %2115 : f32 to vector<8x128xf32>
    %2178 = arith.addf %2169, %2177 : vector<8x128xf32>
    %2179 = arith.minimumf %2174, %2176 : vector<8x128xf32>
    %2180 = arith.minimumf %2179, %2178 : vector<8x128xf32>
    %2181 = arith.maximumf %1995, %2180 : vector<8x128xf32>
    %2182 = vector.broadcast %2113 : f32 to vector<8x128xf32>
    %2183 = arith.addf %2174, %2182 : vector<8x128xf32>
    %2184 = vector.broadcast %2114 : f32 to vector<8x128xf32>
    %2185 = arith.addf %2176, %2184 : vector<8x128xf32>
    %2186 = vector.broadcast %2115 : f32 to vector<8x128xf32>
    %2187 = arith.addf %2178, %2186 : vector<8x128xf32>
    %2188 = arith.minimumf %2183, %2185 : vector<8x128xf32>
    %2189 = arith.minimumf %2188, %2187 : vector<8x128xf32>
    %2190 = arith.maximumf %2004, %2189 : vector<8x128xf32>
    %2191 = vector.broadcast %2113 : f32 to vector<8x128xf32>
    %2192 = arith.addf %2183, %2191 : vector<8x128xf32>
    %2193 = vector.broadcast %2114 : f32 to vector<8x128xf32>
    %2194 = arith.addf %2185, %2193 : vector<8x128xf32>
    %2195 = vector.broadcast %2115 : f32 to vector<8x128xf32>
    %2196 = arith.addf %2187, %2195 : vector<8x128xf32>
    %2197 = arith.minimumf %2192, %2194 : vector<8x128xf32>
    %2198 = arith.minimumf %2197, %2196 : vector<8x128xf32>
    %2199 = arith.maximumf %2013, %2198 : vector<8x128xf32>
    %2200 = vector.broadcast %2113 : f32 to vector<8x128xf32>
    %2201 = arith.addf %2192, %2200 : vector<8x128xf32>
    %2202 = vector.broadcast %2114 : f32 to vector<8x128xf32>
    %2203 = arith.addf %2194, %2202 : vector<8x128xf32>
    %2204 = vector.broadcast %2115 : f32 to vector<8x128xf32>
    %2205 = arith.addf %2196, %2204 : vector<8x128xf32>
    %2206 = arith.minimumf %2201, %2203 : vector<8x128xf32>
    %2207 = arith.minimumf %2206, %2205 : vector<8x128xf32>
    %2208 = arith.maximumf %2022, %2207 : vector<8x128xf32>
    %2209 = vector.broadcast %2113 : f32 to vector<8x128xf32>
    %2210 = arith.addf %2201, %2209 : vector<8x128xf32>
    %2211 = vector.broadcast %2114 : f32 to vector<8x128xf32>
    %2212 = arith.addf %2203, %2211 : vector<8x128xf32>
    %2213 = vector.broadcast %2115 : f32 to vector<8x128xf32>
    %2214 = arith.addf %2205, %2213 : vector<8x128xf32>
    %2215 = arith.minimumf %2210, %2212 : vector<8x128xf32>
    %2216 = arith.minimumf %2215, %2214 : vector<8x128xf32>
    %2217 = arith.maximumf %2031, %2216 : vector<8x128xf32>
    %2218 = vector.broadcast %2113 : f32 to vector<8x128xf32>
    %2219 = arith.addf %2210, %2218 : vector<8x128xf32>
    %2220 = vector.broadcast %2114 : f32 to vector<8x128xf32>
    %2221 = arith.addf %2212, %2220 : vector<8x128xf32>
    %2222 = vector.broadcast %2115 : f32 to vector<8x128xf32>
    %2223 = arith.addf %2214, %2222 : vector<8x128xf32>
    %2224 = arith.minimumf %2219, %2221 : vector<8x128xf32>
    %2225 = arith.minimumf %2224, %2223 : vector<8x128xf32>
    %2226 = arith.maximumf %2040, %2225 : vector<8x128xf32>
    %2227 = vector.broadcast %2113 : f32 to vector<8x128xf32>
    %2228 = arith.addf %2219, %2227 : vector<8x128xf32>
    %2229 = vector.broadcast %2114 : f32 to vector<8x128xf32>
    %2230 = arith.addf %2221, %2229 : vector<8x128xf32>
    %2231 = vector.broadcast %2115 : f32 to vector<8x128xf32>
    %2232 = arith.addf %2223, %2231 : vector<8x128xf32>
    %2233 = arith.minimumf %2228, %2230 : vector<8x128xf32>
    %2234 = arith.minimumf %2233, %2232 : vector<8x128xf32>
    %2235 = arith.maximumf %2049, %2234 : vector<8x128xf32>
    %2236 = vector.broadcast %2113 : f32 to vector<8x128xf32>
    %2237 = arith.addf %2228, %2236 : vector<8x128xf32>
    %2238 = vector.broadcast %2114 : f32 to vector<8x128xf32>
    %2239 = arith.addf %2230, %2238 : vector<8x128xf32>
    %2240 = vector.broadcast %2115 : f32 to vector<8x128xf32>
    %2241 = arith.addf %2232, %2240 : vector<8x128xf32>
    %2242 = arith.minimumf %2237, %2239 : vector<8x128xf32>
    %2243 = arith.minimumf %2242, %2241 : vector<8x128xf32>
    %2244 = arith.maximumf %2058, %2243 : vector<8x128xf32>
    %2245 = vector.broadcast %2113 : f32 to vector<8x128xf32>
    %2246 = arith.addf %2237, %2245 : vector<8x128xf32>
    %2247 = vector.broadcast %2114 : f32 to vector<8x128xf32>
    %2248 = arith.addf %2239, %2247 : vector<8x128xf32>
    %2249 = vector.broadcast %2115 : f32 to vector<8x128xf32>
    %2250 = arith.addf %2241, %2249 : vector<8x128xf32>
    %2251 = arith.minimumf %2246, %2248 : vector<8x128xf32>
    %2252 = arith.minimumf %2251, %2250 : vector<8x128xf32>
    %2253 = arith.maximumf %2067, %2252 : vector<8x128xf32>
    %cst_51 = arith.constant 0.000000e+00 : f32
    %2254 = vector.broadcast %cst_51 : f32 to vector<8x128xf32>
    %2255 = arith.cmpf oge, %2118, %2254 : vector<8x128xf32>
    %cst_52 = arith.constant 1.000000e+00 : f32
    %cst_53 = arith.constant 0.000000e+00 : f32
    %2256 = vector.broadcast %cst_52 : f32 to vector<8x128xf32>
    %2257 = vector.broadcast %cst_53 : f32 to vector<8x128xf32>
    %2258 = arith.select %2255, %2256, %2257 : vector<8x128xi1>, vector<8x128xf32>
    %c0_54 = arith.constant 0 : index
    %c0_55 = arith.constant 0 : index
    %c0_56 = arith.constant 0 : index
    %2259 = vector.load %arg3[%c0_54, %c0_55, %c0_56] : memref<1x128x128xf32, #tpu.memory_space<vmem>>, vector<1x8x128xf32>
    %2260 = vector.shape_cast %2259 : vector<1x8x128xf32> to vector<8x128xf32>
    %2261 = vector.shape_cast %2258 : vector<8x128xf32> to vector<1x8x128xf32>
    tpu.vector_store %arg3[%c0_54, %c0_55, %c0_56], %2261 {strides = array<i32>} : memref<1x128x128xf32, #tpu.memory_space<vmem>>, vector<1x8x128xf32>,
    %cst_57 = arith.constant 0.000000e+00 : f32
    %2262 = vector.broadcast %cst_57 : f32 to vector<8x128xf32>
    %2263 = arith.cmpf oge, %2127, %2262 : vector<8x128xf32>
    %cst_58 = arith.constant 1.000000e+00 : f32
    %cst_59 = arith.constant 0.000000e+00 : f32
    %2264 = vector.broadcast %cst_58 : f32 to vector<8x128xf32>
    %2265 = vector.broadcast %cst_59 : f32 to vector<8x128xf32>
    %2266 = arith.select %2263, %2264, %2265 : vector<8x128xi1>, vector<8x128xf32>
    %c0_60 = arith.constant 0 : index
    %c8_61 = arith.constant 8 : index
    %c0_62 = arith.constant 0 : index
    %2267 = vector.load %arg3[%c0_60, %c8_61, %c0_62] : memref<1x128x128xf32, #tpu.memory_space<vmem>>, vector<1x8x128xf32>
    %2268 = vector.shape_cast %2267 : vector<1x8x128xf32> to vector<8x128xf32>
    %2269 = vector.shape_cast %2266 : vector<8x128xf32> to vector<1x8x128xf32>
    tpu.vector_store %arg3[%c0_60, %c8_61, %c0_62], %2269 {strides = array<i32>} : memref<1x128x128xf32, #tpu.memory_space<vmem>>, vector<1x8x128xf32>,
    %cst_63 = arith.constant 0.000000e+00 : f32
    %2270 = vector.broadcast %cst_63 : f32 to vector<8x128xf32>
    %2271 = arith.cmpf oge, %2136, %2270 : vector<8x128xf32>
    %cst_64 = arith.constant 1.000000e+00 : f32
    %cst_65 = arith.constant 0.000000e+00 : f32
    %2272 = vector.broadcast %cst_64 : f32 to vector<8x128xf32>
    %2273 = vector.broadcast %cst_65 : f32 to vector<8x128xf32>
    %2274 = arith.select %2271, %2272, %2273 : vector<8x128xi1>, vector<8x128xf32>
    %c0_66 = arith.constant 0 : index
    %c16_67 = arith.constant 16 : index
    %c0_68 = arith.constant 0 : index
    %2275 = vector.load %arg3[%c0_66, %c16_67, %c0_68] : memref<1x128x128xf32, #tpu.memory_space<vmem>>, vector<1x8x128xf32>
    %2276 = vector.shape_cast %2275 : vector<1x8x128xf32> to vector<8x128xf32>
    %2277 = vector.shape_cast %2274 : vector<8x128xf32> to vector<1x8x128xf32>
    tpu.vector_store %arg3[%c0_66, %c16_67, %c0_68], %2277 {strides = array<i32>} : memref<1x128x128xf32, #tpu.memory_space<vmem>>, vector<1x8x128xf32>,
    %cst_69 = arith.constant 0.000000e+00 : f32
    %2278 = vector.broadcast %cst_69 : f32 to vector<8x128xf32>
    %2279 = arith.cmpf oge, %2145, %2278 : vector<8x128xf32>
    %cst_70 = arith.constant 1.000000e+00 : f32
    %cst_71 = arith.constant 0.000000e+00 : f32
    %2280 = vector.broadcast %cst_70 : f32 to vector<8x128xf32>
    %2281 = vector.broadcast %cst_71 : f32 to vector<8x128xf32>
    %2282 = arith.select %2279, %2280, %2281 : vector<8x128xi1>, vector<8x128xf32>
    %c0_72 = arith.constant 0 : index
    %c24_73 = arith.constant 24 : index
    %c0_74 = arith.constant 0 : index
    %2283 = vector.load %arg3[%c0_72, %c24_73, %c0_74] : memref<1x128x128xf32, #tpu.memory_space<vmem>>, vector<1x8x128xf32>
    %2284 = vector.shape_cast %2283 : vector<1x8x128xf32> to vector<8x128xf32>
    %2285 = vector.shape_cast %2282 : vector<8x128xf32> to vector<1x8x128xf32>
    tpu.vector_store %arg3[%c0_72, %c24_73, %c0_74], %2285 {strides = array<i32>} : memref<1x128x128xf32, #tpu.memory_space<vmem>>, vector<1x8x128xf32>,
    %cst_75 = arith.constant 0.000000e+00 : f32
    %2286 = vector.broadcast %cst_75 : f32 to vector<8x128xf32>
    %2287 = arith.cmpf oge, %2154, %2286 : vector<8x128xf32>
    %cst_76 = arith.constant 1.000000e+00 : f32
    %cst_77 = arith.constant 0.000000e+00 : f32
    %2288 = vector.broadcast %cst_76 : f32 to vector<8x128xf32>
    %2289 = vector.broadcast %cst_77 : f32 to vector<8x128xf32>
    %2290 = arith.select %2287, %2288, %2289 : vector<8x128xi1>, vector<8x128xf32>
    %c0_78 = arith.constant 0 : index
    %c32_79 = arith.constant 32 : index
    %c0_80 = arith.constant 0 : index
    %2291 = vector.load %arg3[%c0_78, %c32_79, %c0_80] : memref<1x128x128xf32, #tpu.memory_space<vmem>>, vector<1x8x128xf32>
    %2292 = vector.shape_cast %2291 : vector<1x8x128xf32> to vector<8x128xf32>
    %2293 = vector.shape_cast %2290 : vector<8x128xf32> to vector<1x8x128xf32>
    tpu.vector_store %arg3[%c0_78, %c32_79, %c0_80], %2293 {strides = array<i32>} : memref<1x128x128xf32, #tpu.memory_space<vmem>>, vector<1x8x128xf32>,
    %cst_81 = arith.constant 0.000000e+00 : f32
    %2294 = vector.broadcast %cst_81 : f32 to vector<8x128xf32>
    %2295 = arith.cmpf oge, %2163, %2294 : vector<8x128xf32>
    %cst_82 = arith.constant 1.000000e+00 : f32
    %cst_83 = arith.constant 0.000000e+00 : f32
    %2296 = vector.broadcast %cst_82 : f32 to vector<8x128xf32>
    %2297 = vector.broadcast %cst_83 : f32 to vector<8x128xf32>
    %2298 = arith.select %2295, %2296, %2297 : vector<8x128xi1>, vector<8x128xf32>
    %c0_84 = arith.constant 0 : index
    %c40_85 = arith.constant 40 : index
    %c0_86 = arith.constant 0 : index
    %2299 = vector.load %arg3[%c0_84, %c40_85, %c0_86] : memref<1x128x128xf32, #tpu.memory_space<vmem>>, vector<1x8x128xf32>
    %2300 = vector.shape_cast %2299 : vector<1x8x128xf32> to vector<8x128xf32>
    %2301 = vector.shape_cast %2298 : vector<8x128xf32> to vector<1x8x128xf32>
    tpu.vector_store %arg3[%c0_84, %c40_85, %c0_86], %2301 {strides = array<i32>} : memref<1x128x128xf32, #tpu.memory_space<vmem>>, vector<1x8x128xf32>,
    %cst_87 = arith.constant 0.000000e+00 : f32
    %2302 = vector.broadcast %cst_87 : f32 to vector<8x128xf32>
    %2303 = arith.cmpf oge, %2172, %2302 : vector<8x128xf32>
    %cst_88 = arith.constant 1.000000e+00 : f32
    %cst_89 = arith.constant 0.000000e+00 : f32
    %2304 = vector.broadcast %cst_88 : f32 to vector<8x128xf32>
    %2305 = vector.broadcast %cst_89 : f32 to vector<8x128xf32>
    %2306 = arith.select %2303, %2304, %2305 : vector<8x128xi1>, vector<8x128xf32>
    %c0_90 = arith.constant 0 : index
    %c48_91 = arith.constant 48 : index
    %c0_92 = arith.constant 0 : index
    %2307 = vector.load %arg3[%c0_90, %c48_91, %c0_92] : memref<1x128x128xf32, #tpu.memory_space<vmem>>, vector<1x8x128xf32>
    %2308 = vector.shape_cast %2307 : vector<1x8x128xf32> to vector<8x128xf32>
    %2309 = vector.shape_cast %2306 : vector<8x128xf32> to vector<1x8x128xf32>
    tpu.vector_store %arg3[%c0_90, %c48_91, %c0_92], %2309 {strides = array<i32>} : memref<1x128x128xf32, #tpu.memory_space<vmem>>, vector<1x8x128xf32>,
    %cst_93 = arith.constant 0.000000e+00 : f32
    %2310 = vector.broadcast %cst_93 : f32 to vector<8x128xf32>
    %2311 = arith.cmpf oge, %2181, %2310 : vector<8x128xf32>
    %cst_94 = arith.constant 1.000000e+00 : f32
    %cst_95 = arith.constant 0.000000e+00 : f32
    %2312 = vector.broadcast %cst_94 : f32 to vector<8x128xf32>
    %2313 = vector.broadcast %cst_95 : f32 to vector<8x128xf32>
    %2314 = arith.select %2311, %2312, %2313 : vector<8x128xi1>, vector<8x128xf32>
    %c0_96 = arith.constant 0 : index
    %c56_97 = arith.constant 56 : index
    %c0_98 = arith.constant 0 : index
    %2315 = vector.load %arg3[%c0_96, %c56_97, %c0_98] : memref<1x128x128xf32, #tpu.memory_space<vmem>>, vector<1x8x128xf32>
    %2316 = vector.shape_cast %2315 : vector<1x8x128xf32> to vector<8x128xf32>
    %2317 = vector.shape_cast %2314 : vector<8x128xf32> to vector<1x8x128xf32>
    tpu.vector_store %arg3[%c0_96, %c56_97, %c0_98], %2317 {strides = array<i32>} : memref<1x128x128xf32, #tpu.memory_space<vmem>>, vector<1x8x128xf32>,
    %cst_99 = arith.constant 0.000000e+00 : f32
    %2318 = vector.broadcast %cst_99 : f32 to vector<8x128xf32>
    %2319 = arith.cmpf oge, %2190, %2318 : vector<8x128xf32>
    %cst_100 = arith.constant 1.000000e+00 : f32
    %cst_101 = arith.constant 0.000000e+00 : f32
    %2320 = vector.broadcast %cst_100 : f32 to vector<8x128xf32>
    %2321 = vector.broadcast %cst_101 : f32 to vector<8x128xf32>
    %2322 = arith.select %2319, %2320, %2321 : vector<8x128xi1>, vector<8x128xf32>
    %c0_102 = arith.constant 0 : index
    %c64_103 = arith.constant 64 : index
    %c0_104 = arith.constant 0 : index
    %2323 = vector.load %arg3[%c0_102, %c64_103, %c0_104] : memref<1x128x128xf32, #tpu.memory_space<vmem>>, vector<1x8x128xf32>
    %2324 = vector.shape_cast %2323 : vector<1x8x128xf32> to vector<8x128xf32>
    %2325 = vector.shape_cast %2322 : vector<8x128xf32> to vector<1x8x128xf32>
    tpu.vector_store %arg3[%c0_102, %c64_103, %c0_104], %2325 {strides = array<i32>} : memref<1x128x128xf32, #tpu.memory_space<vmem>>, vector<1x8x128xf32>,
    %cst_105 = arith.constant 0.000000e+00 : f32
    %2326 = vector.broadcast %cst_105 : f32 to vector<8x128xf32>
    %2327 = arith.cmpf oge, %2199, %2326 : vector<8x128xf32>
    %cst_106 = arith.constant 1.000000e+00 : f32
    %cst_107 = arith.constant 0.000000e+00 : f32
    %2328 = vector.broadcast %cst_106 : f32 to vector<8x128xf32>
    %2329 = vector.broadcast %cst_107 : f32 to vector<8x128xf32>
    %2330 = arith.select %2327, %2328, %2329 : vector<8x128xi1>, vector<8x128xf32>
    %c0_108 = arith.constant 0 : index
    %c72_109 = arith.constant 72 : index
    %c0_110 = arith.constant 0 : index
    %2331 = vector.load %arg3[%c0_108, %c72_109, %c0_110] : memref<1x128x128xf32, #tpu.memory_space<vmem>>, vector<1x8x128xf32>
    %2332 = vector.shape_cast %2331 : vector<1x8x128xf32> to vector<8x128xf32>
    %2333 = vector.shape_cast %2330 : vector<8x128xf32> to vector<1x8x128xf32>
    tpu.vector_store %arg3[%c0_108, %c72_109, %c0_110], %2333 {strides = array<i32>} : memref<1x128x128xf32, #tpu.memory_space<vmem>>, vector<1x8x128xf32>,
    %cst_111 = arith.constant 0.000000e+00 : f32
    %2334 = vector.broadcast %cst_111 : f32 to vector<8x128xf32>
    %2335 = arith.cmpf oge, %2208, %2334 : vector<8x128xf32>
    %cst_112 = arith.constant 1.000000e+00 : f32
    %cst_113 = arith.constant 0.000000e+00 : f32
    %2336 = vector.broadcast %cst_112 : f32 to vector<8x128xf32>
    %2337 = vector.broadcast %cst_113 : f32 to vector<8x128xf32>
    %2338 = arith.select %2335, %2336, %2337 : vector<8x128xi1>, vector<8x128xf32>
    %c0_114 = arith.constant 0 : index
    %c80_115 = arith.constant 80 : index
    %c0_116 = arith.constant 0 : index
    %2339 = vector.load %arg3[%c0_114, %c80_115, %c0_116] : memref<1x128x128xf32, #tpu.memory_space<vmem>>, vector<1x8x128xf32>
    %2340 = vector.shape_cast %2339 : vector<1x8x128xf32> to vector<8x128xf32>
    %2341 = vector.shape_cast %2338 : vector<8x128xf32> to vector<1x8x128xf32>
    tpu.vector_store %arg3[%c0_114, %c80_115, %c0_116], %2341 {strides = array<i32>} : memref<1x128x128xf32, #tpu.memory_space<vmem>>, vector<1x8x128xf32>,
    %cst_117 = arith.constant 0.000000e+00 : f32
    %2342 = vector.broadcast %cst_117 : f32 to vector<8x128xf32>
    %2343 = arith.cmpf oge, %2217, %2342 : vector<8x128xf32>
    %cst_118 = arith.constant 1.000000e+00 : f32
    %cst_119 = arith.constant 0.000000e+00 : f32
    %2344 = vector.broadcast %cst_118 : f32 to vector<8x128xf32>
    %2345 = vector.broadcast %cst_119 : f32 to vector<8x128xf32>
    %2346 = arith.select %2343, %2344, %2345 : vector<8x128xi1>, vector<8x128xf32>
    %c0_120 = arith.constant 0 : index
    %c88_121 = arith.constant 88 : index
    %c0_122 = arith.constant 0 : index
    %2347 = vector.load %arg3[%c0_120, %c88_121, %c0_122] : memref<1x128x128xf32, #tpu.memory_space<vmem>>, vector<1x8x128xf32>
    %2348 = vector.shape_cast %2347 : vector<1x8x128xf32> to vector<8x128xf32>
    %2349 = vector.shape_cast %2346 : vector<8x128xf32> to vector<1x8x128xf32>
    tpu.vector_store %arg3[%c0_120, %c88_121, %c0_122], %2349 {strides = array<i32>} : memref<1x128x128xf32, #tpu.memory_space<vmem>>, vector<1x8x128xf32>,
    %cst_123 = arith.constant 0.000000e+00 : f32
    %2350 = vector.broadcast %cst_123 : f32 to vector<8x128xf32>
    %2351 = arith.cmpf oge, %2226, %2350 : vector<8x128xf32>
    %cst_124 = arith.constant 1.000000e+00 : f32
    %cst_125 = arith.constant 0.000000e+00 : f32
    %2352 = vector.broadcast %cst_124 : f32 to vector<8x128xf32>
    %2353 = vector.broadcast %cst_125 : f32 to vector<8x128xf32>
    %2354 = arith.select %2351, %2352, %2353 : vector<8x128xi1>, vector<8x128xf32>
    %c0_126 = arith.constant 0 : index
    %c96_127 = arith.constant 96 : index
    %c0_128 = arith.constant 0 : index
    %2355 = vector.load %arg3[%c0_126, %c96_127, %c0_128] : memref<1x128x128xf32, #tpu.memory_space<vmem>>, vector<1x8x128xf32>
    %2356 = vector.shape_cast %2355 : vector<1x8x128xf32> to vector<8x128xf32>
    %2357 = vector.shape_cast %2354 : vector<8x128xf32> to vector<1x8x128xf32>
    tpu.vector_store %arg3[%c0_126, %c96_127, %c0_128], %2357 {strides = array<i32>} : memref<1x128x128xf32, #tpu.memory_space<vmem>>, vector<1x8x128xf32>,
    %cst_129 = arith.constant 0.000000e+00 : f32
    %2358 = vector.broadcast %cst_129 : f32 to vector<8x128xf32>
    %2359 = arith.cmpf oge, %2235, %2358 : vector<8x128xf32>
    %cst_130 = arith.constant 1.000000e+00 : f32
    %cst_131 = arith.constant 0.000000e+00 : f32
    %2360 = vector.broadcast %cst_130 : f32 to vector<8x128xf32>
    %2361 = vector.broadcast %cst_131 : f32 to vector<8x128xf32>
    %2362 = arith.select %2359, %2360, %2361 : vector<8x128xi1>, vector<8x128xf32>
    %c0_132 = arith.constant 0 : index
    %c104_133 = arith.constant 104 : index
    %c0_134 = arith.constant 0 : index
    %2363 = vector.load %arg3[%c0_132, %c104_133, %c0_134] : memref<1x128x128xf32, #tpu.memory_space<vmem>>, vector<1x8x128xf32>
    %2364 = vector.shape_cast %2363 : vector<1x8x128xf32> to vector<8x128xf32>
    %2365 = vector.shape_cast %2362 : vector<8x128xf32> to vector<1x8x128xf32>
    tpu.vector_store %arg3[%c0_132, %c104_133, %c0_134], %2365 {strides = array<i32>} : memref<1x128x128xf32, #tpu.memory_space<vmem>>, vector<1x8x128xf32>,
    %cst_135 = arith.constant 0.000000e+00 : f32
    %2366 = vector.broadcast %cst_135 : f32 to vector<8x128xf32>
    %2367 = arith.cmpf oge, %2244, %2366 : vector<8x128xf32>
    %cst_136 = arith.constant 1.000000e+00 : f32
    %cst_137 = arith.constant 0.000000e+00 : f32
    %2368 = vector.broadcast %cst_136 : f32 to vector<8x128xf32>
    %2369 = vector.broadcast %cst_137 : f32 to vector<8x128xf32>
    %2370 = arith.select %2367, %2368, %2369 : vector<8x128xi1>, vector<8x128xf32>
    %c0_138 = arith.constant 0 : index
    %c112 = arith.constant 112 : index
    %c0_139 = arith.constant 0 : index
    %2371 = vector.load %arg3[%c0_138, %c112, %c0_139] : memref<1x128x128xf32, #tpu.memory_space<vmem>>, vector<1x8x128xf32>
    %2372 = vector.shape_cast %2371 : vector<1x8x128xf32> to vector<8x128xf32>
    %2373 = vector.shape_cast %2370 : vector<8x128xf32> to vector<1x8x128xf32>
    tpu.vector_store %arg3[%c0_138, %c112, %c0_139], %2373 {strides = array<i32>} : memref<1x128x128xf32, #tpu.memory_space<vmem>>, vector<1x8x128xf32>,
    %cst_140 = arith.constant 0.000000e+00 : f32
    %2374 = vector.broadcast %cst_140 : f32 to vector<8x128xf32>
    %2375 = arith.cmpf oge, %2253, %2374 : vector<8x128xf32>
    %cst_141 = arith.constant 1.000000e+00 : f32
    %cst_142 = arith.constant 0.000000e+00 : f32
    %2376 = vector.broadcast %cst_141 : f32 to vector<8x128xf32>
    %2377 = vector.broadcast %cst_142 : f32 to vector<8x128xf32>
    %2378 = arith.select %2375, %2376, %2377 : vector<8x128xi1>, vector<8x128xf32>
    %c0_143 = arith.constant 0 : index
    %c120 = arith.constant 120 : index
    %c0_144 = arith.constant 0 : index
    %2379 = vector.load %arg3[%c0_143, %c120, %c0_144] : memref<1x128x128xf32, #tpu.memory_space<vmem>>, vector<1x8x128xf32>
    %2380 = vector.shape_cast %2379 : vector<1x8x128xf32> to vector<8x128xf32>
    %2381 = vector.shape_cast %2378 : vector<8x128xf32> to vector<1x8x128xf32>
    tpu.vector_store %arg3[%c0_143, %c120, %c0_144], %2381 {strides = array<i32>} : memref<1x128x128xf32, #tpu.memory_space<vmem>>, vector<1x8x128xf32>,
    return
  }
  func.func @transform_0(%arg0: i32, %arg1: i32) -> (i32, i32) {
    %c0_i32 = arith.constant 0 : i32
    %c0_i32_0 = arith.constant 0 : i32
    %c0_i32_1 = arith.constant 0 : i32
    return %c0_i32, %c0_i32_0 : i32, i32
  }
  func.func @transform_1(%arg0: i32, %arg1: i32) -> (i32, i32, i32) {
    %c0_i32 = arith.constant 0 : i32
    %c0_i32_0 = arith.constant 0 : i32
    return %arg0, %arg1, %c0_i32 : i32, i32, i32
  }
}

</mosaic_0001>

<llo_original>
// kernel: tpu_custom_call.1
$region0: #{tpu_custom_call.1}
  #allocation0 [shape = 'u32[]', space=smem, size = 0x4, offset = 0x4, fixed_abs, tag = 'smem constant byte address 0x4 - core index']
  #allocation1 [shape = 'u32[144,128]{1,0:T(1,128)}', space=vmem, size = 0x12000, scoped, tag = 'internal scratch']
  %s0 = inlined_call_operand.hbm [shape: f32[2,108], index: 0, kind: input, shape index: {}]
  %s1 = inlined_call_operand.hbm [shape: f32[2,128,128], index: 1, kind: output, shape index: {}]
  %s2 = sld [smem:[#allocation0]]
  $region41: #{tpu_custom_call.1} parent=0
    _
  %s4 = ssub.s32 1, %s2
  %s5 = scalar_select 0, %s4, %s2
  $region1: #{tpu_custom_call.1} parent=0
    #allocation2 [shape = 'u8[1024]{0}', space=smem, size = 0x400, scoped, tag = 'input window, operand 0, single buffered']
    #allocation3 [shape = 's32[2]{0}', space=sflag, size = 0x8, scoped, tag = 'scoped memory for tpu_custom_call.1']
    #allocation4 [shape = 's32[2]{0}', space=sflag, size = 0x8, scoped, tag = 'scoped memory for tpu_custom_call.1']
    #allocation5 [shape = 'u8[131072]{0}', space=vmem, size = 0x20000, scoped, tag = 'output window, operand 0']
    %6 = vsyncpa [#allocation4], 0
    %7 = vsyncpa [#allocation3], 0
    %s8 = scalar_lea.sflag [#allocation3], 1
    %9 = vsyncpa %s8, 0
    loop: start=0, step=1, limit=4
    $region2: #{tpu_custom_call.1} parent=1 // loop_pre_header
      _
    $region3: #{tpu_custom_call.1} parent=1 // loop_header
      %s11 = sphi 0, %s15
      %p12 = scmp.ge.s32.totalorder %s11, 4
      %s18 = sphi 0, %s30
      %s19 = sphi 0, %s26
      %s20 = sphi 0, %s18
      %s21 = sphi 0, %s19
      %s22 = sphi 0, %s20
      %s23 = sphi 0, %s21
      %s31 = sphi 0, %s31
      %s33 = sphi 0, %s31
      %s34 = sphi 0, %s33
      %s48 = sphi 0, %s34
      %s56 = sphi 0, %s58
      %s59 = sphi 0, %s56
      %s60 = sphi 0, %s59
      %s76 = sphi 0, %s60
    $region4: #{tpu_custom_call.1} parent=1 // loop_header_branch
      %14 = sbr.rel (%p12) target = $region8
    $region5: #{tpu_custom_call.1} parent=1 // loop_body
      %s16 = ssub.s32 %s11, 1
      %s17 = ssub.s32 %s11, 2
      %s24 = sadd.s32 1, %s19
      %p25 = scmp.ge.s32.totalorder %s24, 1
      %s26 = scalar_select %p25, 0, %s24
      %s27 = sadd.s32 1, %s18
      %s28 = scalar_select %p25, %s27, %s18
      %p29 = scmp.ge.s32.totalorder %s28, 2
      %s30 = scalar_select %p29, 0, %s28
      %s32 = sadd.s32 %s31, 1
      %p35 = scmp.eq.s32.totalorder %s11, 1
      %p36 = scmp.ne.s32.totalorder %s31, %s33
      %p37 = scmp.eq.s32.totalorder %s11, 0
      %p38 = por %p36, %p37
      %p39 = scmp.ne.s32.totalorder %s31, %s33
      %p40 = scmp.eq.s32.totalorder %s16, 1
      %p41 = por %p39, %p40
      %p42 = scmp.ne.s32.totalorder %s33, %s34
      %p43 = scmp.eq.s32.totalorder %s16, 0
      %p44 = por %p42, %p43
      %p45 = scmp.ne.s32.totalorder %s33, %s34
      %p46 = scmp.eq.s32.totalorder %s17, 1
      %p47 = por %p45, %p46
      %p49 = scmp.ne.s32.totalorder %s34, %s48
      %p50 = scmp.eq.s32.totalorder %s17, 0
      %p51 = por %p49, %p50
      %s52 = ssub.s32 %s18, %s30
      %s53 = ssub.s32 %s19, %s26
      %s54 = sor.u32 %s52, %s53
      %p55 = scmp.eq.s32.totalorder %s54, 0
      %s57 = sadd.s32 %s56, 1
      %s58 = scalar_select %p55, %s56, %s57
      %p61 = pneg %p55
      %p62 = scmp.eq.s32.totalorder %s11, 1
      %p63 = por %p61, %p62
      %p64 = scmp.ne.s32.totalorder %s56, %s59
      %p65 = scmp.eq.s32.totalorder %s11, 0
      %p66 = por %p64, %p65
      %p67 = scmp.ne.s32.totalorder %s56, %s59
      %p68 = scmp.eq.s32.totalorder %s16, 1
      %p69 = por %p67, %p68
      %p70 = scmp.ne.s32.totalorder %s59, %s60
      %p71 = scmp.eq.s32.totalorder %s16, 0
      %p72 = por %p70, %p71
      %p73 = scmp.ne.s32.totalorder %s59, %s60
      %p74 = scmp.eq.s32.totalorder %s17, 1
      %p75 = por %p73, %p74
      %p77 = scmp.ne.s32.totalorder %s60, %s76
      %p78 = scmp.eq.s32.totalorder %s17, 0
      %p79 = por %p77, %p78
      %p80 = scmp.le.s32.totalorder 1, %s11
      %p81 = scmp.lt.s32.totalorder %s11, 3
      %p82 = pnand %p80, %p81
      %p83 = pneg %p82
      // Predicated region
      $region9: #{tpu_custom_call.1} parent=5 // pred_check
        _
      $region10: #{tpu_custom_call.1} parent=5 // pred_check_branch
        %85 = sbr.rel (%p82) target = $region12
      $region11: #{tpu_custom_call.1} parent=5 // pred_region
        %s86 = ssub.s32 %s11, 1
        // Predicated region
        $region13: #{tpu_custom_call.1} parent=11 // pred_check
          %p87 = pneg %p44
        $region14: #{tpu_custom_call.1} parent=11 // pred_check_branch
          %89 = sbr.rel (%p87) target = $region16
        $region15: #{tpu_custom_call.1} parent=11 // pred_region
          %s91 = ssub.s32 32, 32
          %92 = vsyncadd [#allocation4], %s91
          %95 = dma.hbm_to_smem %s0, 32, [#allocation2], [#allocation4]
        $region16: #{tpu_custom_call.1} parent=11 // pred_fallthru
          _
      $region12: #{tpu_custom_call.1} parent=5 // pred_fallthru
        _
      %p96 = scmp.lt.s32.totalorder %s11, 2
      // Predicated region
      $region17: #{tpu_custom_call.1} parent=5 // pred_check
        %p97 = pneg %p96
      $region18: #{tpu_custom_call.1} parent=5 // pred_check_branch
        %99 = sbr.rel (%p97) target = $region20
      $region19: #{tpu_custom_call.1} parent=5 // pred_region
        _
      $region20: #{tpu_custom_call.1} parent=5 // pred_fallthru
        _
      %p100 = scmp.le.s32.totalorder 1, %s11
      %p101 = scmp.lt.s32.totalorder %s11, 3
      %p102 = pnand %p100, %p101
      %p103 = pneg %p102
      // Predicated region
      $region21: #{tpu_custom_call.1} parent=5 // pred_check
        _
      $region22: #{tpu_custom_call.1} parent=5 // pred_check_branch
        %105 = sbr.rel (%p102) target = $region24
      $region23: #{tpu_custom_call.1} parent=5 // pred_region
        %s106 = ssub.s32 %s11, 1
        // Predicated region
        $region25: #{tpu_custom_call.1} parent=23 // pred_check
          %p107 = pneg %p44
        $region26: #{tpu_custom_call.1} parent=23 // pred_check_branch
          %109 = sbr.rel (%p107) target = $region28
        $region27: #{tpu_custom_call.1} parent=23 // pred_region
          %110 = dma.done [#allocation4], 32
        $region28: #{tpu_custom_call.1} parent=23 // pred_fallthru
          _
        %111 = sfence
        %p112 = pneg %p44
        %p113 = pneg %p41
        %p114 = pneg %p72
        %p115 = pneg %p69
        %s116 = sand.u32 %s59, 1
        %s117 = scalar_lea.sflag [#allocation3], %s116
        %s118 = sand.u32 %s59, 1
        %s119 = smul.addr %s118, 128
        %s120 = scalar_lea.vmem [#allocation5], %s119
        %s121 = smul.u32 16, %s21
        %s122 = smul.u32 %s21, 128
        %s123 = scvt.s32.f32 %s122
        %v124 = vlaneseq
        %v125 = vand.u32 %v124, 127
        %v126 = vcvt.s32.f32 %v125
        %v127 = vlaneseq
        %v128 = vshrl.u32 %v127, 7
        %v129 = vcvt.s32.f32 %v128
        %s130 = smul.u32 %s20, 128
        %s131 = sld [smem:[#allocation2 + %s130]]
        %s132 = sadd.s32 %s130, 1
        %s133 = sld [smem:[#allocation2 + %s132]]
        %s134 = sadd.s32 %s130, 2
        %s135 = sld [smem:[#allocation2 + %s134]]
        %s136 = smul.f32 %s133, %s123
        %s137 = sadd.f32 %s135, %s136
        %s138 = sadd.s32 %s130, 3
        %s139 = sld [smem:[#allocation2 + %s138]]
        %s140 = sadd.s32 %s130, 4
        %s141 = sld [smem:[#allocation2 + %s140]]
        %s142 = sadd.s32 %s130, 5
        %s143 = sld [smem:[#allocation2 + %s142]]
        %s144 = smul.f32 %s141, %s123
        %s145 = sadd.f32 %s143, %s144
        %s146 = sadd.s32 %s130, 6
        %s147 = sld [smem:[#allocation2 + %s146]]
        %s148 = sadd.s32 %s130, 7
        %s149 = sld [smem:[#allocation2 + %s148]]
        %s150 = sadd.s32 %s130, 8
        %s151 = sld [smem:[#allocation2 + %s150]]
        %s152 = smul.f32 %s149, %s123
        %s153 = sadd.f32 %s151, %s152
        %v154 = vstv %s131
        %v155 = vmul.f32 %v154, %v126
        %v156 = vstv %s133
        %v157 = vmul.f32 %v156, %v129
        %v158 = vstv %s137
        %v159 = vadd.f32 %v157, %v158
        %v160 = vadd.f32 %v155, %v159
        %v161 = vstv %s139
        %v162 = vmul.f32 %v161, %v126
        %v163 = vstv %s141
        %v164 = vmul.f32 %v163, %v129
        %v165 = vstv %s145
        %v166 = vadd.f32 %v164, %v165
        %v167 = vadd.f32 %v162, %v166
        %v168 = vstv %s147
        %v169 = vmul.f32 %v168, %v126
        %v170 = vstv %s149
        %v171 = vmul.f32 %v170, %v129
        %v172 = vstv %s153
        %v173 = vadd.f32 %v171, %v172
        %v174 = vadd.f32 %v169, %v173
        %s175 = smul.f32 %s133, 8.0
        %s176 = smul.f32 %s141, 8.0
        %s177 = smul.f32 %s149, 8.0
        %v178 = vmin.f32 %v160, %v167
        %v179 = vmin.f32 %v178, %v174
        %v180 = vmax.f32 %v179, -3e+38
        %v181 = vstv %s175
        %v182 = vadd.f32 %v160, %v181
        %v183 = vstv %s176
        %v184 = vadd.f32 %v167, %v183
        %v185 = vstv %s177
        %v186 = vadd.f32 %v174, %v185
        %v187 = vmin.f32 %v182, %v184
        %v188 = vmin.f32 %v187, %v186
        %v189 = vmax.f32 %v188, -3e+38
        %v190 = vadd.f32 %v182, %v181
        %v191 = vadd.f32 %v184, %v183
        %v192 = vadd.f32 %v186, %v185
        %v193 = vmin.f32 %v190, %v191
        %v194 = vmin.f32 %v193, %v192
        %v195 = vmax.f32 %v194, -3e+38
        %v196 = vadd.f32 %v190, %v181
        %v197 = vadd.f32 %v191, %v183
        %v198 = vadd.f32 %v192, %v185
        %v199 = vmin.f32 %v196, %v197
        %v200 = vmin.f32 %v199, %v198
        %v201 = vmax.f32 %v200, -3e+38
        %v202 = vadd.f32 %v196, %v181
        %v203 = vadd.f32 %v197, %v183
        %v204 = vadd.f32 %v198, %v185
        %v205 = vmin.f32 %v202, %v203
        %v206 = vmin.f32 %v205, %v204
        %v207 = vmax.f32 %v206, -3e+38
        %v208 = vadd.f32 %v202, %v181
        %v209 = vadd.f32 %v203, %v183
        %v210 = vadd.f32 %v204, %v185
        %v211 = vmin.f32 %v208, %v209
        %v212 = vmin.f32 %v211, %v210
        %v213 = vmax.f32 %v212, -3e+38
        %v214 = vadd.f32 %v208, %v181
        %v215 = vadd.f32 %v209, %v183
        %v216 = vadd.f32 %v210, %v185
        %v217 = vmin.f32 %v214, %v215
        %v218 = vmin.f32 %v217, %v216
        %v219 = vmax.f32 %v218, -3e+38
        %v220 = vadd.f32 %v214, %v181
        %v221 = vadd.f32 %v215, %v183
        %v222 = vadd.f32 %v216, %v185
        %v223 = vmin.f32 %v220, %v221
        %v224 = vmin.f32 %v223, %v222
        %v225 = vmax.f32 %v224, -3e+38
        %v226 = vadd.f32 %v220, %v181
        %v227 = vadd.f32 %v221, %v183
        %v228 = vadd.f32 %v222, %v185
        %v229 = vmin.f32 %v226, %v227
        %v230 = vmin.f32 %v229, %v228
        %v231 = vmax.f32 %v230, -3e+38
        %v232 = vadd.f32 %v226, %v181
        %v233 = vadd.f32 %v227, %v183
        %v234 = vadd.f32 %v228, %v185
        %v235 = vmin.f32 %v232, %v233
        %v236 = vmin.f32 %v235, %v234
        %v237 = vmax.f32 %v236, -3e+38
        %v238 = vadd.f32 %v232, %v181
        %v239 = vadd.f32 %v233, %v183
        %v240 = vadd.f32 %v234, %v185
        %v241 = vmin.f32 %v238, %v239
        %v242 = vmin.f32 %v241, %v240
        %v243 = vmax.f32 %v242, -3e+38
        %v244 = vadd.f32 %v238, %v181
        %v245 = vadd.f32 %v239, %v183
        %v246 = vadd.f32 %v240, %v185
        %v247 = vmin.f32 %v244, %v245
        %v248 = vmin.f32 %v247, %v246
        %v249 = vmax.f32 %v248, -3e+38
        %v250 = vadd.f32 %v244, %v181
        %v251 = vadd.f32 %v245, %v183
        %v252 = vadd.f32 %v246, %v185
        %v253 = vmin.f32 %v250, %v251
        %v254 = vmin.f32 %v253, %v252
        %v255 = vmax.f32 %v254, -3e+38
        %v256 = vadd.f32 %v250, %v181
        %v257 = vadd.f32 %v251, %v183
        %v258 = vadd.f32 %v252, %v185
        %v259 = vmin.f32 %v256, %v257
        %v260 = vmin.f32 %v259, %v258
        %v261 = vmax.f32 %v260, -3e+38
        %v262 = vadd.f32 %v256, %v181
        %v263 = vadd.f32 %v257, %v183
        %v264 = vadd.f32 %v258, %v185
        %v265 = vmin.f32 %v262, %v263
        %v266 = vmin.f32 %v265, %v264
        %v267 = vmax.f32 %v266, -3e+38
        %v268 = vadd.f32 %v262, %v181
        %v269 = vadd.f32 %v263, %v183
        %v270 = vadd.f32 %v264, %v185
        %v271 = vmin.f32 %v268, %v269
        %v272 = vmin.f32 %v271, %v270
        %v273 = vmax.f32 %v272, -3e+38
        %s274 = sadd.s32 %s130, 9
        %s275 = sld [smem:[#allocation2 + %s274]]
        %s276 = sadd.s32 %s130, 10
        %s277 = sld [smem:[#allocation2 + %s276]]
        %s278 = sadd.s32 %s130, 11
        %s279 = sld [smem:[#allocation2 + %s278]]
        %s280 = smul.f32 %s277, %s123
        %s281 = sadd.f32 %s279, %s280
        %s282 = sadd.s32 %s130, 12
        %s283 = sld [smem:[#allocation2 + %s282]]
        %s284 = sadd.s32 %s130, 13
        %s285 = sld [smem:[#allocation2 + %s284]]
        %s286 = sadd.s32 %s130, 14
        %s287 = sld [smem:[#allocation2 + %s286]]
        %s288 = smul.f32 %s285, %s123
        %s289 = sadd.f32 %s287, %s288
        %s290 = sadd.s32 %s130, 15
        %s291 = sld [smem:[#allocation2 + %s290]]
        %s292 = sadd.s32 %s130, 16
        %s293 = sld [smem:[#allocation2 + %s292]]
        %s294 = sadd.s32 %s130, 17
        %s295 = sld [smem:[#allocation2 + %s294]]
        %s296 = smul.f32 %s293, %s123
        %s297 = sadd.f32 %s295, %s296
        %v298 = vstv %s275
        %v299 = vmul.f32 %v298, %v126
        %v300 = vstv %s277
        %v301 = vmul.f32 %v300, %v129
        %v302 = vstv %s281
        %v303 = vadd.f32 %v301, %v302
        %v304 = vadd.f32 %v299, %v303
        %v305 = vstv %s283
        %v306 = vmul.f32 %v305, %v126
        %v307 = vstv %s285
        %v308 = vmul.f32 %v307, %v129
        %v309 = vstv %s289
        %v310 = vadd.f32 %v308, %v309
        %v311 = vadd.f32 %v306, %v310
        %v312 = vstv %s291
        %v313 = vmul.f32 %v312, %v126
        %v314 = vstv %s293
        %v315 = vmul.f32 %v314, %v129
        %v316 = vstv %s297
        %v317 = vadd.f32 %v315, %v316
        %v318 = vadd.f32 %v313, %v317
        %s319 = smul.f32 %s277, 8.0
        %s320 = smul.f32 %s285, 8.0
        %s321 = smul.f32 %s293, 8.0
        %v322 = vmin.f32 %v304, %v311
        %v323 = vmin.f32 %v322, %v318
        %v324 = vmax.f32 %v180, %v323
        %v325 = vstv %s319
        %v326 = vadd.f32 %v304, %v325
        %v327 = vstv %s320
        %v328 = vadd.f32 %v311, %v327
        %v329 = vstv %s321
        %v330 = vadd.f32 %v318, %v329
        %v331 = vmin.f32 %v326, %v328
        %v332 = vmin.f32 %v331, %v330
        %v333 = vmax.f32 %v189, %v332
        %v334 = vadd.f32 %v326, %v325
        %v335 = vadd.f32 %v328, %v327
        %v336 = vadd.f32 %v330, %v329
        %v337 = vmin.f32 %v334, %v335
        %v338 = vmin.f32 %v337, %v336
        %v339 = vmax.f32 %v195, %v338
        %v340 = vadd.f32 %v334, %v325
        %v341 = vadd.f32 %v335, %v327
        %v342 = vadd.f32 %v336, %v329
        %v343 = vmin.f32 %v340, %v341
        %v344 = vmin.f32 %v343, %v342
        %v345 = vmax.f32 %v201, %v344
        %v346 = vadd.f32 %v340, %v325
        %v347 = vadd.f32 %v341, %v327
        %v348 = vadd.f32 %v342, %v329
        %v349 = vmin.f32 %v346, %v347
        %v350 = vmin.f32 %v349, %v348
        %v351 = vmax.f32 %v207, %v350
        %v352 = vadd.f32 %v346, %v325
        %v353 = vadd.f32 %v347, %v327
        %v354 = vadd.f32 %v348, %v329
        %v355 = vmin.f32 %v352, %v353
        %v356 = vmin.f32 %v355, %v354
        %v357 = vmax.f32 %v213, %v356
        %v358 = vadd.f32 %v352, %v325
        %v359 = vadd.f32 %v353, %v327
        %v360 = vadd.f32 %v354, %v329
        %v361 = vmin.f32 %v358, %v359
        %v362 = vmin.f32 %v361, %v360
        %v363 = vmax.f32 %v219, %v362
        %v364 = vadd.f32 %v358, %v325
        %v365 = vadd.f32 %v359, %v327
        %v366 = vadd.f32 %v360, %v329
        %v367 = vmin.f32 %v364, %v365
        %v368 = vmin.f32 %v367, %v366
        %v369 = vmax.f32 %v225, %v368
        %v370 = vadd.f32 %v364, %v325
        %v371 = vadd.f32 %v365, %v327
        %v372 = vadd.f32 %v366, %v329
        %v373 = vmin.f32 %v370, %v371
        %v374 = vmin.f32 %v373, %v372
        %v375 = vmax.f32 %v231, %v374
        %v376 = vadd.f32 %v370, %v325
        %v377 = vadd.f32 %v371, %v327
        %v378 = vadd.f32 %v372, %v329
        %v379 = vmin.f32 %v376, %v377
        %v380 = vmin.f32 %v379, %v378
        %v381 = vmax.f32 %v237, %v380
        %v382 = vadd.f32 %v376, %v325
        %v383 = vadd.f32 %v377, %v327
        %v384 = vadd.f32 %v378, %v329
        %v385 = vmin.f32 %v382, %v383
        %v386 = vmin.f32 %v385, %v384
        %v387 = vmax.f32 %v243, %v386
        %v388 = vadd.f32 %v382, %v325
        %v389 = vadd.f32 %v383, %v327
        %v390 = vadd.f32 %v384, %v329
        %v391 = vmin.f32 %v388, %v389
        %v392 = vmin.f32 %v391, %v390
        %v393 = vmax.f32 %v249, %v392
        %v394 = vadd.f32 %v388, %v325
        %v395 = vadd.f32 %v389, %v327
        %v396 = vadd.f32 %v390, %v329
        %v397 = vmin.f32 %v394, %v395
        %v398 = vmin.f32 %v397, %v396
        %v399 = vmax.f32 %v255, %v398
        %v400 = vadd.f32 %v394, %v325
        %v401 = vadd.f32 %v395, %v327
        %v402 = vadd.f32 %v396, %v329
        %v403 = vmin.f32 %v400, %v401
        %v404 = vmin.f32 %v403, %v402
        %v405 = vmax.f32 %v261, %v404
        %v406 = vadd.f32 %v400, %v325
        %v407 = vadd.f32 %v401, %v327
        %v408 = vadd.f32 %v402, %v329
        %v409 = vmin.f32 %v406, %v407
        %v410 = vmin.f32 %v409, %v408
        %v411 = vmax.f32 %v267, %v410
        %v412 = vadd.f32 %v406, %v325
        %v413 = vadd.f32 %v407, %v327
        %v414 = vadd.f32 %v408, %v329
        %v415 = vmin.f32 %v412, %v413
        %v416 = vmin.f32 %v415, %v414
        %v417 = vmax.f32 %v273, %v416
        %s418 = sadd.s32 %s130, 18
        %s419 = sld [smem:[#allocation2 + %s418]]
        %s420 = sadd.s32 %s130, 19
        %s421 = sld [smem:[#allocation2 + %s420]]
        %s422 = sadd.s32 %s130, 20
        %s423 = sld [smem:[#allocation2 + %s422]]
        %s424 = smul.f32 %s421, %s123
        %s425 = sadd.f32 %s423, %s424
        %s426 = sadd.s32 %s130, 21
        %s427 = sld [smem:[#allocation2 + %s426]]
        %s428 = sadd.s32 %s130, 22
        %s429 = sld [smem:[#allocation2 + %s428]]
        %s430 = sadd.s32 %s130, 23
        %s431 = sld [smem:[#allocation2 + %s430]]
        %s432 = smul.f32 %s429, %s123
        %s433 = sadd.f32 %s431, %s432
        %s434 = sadd.s32 %s130, 24
        %s435 = sld [smem:[#allocation2 + %s434]]
        %s436 = sadd.s32 %s130, 25
        %s437 = sld [smem:[#allocation2 + %s436]]
        %s438 = sadd.s32 %s130, 26
        %s439 = sld [smem:[#allocation2 + %s438]]
        %s440 = smul.f32 %s437, %s123
        %s441 = sadd.f32 %s439, %s440
        %v442 = vstv %s419
        %v443 = vmul.f32 %v442, %v126
        %v444 = vstv %s421
        %v445 = vmul.f32 %v444, %v129
        %v446 = vstv %s425
        %v447 = vadd.f32 %v445, %v446
        %v448 = vadd.f32 %v443, %v447
        %v449 = vstv %s427
        %v450 = vmul.f32 %v449, %v126
        %v451 = vstv %s429
        %v452 = vmul.f32 %v451, %v129
        %v453 = vstv %s433
        %v454 = vadd.f32 %v452, %v453
        %v455 = vadd.f32 %v450, %v454
        %v456 = vstv %s435
        %v457 = vmul.f32 %v456, %v126
        %v458 = vstv %s437
        %v459 = vmul.f32 %v458, %v129
        %v460 = vstv %s441
        %v461 = vadd.f32 %v459, %v460
        %v462 = vadd.f32 %v457, %v461
        %s463 = smul.f32 %s421, 8.0
        %s464 = smul.f32 %s429, 8.0
        %s465 = smul.f32 %s437, 8.0
        %v466 = vmin.f32 %v448, %v455
        %v467 = vmin.f32 %v466, %v462
        %v468 = vmax.f32 %v324, %v467
        %v469 = vstv %s463
        %v470 = vadd.f32 %v448, %v469
        %v471 = vstv %s464
        %v472 = vadd.f32 %v455, %v471
        %v473 = vstv %s465
        %v474 = vadd.f32 %v462, %v473
        %v475 = vmin.f32 %v470, %v472
        %v476 = vmin.f32 %v475, %v474
        %v477 = vmax.f32 %v333, %v476
        %v478 = vadd.f32 %v470, %v469
        %v479 = vadd.f32 %v472, %v471
        %v480 = vadd.f32 %v474, %v473
        %v481 = vmin.f32 %v478, %v479
        %v482 = vmin.f32 %v481, %v480
        %v483 = vmax.f32 %v339, %v482
        %v484 = vadd.f32 %v478, %v469
        %v485 = vadd.f32 %v479, %v471
        %v486 = vadd.f32 %v480, %v473
        %v487 = vmin.f32 %v484, %v485
        %v488 = vmin.f32 %v487, %v486
        %v489 = vmax.f32 %v345, %v488
        %v490 = vadd.f32 %v484, %v469
        %v491 = vadd.f32 %v485, %v471
        %v492 = vadd.f32 %v486, %v473
        %v493 = vmin.f32 %v490, %v491
        %v494 = vmin.f32 %v493, %v492
        %v495 = vmax.f32 %v351, %v494
        %v496 = vadd.f32 %v490, %v469
        %v497 = vadd.f32 %v491, %v471
        %v498 = vadd.f32 %v492, %v473
        %v499 = vmin.f32 %v496, %v497
        %v500 = vmin.f32 %v499, %v498
        %v501 = vmax.f32 %v357, %v500
        %v502 = vadd.f32 %v496, %v469
        %v503 = vadd.f32 %v497, %v471
        %v504 = vadd.f32 %v498, %v473
        %v505 = vmin.f32 %v502, %v503
        %v506 = vmin.f32 %v505, %v504
        %v507 = vmax.f32 %v363, %v506
        %v508 = vadd.f32 %v502, %v469
        %v509 = vadd.f32 %v503, %v471
        %v510 = vadd.f32 %v504, %v473
        %v511 = vmin.f32 %v508, %v509
        %v512 = vmin.f32 %v511, %v510
        %v513 = vmax.f32 %v369, %v512
        %v514 = vadd.f32 %v508, %v469
        %v515 = vadd.f32 %v509, %v471
        %v516 = vadd.f32 %v510, %v473
        %v517 = vmin.f32 %v514, %v515
        %v518 = vmin.f32 %v517, %v516
        %v519 = vmax.f32 %v375, %v518
        %v520 = vadd.f32 %v514, %v469
        %v521 = vadd.f32 %v515, %v471
        %v522 = vadd.f32 %v516, %v473
        %v523 = vmin.f32 %v520, %v521
        %v524 = vmin.f32 %v523, %v522
        %v525 = vmax.f32 %v381, %v524
        %v526 = vadd.f32 %v520, %v469
        %v527 = vadd.f32 %v521, %v471
        %v528 = vadd.f32 %v522, %v473
        %v529 = vmin.f32 %v526, %v527
        %v530 = vmin.f32 %v529, %v528
        %v531 = vmax.f32 %v387, %v530
        %v532 = vadd.f32 %v526, %v469
        %v533 = vadd.f32 %v527, %v471
        %v534 = vadd.f32 %v528, %v473
        %v535 = vmin.f32 %v532, %v533
        %v536 = vmin.f32 %v535, %v534
        %v537 = vmax.f32 %v393, %v536
        %v538 = vadd.f32 %v532, %v469
        %v539 = vadd.f32 %v533, %v471
        %v540 = vadd.f32 %v534, %v473
        %v541 = vmin.f32 %v538, %v539
        %v542 = vmin.f32 %v541, %v540
        %v543 = vmax.f32 %v399, %v542
        %v544 = vadd.f32 %v538, %v469
        %v545 = vadd.f32 %v539, %v471
        %v546 = vadd.f32 %v540, %v473
        %v547 = vmin.f32 %v544, %v545
        %v548 = vmin.f32 %v547, %v546
        %v549 = vmax.f32 %v405, %v548
        %v550 = vadd.f32 %v544, %v469
        %v551 = vadd.f32 %v545, %v471
        %v552 = vadd.f32 %v546, %v473
        %v553 = vmin.f32 %v550, %v551
        %v554 = vmin.f32 %v553, %v552
        %v555 = vmax.f32 %v411, %v554
        %v556 = vadd.f32 %v550, %v469
        %v557 = vadd.f32 %v551, %v471
        %v558 = vadd.f32 %v552, %v473
        %v559 = vmin.f32 %v556, %v557
        %v560 = vmin.f32 %v559, %v558
        %v561 = vmax.f32 %v417, %v560
        %s562 = sadd.s32 %s130, 27
        %s563 = sld [smem:[#allocation2 + %s562]]
        %s564 = sadd.s32 %s130, 28
        %s565 = sld [smem:[#allocation2 + %s564]]
        %s566 = sadd.s32 %s130, 29
        %s567 = sld [smem:[#allocation2 + %s566]]
        %s568 = smul.f32 %s565, %s123
        %s569 = sadd.f32 %s567, %s568
        %s570 = sadd.s32 %s130, 30
        %s571 = sld [smem:[#allocation2 + %s570]]
        %s572 = sadd.s32 %s130, 31
        %s573 = sld [smem:[#allocation2 + %s572]]
        %s574 = sadd.s32 %s130, 32
        %s575 = sld [smem:[#allocation2 + %s574]]
        %s576 = smul.f32 %s573, %s123
        %s577 = sadd.f32 %s575, %s576
        %s578 = sadd.s32 %s130, 33
        %s579 = sld [smem:[#allocation2 + %s578]]
        %s580 = sadd.s32 %s130, 34
        %s581 = sld [smem:[#allocation2 + %s580]]
        %s582 = sadd.s32 %s130, 35
        %s583 = sld [smem:[#allocation2 + %s582]]
        %s584 = smul.f32 %s581, %s123
        %s585 = sadd.f32 %s583, %s584
        %v586 = vstv %s563
        %v587 = vmul.f32 %v586, %v126
        %v588 = vstv %s565
        %v589 = vmul.f32 %v588, %v129
        %v590 = vstv %s569
        %v591 = vadd.f32 %v589, %v590
        %v592 = vadd.f32 %v587, %v591
        %v593 = vstv %s571
        %v594 = vmul.f32 %v593, %v126
        %v595 = vstv %s573
        %v596 = vmul.f32 %v595, %v129
        %v597 = vstv %s577
        %v598 = vadd.f32 %v596, %v597
        %v599 = vadd.f32 %v594, %v598
        %v600 = vstv %s579
        %v601 = vmul.f32 %v600, %v126
        %v602 = vstv %s581
        %v603 = vmul.f32 %v602, %v129
        %v604 = vstv %s585
        %v605 = vadd.f32 %v603, %v604
        %v606 = vadd.f32 %v601, %v605
        %s607 = smul.f32 %s565, 8.0
        %s608 = smul.f32 %s573, 8.0
        %s609 = smul.f32 %s581, 8.0
        %v610 = vmin.f32 %v592, %v599
        %v611 = vmin.f32 %v610, %v606
        %v612 = vmax.f32 %v468, %v611
        %v613 = vstv %s607
        %v614 = vadd.f32 %v592, %v613
        %v615 = vstv %s608
        %v616 = vadd.f32 %v599, %v615
        %v617 = vstv %s609
        %v618 = vadd.f32 %v606, %v617
        %v619 = vmin.f32 %v614, %v616
        %v620 = vmin.f32 %v619, %v618
        %v621 = vmax.f32 %v477, %v620
        %v622 = vadd.f32 %v614, %v613
        %v623 = vadd.f32 %v616, %v615
        %v624 = vadd.f32 %v618, %v617
        %v625 = vmin.f32 %v622, %v623
        %v626 = vmin.f32 %v625, %v624
        %v627 = vmax.f32 %v483, %v626
        %v628 = vadd.f32 %v622, %v613
        %v629 = vadd.f32 %v623, %v615
        %v630 = vadd.f32 %v624, %v617
        %v631 = vmin.f32 %v628, %v629
        %v632 = vmin.f32 %v631, %v630
        %v633 = vmax.f32 %v489, %v632
        %v634 = vadd.f32 %v628, %v613
        %v635 = vadd.f32 %v629, %v615
        %v636 = vadd.f32 %v630, %v617
        %v637 = vmin.f32 %v634, %v635
        %v638 = vmin.f32 %v637, %v636
        %v639 = vmax.f32 %v495, %v638
        %v640 = vadd.f32 %v634, %v613
        %v641 = vadd.f32 %v635, %v615
        %v642 = vadd.f32 %v636, %v617
        %v643 = vmin.f32 %v640, %v641
        %v644 = vmin.f32 %v643, %v642
        %v645 = vmax.f32 %v501, %v644
        %v646 = vadd.f32 %v640, %v613
        %v647 = vadd.f32 %v641, %v615
        %v648 = vadd.f32 %v642, %v617
        %v649 = vmin.f32 %v646, %v647
        %v650 = vmin.f32 %v649, %v648
        %v651 = vmax.f32 %v507, %v650
        %v652 = vadd.f32 %v646, %v613
        %v653 = vadd.f32 %v647, %v615
        %v654 = vadd.f32 %v648, %v617
        %v655 = vmin.f32 %v652, %v653
        %v656 = vmin.f32 %v655, %v654
        %v657 = vmax.f32 %v513, %v656
        %v658 = vadd.f32 %v652, %v613
        %v659 = vadd.f32 %v653, %v615
        %v660 = vadd.f32 %v654, %v617
        %v661 = vmin.f32 %v658, %v659
        %v662 = vmin.f32 %v661, %v660
        %v663 = vmax.f32 %v519, %v662
        %v664 = vadd.f32 %v658, %v613
        %v665 = vadd.f32 %v659, %v615
        %v666 = vadd.f32 %v660, %v617
        %v667 = vmin.f32 %v664, %v665
        %v668 = vmin.f32 %v667, %v666
        %v669 = vmax.f32 %v525, %v668
        %v670 = vadd.f32 %v664, %v613
        %v671 = vadd.f32 %v665, %v615
        %v672 = vadd.f32 %v666, %v617
        %v673 = vmin.f32 %v670, %v671
        %v674 = vmin.f32 %v673, %v672
        %v675 = vmax.f32 %v531, %v674
        %v676 = vadd.f32 %v670, %v613
        %v677 = vadd.f32 %v671, %v615
        %v678 = vadd.f32 %v672, %v617
        %v679 = vmin.f32 %v676, %v677
        %v680 = vmin.f32 %v679, %v678
        %v681 = vmax.f32 %v537, %v680
        %v682 = vadd.f32 %v676, %v613
        %v683 = vadd.f32 %v677, %v615
        %v684 = vadd.f32 %v678, %v617
        %v685 = vmin.f32 %v682, %v683
        %v686 = vmin.f32 %v685, %v684
        %v687 = vmax.f32 %v543, %v686
        %v688 = vadd.f32 %v682, %v613
        %v689 = vadd.f32 %v683, %v615
        %v690 = vadd.f32 %v684, %v617
        %v691 = vmin.f32 %v688, %v689
        %v692 = vmin.f32 %v691, %v690
        %v693 = vmax.f32 %v549, %v692
        %v694 = vadd.f32 %v688, %v613
        %v695 = vadd.f32 %v689, %v615
        %v696 = vadd.f32 %v690, %v617
        %v697 = vmin.f32 %v694, %v695
        %v698 = vmin.f32 %v697, %v696
        %v699 = vmax.f32 %v555, %v698
        %v700 = vadd.f32 %v694, %v613
        %v701 = vadd.f32 %v695, %v615
        %v702 = vadd.f32 %v696, %v617
        %v703 = vmin.f32 %v700, %v701
        %v704 = vmin.f32 %v703, %v702
        %v705 = vmax.f32 %v561, %v704
        %s706 = sadd.s32 %s130, 36
        %s707 = sld [smem:[#allocation2 + %s706]]
        %s708 = sadd.s32 %s130, 37
        %s709 = sld [smem:[#allocation2 + %s708]]
        %s710 = sadd.s32 %s130, 38
        %s711 = sld [smem:[#allocation2 + %s710]]
        %s712 = smul.f32 %s709, %s123
        %s713 = sadd.f32 %s711, %s712
        %s714 = sadd.s32 %s130, 39
        %s715 = sld [smem:[#allocation2 + %s714]]
        %s716 = sadd.s32 %s130, 40
        %s717 = sld [smem:[#allocation2 + %s716]]
        %s718 = sadd.s32 %s130, 41
        %s719 = sld [smem:[#allocation2 + %s718]]
        %s720 = smul.f32 %s717, %s123
        %s721 = sadd.f32 %s719, %s720
        %s722 = sadd.s32 %s130, 42
        %s723 = sld [smem:[#allocation2 + %s722]]
        %s724 = sadd.s32 %s130, 43
        %s725 = sld [smem:[#allocation2 + %s724]]
        %s726 = sadd.s32 %s130, 44
        %s727 = sld [smem:[#allocation2 + %s726]]
        %s728 = smul.f32 %s725, %s123
        %s729 = sadd.f32 %s727, %s728
        %v730 = vstv %s707
        %v731 = vmul.f32 %v730, %v126
        %v732 = vstv %s709
        %v733 = vmul.f32 %v732, %v129
        %v734 = vstv %s713
        %v735 = vadd.f32 %v733, %v734
        %v736 = vadd.f32 %v731, %v735
        %v737 = vstv %s715
        %v738 = vmul.f32 %v737, %v126
        %v739 = vstv %s717
        %v740 = vmul.f32 %v739, %v129
        %v741 = vstv %s721
        %v742 = vadd.f32 %v740, %v741
        %v743 = vadd.f32 %v738, %v742
        %v744 = vstv %s723
        %v745 = vmul.f32 %v744, %v126
        %v746 = vstv %s725
        %v747 = vmul.f32 %v746, %v129
        %v748 = vstv %s729
        %v749 = vadd.f32 %v747, %v748
        %v750 = vadd.f32 %v745, %v749
        %s751 = smul.f32 %s709, 8.0
        %s752 = smul.f32 %s717, 8.0
        %s753 = smul.f32 %s725, 8.0
        %v754 = vmin.f32 %v736, %v743
        %v755 = vmin.f32 %v754, %v750
        %v756 = vmax.f32 %v612, %v755
        %v757 = vstv %s751
        %v758 = vadd.f32 %v736, %v757
        %v759 = vstv %s752
        %v760 = vadd.f32 %v743, %v759
        %v761 = vstv %s753
        %v762 = vadd.f32 %v750, %v761
        %v763 = vmin.f32 %v758, %v760
        %v764 = vmin.f32 %v763, %v762
        %v765 = vmax.f32 %v621, %v764
        %v766 = vadd.f32 %v758, %v757
        %v767 = vadd.f32 %v760, %v759
        %v768 = vadd.f32 %v762, %v761
        %v769 = vmin.f32 %v766, %v767
        %v770 = vmin.f32 %v769, %v768
        %v771 = vmax.f32 %v627, %v770
        %v772 = vadd.f32 %v766, %v757
        %v773 = vadd.f32 %v767, %v759
        %v774 = vadd.f32 %v768, %v761
        %v775 = vmin.f32 %v772, %v773
        %v776 = vmin.f32 %v775, %v774
        %v777 = vmax.f32 %v633, %v776
        %v778 = vadd.f32 %v772, %v757
        %v779 = vadd.f32 %v773, %v759
        %v780 = vadd.f32 %v774, %v761
        %v781 = vmin.f32 %v778, %v779
        %v782 = vmin.f32 %v781, %v780
        %v783 = vmax.f32 %v639, %v782
        %v784 = vadd.f32 %v778, %v757
        %v785 = vadd.f32 %v779, %v759
        %v786 = vadd.f32 %v780, %v761
        %v787 = vmin.f32 %v784, %v785
        %v788 = vmin.f32 %v787, %v786
        %v789 = vmax.f32 %v645, %v788
        %v790 = vadd.f32 %v784, %v757
        %v791 = vadd.f32 %v785, %v759
        %v792 = vadd.f32 %v786, %v761
        %v793 = vmin.f32 %v790, %v791
        %v794 = vmin.f32 %v793, %v792
        %v795 = vmax.f32 %v651, %v794
        %v796 = vadd.f32 %v790, %v757
        %v797 = vadd.f32 %v791, %v759
        %v798 = vadd.f32 %v792, %v761
        %v799 = vmin.f32 %v796, %v797
        %v800 = vmin.f32 %v799, %v798
        %v801 = vmax.f32 %v657, %v800
        %v802 = vadd.f32 %v796, %v757
        %v803 = vadd.f32 %v797, %v759
        %v804 = vadd.f32 %v798, %v761
        %v805 = vmin.f32 %v802, %v803
        %v806 = vmin.f32 %v805, %v804
        %v807 = vmax.f32 %v663, %v806
        %v808 = vadd.f32 %v802, %v757
        %v809 = vadd.f32 %v803, %v759
        %v810 = vadd.f32 %v804, %v761
        %v811 = vmin.f32 %v808, %v809
        %v812 = vmin.f32 %v811, %v810
        %v813 = vmax.f32 %v669, %v812
        %v814 = vadd.f32 %v808, %v757
        %v815 = vadd.f32 %v809, %v759
        %v816 = vadd.f32 %v810, %v761
        %v817 = vmin.f32 %v814, %v815
        %v818 = vmin.f32 %v817, %v816
        %v819 = vmax.f32 %v675, %v818
        %v820 = vadd.f32 %v814, %v757
        %v821 = vadd.f32 %v815, %v759
        %v822 = vadd.f32 %v816, %v761
        %v823 = vmin.f32 %v820, %v821
        %v824 = vmin.f32 %v823, %v822
        %v825 = vmax.f32 %v681, %v824
        %v826 = vadd.f32 %v820, %v757
        %v827 = vadd.f32 %v821, %v759
        %v828 = vadd.f32 %v822, %v761
        %v829 = vmin.f32 %v826, %v827
        %v830 = vmin.f32 %v829, %v828
        %v831 = vmax.f32 %v687, %v830
        %v832 = vadd.f32 %v826, %v757
        %v833 = vadd.f32 %v827, %v759
        %v834 = vadd.f32 %v828, %v761
        %v835 = vmin.f32 %v832, %v833
        %v836 = vmin.f32 %v835, %v834
        %v837 = vmax.f32 %v693, %v836
        %v838 = vadd.f32 %v832, %v757
        %v839 = vadd.f32 %v833, %v759
        %v840 = vadd.f32 %v834, %v761
        %v841 = vmin.f32 %v838, %v839
        %v842 = vmin.f32 %v841, %v840
        %v843 = vmax.f32 %v699, %v842
        %v844 = vadd.f32 %v838, %v757
        %v845 = vadd.f32 %v839, %v759
        %v846 = vadd.f32 %v840, %v761
        %v847 = vmin.f32 %v844, %v845
        %v848 = vmin.f32 %v847, %v846
        %v849 = vmax.f32 %v705, %v848
        %s850 = sadd.s32 %s130, 45
        %s851 = sld [smem:[#allocation2 + %s850]]
        %s852 = sadd.s32 %s130, 46
        %s853 = sld [smem:[#allocation2 + %s852]]
        %s854 = sadd.s32 %s130, 47
        %s855 = sld [smem:[#allocation2 + %s854]]
        %s856 = smul.f32 %s853, %s123
        %s857 = sadd.f32 %s855, %s856
        %s858 = sadd.s32 %s130, 48
        %s859 = sld [smem:[#allocation2 + %s858]]
        %s860 = sadd.s32 %s130, 49
        %s861 = sld [smem:[#allocation2 + %s860]]
        %s862 = sadd.s32 %s130, 50
        %s863 = sld [smem:[#allocation2 + %s862]]
        %s864 = smul.f32 %s861, %s123
        %s865 = sadd.f32 %s863, %s864
        %s866 = sadd.s32 %s130, 51
        %s867 = sld [smem:[#allocation2 + %s866]]
        %s868 = sadd.s32 %s130, 52
        %s869 = sld [smem:[#allocation2 + %s868]]
        %s870 = sadd.s32 %s130, 53
        %s871 = sld [smem:[#allocation2 + %s870]]
        %s872 = smul.f32 %s869, %s123
        %s873 = sadd.f32 %s871, %s872
        %v874 = vstv %s851
        %v875 = vmul.f32 %v874, %v126
        %v876 = vstv %s853
        %v877 = vmul.f32 %v876, %v129
        %v878 = vstv %s857
        %v879 = vadd.f32 %v877, %v878
        %v880 = vadd.f32 %v875, %v879
        %v881 = vstv %s859
        %v882 = vmul.f32 %v881, %v126
        %v883 = vstv %s861
        %v884 = vmul.f32 %v883, %v129
        %v885 = vstv %s865
        %v886 = vadd.f32 %v884, %v885
        %v887 = vadd.f32 %v882, %v886
        %v888 = vstv %s867
        %v889 = vmul.f32 %v888, %v126
        %v890 = vstv %s869
        %v891 = vmul.f32 %v890, %v129
        %v892 = vstv %s873
        %v893 = vadd.f32 %v891, %v892
        %v894 = vadd.f32 %v889, %v893
        %s895 = smul.f32 %s853, 8.0
        %s896 = smul.f32 %s861, 8.0
        %s897 = smul.f32 %s869, 8.0
        %v898 = vmin.f32 %v880, %v887
        %v899 = vmin.f32 %v898, %v894
        %v900 = vmax.f32 %v756, %v899
        %v901 = vstv %s895
        %v902 = vadd.f32 %v880, %v901
        %v903 = vstv %s896
        %v904 = vadd.f32 %v887, %v903
        %v905 = vstv %s897
        %v906 = vadd.f32 %v894, %v905
        %v907 = vmin.f32 %v902, %v904
        %v908 = vmin.f32 %v907, %v906
        %v909 = vmax.f32 %v765, %v908
        %v910 = vadd.f32 %v902, %v901
        %v911 = vadd.f32 %v904, %v903
        %v912 = vadd.f32 %v906, %v905
        %v913 = vmin.f32 %v910, %v911
        %v914 = vmin.f32 %v913, %v912
        %v915 = vmax.f32 %v771, %v914
        %v916 = vadd.f32 %v910, %v901
        %v917 = vadd.f32 %v911, %v903
        %v918 = vadd.f32 %v912, %v905
        %v919 = vmin.f32 %v916, %v917
        %v920 = vmin.f32 %v919, %v918
        %v921 = vmax.f32 %v777, %v920
        %v922 = vadd.f32 %v916, %v901
        %v923 = vadd.f32 %v917, %v903
        %v924 = vadd.f32 %v918, %v905
        %v925 = vmin.f32 %v922, %v923
        %v926 = vmin.f32 %v925, %v924
        %v927 = vmax.f32 %v783, %v926
        %v928 = vadd.f32 %v922, %v901
        %v929 = vadd.f32 %v923, %v903
        %v930 = vadd.f32 %v924, %v905
        %v931 = vmin.f32 %v928, %v929
        %v932 = vmin.f32 %v931, %v930
        %v933 = vmax.f32 %v789, %v932
        %v934 = vadd.f32 %v928, %v901
        %v935 = vadd.f32 %v929, %v903
        %v936 = vadd.f32 %v930, %v905
        %v937 = vmin.f32 %v934, %v935
        %v938 = vmin.f32 %v937, %v936
        %v939 = vmax.f32 %v795, %v938
        %v940 = vadd.f32 %v934, %v901
        %v941 = vadd.f32 %v935, %v903
        %v942 = vadd.f32 %v936, %v905
        %v943 = vmin.f32 %v940, %v941
        %v944 = vmin.f32 %v943, %v942
        %v945 = vmax.f32 %v801, %v944
        %v946 = vadd.f32 %v940, %v901
        %v947 = vadd.f32 %v941, %v903
        %v948 = vadd.f32 %v942, %v905
        %v949 = vmin.f32 %v946, %v947
        %v950 = vmin.f32 %v949, %v948
        %v951 = vmax.f32 %v807, %v950
        %v952 = vadd.f32 %v946, %v901
        %v953 = vadd.f32 %v947, %v903
        %v954 = vadd.f32 %v948, %v905
        %v955 = vmin.f32 %v952, %v953
        %v956 = vmin.f32 %v955, %v954
        %v957 = vmax.f32 %v813, %v956
        %v958 = vadd.f32 %v952, %v901
        %v959 = vadd.f32 %v953, %v903
        %v960 = vadd.f32 %v954, %v905
        %v961 = vmin.f32 %v958, %v959
        %v962 = vmin.f32 %v961, %v960
        %v963 = vmax.f32 %v819, %v962
        %v964 = vadd.f32 %v958, %v901
        %v965 = vadd.f32 %v959, %v903
        %v966 = vadd.f32 %v960, %v905
        %v967 = vmin.f32 %v964, %v965
        %v968 = vmin.f32 %v967, %v966
        %v969 = vmax.f32 %v825, %v968
        %v970 = vadd.f32 %v964, %v901
        %v971 = vadd.f32 %v965, %v903
        %v972 = vadd.f32 %v966, %v905
        %v973 = vmin.f32 %v970, %v971
        %v974 = vmin.f32 %v973, %v972
        %v975 = vmax.f32 %v831, %v974
        %v976 = vadd.f32 %v970, %v901
        %v977 = vadd.f32 %v971, %v903
        %v978 = vadd.f32 %v972, %v905
        %v979 = vmin.f32 %v976, %v977
        %v980 = vmin.f32 %v979, %v978
        %v981 = vmax.f32 %v837, %v980
        %v982 = vadd.f32 %v976, %v901
        %v983 = vadd.f32 %v977, %v903
        %v984 = vadd.f32 %v978, %v905
        %v985 = vmin.f32 %v982, %v983
        %v986 = vmin.f32 %v985, %v984
        %v987 = vmax.f32 %v843, %v986
        %v988 = vadd.f32 %v982, %v901
        %v989 = vadd.f32 %v983, %v903
        %v990 = vadd.f32 %v984, %v905
        %v991 = vmin.f32 %v988, %v989
        %v992 = vmin.f32 %v991, %v990
        %v993 = vmax.f32 %v849, %v992
        %s994 = sadd.s32 %s130, 54
        %s995 = sld [smem:[#allocation2 + %s994]]
        %s996 = sadd.s32 %s130, 55
        %s997 = sld [smem:[#allocation2 + %s996]]
        %s998 = sadd.s32 %s130, 56
        %s999 = sld [smem:[#allocation2 + %s998]]
        %s1000 = smul.f32 %s997, %s123
        %s1001 = sadd.f32 %s999, %s1000
        %s1002 = sadd.s32 %s130, 57
        %s1003 = sld [smem:[#allocation2 + %s1002]]
        %s1004 = sadd.s32 %s130, 58
        %s1005 = sld [smem:[#allocation2 + %s1004]]
        %s1006 = sadd.s32 %s130, 59
        %s1007 = sld [smem:[#allocation2 + %s1006]]
        %s1008 = smul.f32 %s1005, %s123
        %s1009 = sadd.f32 %s1007, %s1008
        %s1010 = sadd.s32 %s130, 60
        %s1011 = sld [smem:[#allocation2 + %s1010]]
        %s1012 = sadd.s32 %s130, 61
        %s1013 = sld [smem:[#allocation2 + %s1012]]
        %s1014 = sadd.s32 %s130, 62
        %s1015 = sld [smem:[#allocation2 + %s1014]]
        %s1016 = smul.f32 %s1013, %s123
        %s1017 = sadd.f32 %s1015, %s1016
        %v1018 = vstv %s995
        %v1019 = vmul.f32 %v1018, %v126
        %v1020 = vstv %s997
        %v1021 = vmul.f32 %v1020, %v129
        %v1022 = vstv %s1001
        %v1023 = vadd.f32 %v1021, %v1022
        %v1024 = vadd.f32 %v1019, %v1023
        %v1025 = vstv %s1003
        %v1026 = vmul.f32 %v1025, %v126
        %v1027 = vstv %s1005
        %v1028 = vmul.f32 %v1027, %v129
        %v1029 = vstv %s1009
        %v1030 = vadd.f32 %v1028, %v1029
        %v1031 = vadd.f32 %v1026, %v1030
        %v1032 = vstv %s1011
        %v1033 = vmul.f32 %v1032, %v126
        %v1034 = vstv %s1013
        %v1035 = vmul.f32 %v1034, %v129
        %v1036 = vstv %s1017
        %v1037 = vadd.f32 %v1035, %v1036
        %v1038 = vadd.f32 %v1033, %v1037
        %s1039 = smul.f32 %s997, 8.0
        %s1040 = smul.f32 %s1005, 8.0
        %s1041 = smul.f32 %s1013, 8.0
        %v1042 = vmin.f32 %v1024, %v1031
        %v1043 = vmin.f32 %v1042, %v1038
        %v1044 = vmax.f32 %v900, %v1043
        %v1045 = vstv %s1039
        %v1046 = vadd.f32 %v1024, %v1045
        %v1047 = vstv %s1040
        %v1048 = vadd.f32 %v1031, %v1047
        %v1049 = vstv %s1041
        %v1050 = vadd.f32 %v1038, %v1049
        %v1051 = vmin.f32 %v1046, %v1048
        %v1052 = vmin.f32 %v1051, %v1050
        %v1053 = vmax.f32 %v909, %v1052
        %v1054 = vadd.f32 %v1046, %v1045
        %v1055 = vadd.f32 %v1048, %v1047
        %v1056 = vadd.f32 %v1050, %v1049
        %v1057 = vmin.f32 %v1054, %v1055
        %v1058 = vmin.f32 %v1057, %v1056
        %v1059 = vmax.f32 %v915, %v1058
        %v1060 = vadd.f32 %v1054, %v1045
        %v1061 = vadd.f32 %v1055, %v1047
        %v1062 = vadd.f32 %v1056, %v1049
        %v1063 = vmin.f32 %v1060, %v1061
        %v1064 = vmin.f32 %v1063, %v1062
        %v1065 = vmax.f32 %v921, %v1064
        %v1066 = vadd.f32 %v1060, %v1045
        %v1067 = vadd.f32 %v1061, %v1047
        %v1068 = vadd.f32 %v1062, %v1049
        %v1069 = vmin.f32 %v1066, %v1067
        %v1070 = vmin.f32 %v1069, %v1068
        %v1071 = vmax.f32 %v927, %v1070
        %v1072 = vadd.f32 %v1066, %v1045
        %v1073 = vadd.f32 %v1067, %v1047
        %v1074 = vadd.f32 %v1068, %v1049
        %v1075 = vmin.f32 %v1072, %v1073
        %v1076 = vmin.f32 %v1075, %v1074
        %v1077 = vmax.f32 %v933, %v1076
        %v1078 = vadd.f32 %v1072, %v1045
        %v1079 = vadd.f32 %v1073, %v1047
        %v1080 = vadd.f32 %v1074, %v1049
        %v1081 = vmin.f32 %v1078, %v1079
        %v1082 = vmin.f32 %v1081, %v1080
        %v1083 = vmax.f32 %v939, %v1082
        %v1084 = vadd.f32 %v1078, %v1045
        %v1085 = vadd.f32 %v1079, %v1047
        %v1086 = vadd.f32 %v1080, %v1049
        %v1087 = vmin.f32 %v1084, %v1085
        %v1088 = vmin.f32 %v1087, %v1086
        %v1089 = vmax.f32 %v945, %v1088
        %v1090 = vadd.f32 %v1084, %v1045
        %v1091 = vadd.f32 %v1085, %v1047
        %v1092 = vadd.f32 %v1086, %v1049
        %v1093 = vmin.f32 %v1090, %v1091
        %v1094 = vmin.f32 %v1093, %v1092
        %v1095 = vmax.f32 %v951, %v1094
        %v1096 = vadd.f32 %v1090, %v1045
        %v1097 = vadd.f32 %v1091, %v1047
        %v1098 = vadd.f32 %v1092, %v1049
        %v1099 = vmin.f32 %v1096, %v1097
        %v1100 = vmin.f32 %v1099, %v1098
        %v1101 = vmax.f32 %v957, %v1100
        %v1102 = vadd.f32 %v1096, %v1045
        %v1103 = vadd.f32 %v1097, %v1047
        %v1104 = vadd.f32 %v1098, %v1049
        %v1105 = vmin.f32 %v1102, %v1103
        %v1106 = vmin.f32 %v1105, %v1104
        %v1107 = vmax.f32 %v963, %v1106
        %v1108 = vadd.f32 %v1102, %v1045
        %v1109 = vadd.f32 %v1103, %v1047
        %v1110 = vadd.f32 %v1104, %v1049
        %v1111 = vmin.f32 %v1108, %v1109
        %v1112 = vmin.f32 %v1111, %v1110
        %v1113 = vmax.f32 %v969, %v1112
        %v1114 = vadd.f32 %v1108, %v1045
        %v1115 = vadd.f32 %v1109, %v1047
        %v1116 = vadd.f32 %v1110, %v1049
        %v1117 = vmin.f32 %v1114, %v1115
        %v1118 = vmin.f32 %v1117, %v1116
        %v1119 = vmax.f32 %v975, %v1118
        %v1120 = vadd.f32 %v1114, %v1045
        %v1121 = vadd.f32 %v1115, %v1047
        %v1122 = vadd.f32 %v1116, %v1049
        %v1123 = vmin.f32 %v1120, %v1121
        %v1124 = vmin.f32 %v1123, %v1122
        %v1125 = vmax.f32 %v981, %v1124
        %v1126 = vadd.f32 %v1120, %v1045
        %v1127 = vadd.f32 %v1121, %v1047
        %v1128 = vadd.f32 %v1122, %v1049
        %v1129 = vmin.f32 %v1126, %v1127
        %v1130 = vmin.f32 %v1129, %v1128
        %v1131 = vmax.f32 %v987, %v1130
        %v1132 = vadd.f32 %v1126, %v1045
        %v1133 = vadd.f32 %v1127, %v1047
        %v1134 = vadd.f32 %v1128, %v1049
        %v1135 = vmin.f32 %v1132, %v1133
        %v1136 = vmin.f32 %v1135, %v1134
        %v1137 = vmax.f32 %v993, %v1136
        %s1138 = sadd.s32 %s130, 63
        %s1139 = sld [smem:[#allocation2 + %s1138]]
        %s1140 = sadd.s32 %s130, 64
        %s1141 = sld [smem:[#allocation2 + %s1140]]
        %s1142 = sadd.s32 %s130, 65
        %s1143 = sld [smem:[#allocation2 + %s1142]]
        %s1144 = smul.f32 %s1141, %s123
        %s1145 = sadd.f32 %s1143, %s1144
        %s1146 = sadd.s32 %s130, 66
        %s1147 = sld [smem:[#allocation2 + %s1146]]
        %s1148 = sadd.s32 %s130, 67
        %s1149 = sld [smem:[#allocation2 + %s1148]]
        %s1150 = sadd.s32 %s130, 68
        %s1151 = sld [smem:[#allocation2 + %s1150]]
        %s1152 = smul.f32 %s1149, %s123
        %s1153 = sadd.f32 %s1151, %s1152
        %s1154 = sadd.s32 %s130, 69
        %s1155 = sld [smem:[#allocation2 + %s1154]]
        %s1156 = sadd.s32 %s130, 70
        %s1157 = sld [smem:[#allocation2 + %s1156]]
        %s1158 = sadd.s32 %s130, 71
        %s1159 = sld [smem:[#allocation2 + %s1158]]
        %s1160 = smul.f32 %s1157, %s123
        %s1161 = sadd.f32 %s1159, %s1160
        %v1162 = vstv %s1139
        %v1163 = vmul.f32 %v1162, %v126
        %v1164 = vstv %s1141
        %v1165 = vmul.f32 %v1164, %v129
        %v1166 = vstv %s1145
        %v1167 = vadd.f32 %v1165, %v1166
        %v1168 = vadd.f32 %v1163, %v1167
        %v1169 = vstv %s1147
        %v1170 = vmul.f32 %v1169, %v126
        %v1171 = vstv %s1149
        %v1172 = vmul.f32 %v1171, %v129
        %v1173 = vstv %s1153
        %v1174 = vadd.f32 %v1172, %v1173
        %v1175 = vadd.f32 %v1170, %v1174
        %v1176 = vstv %s1155
        %v1177 = vmul.f32 %v1176, %v126
        %v1178 = vstv %s1157
        %v1179 = vmul.f32 %v1178, %v129
        %v1180 = vstv %s1161
        %v1181 = vadd.f32 %v1179, %v1180
        %v1182 = vadd.f32 %v1177, %v1181
        %s1183 = smul.f32 %s1141, 8.0
        %s1184 = smul.f32 %s1149, 8.0
        %s1185 = smul.f32 %s1157, 8.0
        %v1186 = vmin.f32 %v1168, %v1175
        %v1187 = vmin.f32 %v1186, %v1182
        %v1188 = vmax.f32 %v1044, %v1187
        %v1189 = vstv %s1183
        %v1190 = vadd.f32 %v1168, %v1189
        %v1191 = vstv %s1184
        %v1192 = vadd.f32 %v1175, %v1191
        %v1193 = vstv %s1185
        %v1194 = vadd.f32 %v1182, %v1193
        %v1195 = vmin.f32 %v1190, %v1192
        %v1196 = vmin.f32 %v1195, %v1194
        %v1197 = vmax.f32 %v1053, %v1196
        %v1198 = vadd.f32 %v1190, %v1189
        %v1199 = vadd.f32 %v1192, %v1191
        %v1200 = vadd.f32 %v1194, %v1193
        %v1201 = vmin.f32 %v1198, %v1199
        %v1202 = vmin.f32 %v1201, %v1200
        %v1203 = vmax.f32 %v1059, %v1202
        %v1204 = vadd.f32 %v1198, %v1189
        %v1205 = vadd.f32 %v1199, %v1191
        %v1206 = vadd.f32 %v1200, %v1193
        %v1207 = vmin.f32 %v1204, %v1205
        %v1208 = vmin.f32 %v1207, %v1206
        %v1209 = vmax.f32 %v1065, %v1208
        %v1210 = vadd.f32 %v1204, %v1189
        %v1211 = vadd.f32 %v1205, %v1191
        %v1212 = vadd.f32 %v1206, %v1193
        %v1213 = vmin.f32 %v1210, %v1211
        %v1214 = vmin.f32 %v1213, %v1212
        %v1215 = vmax.f32 %v1071, %v1214
        %v1216 = vadd.f32 %v1210, %v1189
        %v1217 = vadd.f32 %v1211, %v1191
        %v1218 = vadd.f32 %v1212, %v1193
        %v1219 = vmin.f32 %v1216, %v1217
        %v1220 = vmin.f32 %v1219, %v1218
        %v1221 = vmax.f32 %v1077, %v1220
        %v1222 = vadd.f32 %v1216, %v1189
        %v1223 = vadd.f32 %v1217, %v1191
        %v1224 = vadd.f32 %v1218, %v1193
        %v1225 = vmin.f32 %v1222, %v1223
        %v1226 = vmin.f32 %v1225, %v1224
        %v1227 = vmax.f32 %v1083, %v1226
        %v1228 = vadd.f32 %v1222, %v1189
        %v1229 = vadd.f32 %v1223, %v1191
        %v1230 = vadd.f32 %v1224, %v1193
        %v1231 = vmin.f32 %v1228, %v1229
        %v1232 = vmin.f32 %v1231, %v1230
        %v1233 = vmax.f32 %v1089, %v1232
        %v1234 = vadd.f32 %v1228, %v1189
        %v1235 = vadd.f32 %v1229, %v1191
        %v1236 = vadd.f32 %v1230, %v1193
        %v1237 = vmin.f32 %v1234, %v1235
        %v1238 = vmin.f32 %v1237, %v1236
        %v1239 = vmax.f32 %v1095, %v1238
        %v1240 = vadd.f32 %v1234, %v1189
        %v1241 = vadd.f32 %v1235, %v1191
        %v1242 = vadd.f32 %v1236, %v1193
        %v1243 = vmin.f32 %v1240, %v1241
        %v1244 = vmin.f32 %v1243, %v1242
        %v1245 = vmax.f32 %v1101, %v1244
        %v1246 = vadd.f32 %v1240, %v1189
        %v1247 = vadd.f32 %v1241, %v1191
        %v1248 = vadd.f32 %v1242, %v1193
        %v1249 = vmin.f32 %v1246, %v1247
        %v1250 = vmin.f32 %v1249, %v1248
        %v1251 = vmax.f32 %v1107, %v1250
        %v1252 = vadd.f32 %v1246, %v1189
        %v1253 = vadd.f32 %v1247, %v1191
        %v1254 = vadd.f32 %v1248, %v1193
        %v1255 = vmin.f32 %v1252, %v1253
        %v1256 = vmin.f32 %v1255, %v1254
        %v1257 = vmax.f32 %v1113, %v1256
        %v1258 = vadd.f32 %v1252, %v1189
        %v1259 = vadd.f32 %v1253, %v1191
        %v1260 = vadd.f32 %v1254, %v1193
        %v1261 = vmin.f32 %v1258, %v1259
        %v1262 = vmin.f32 %v1261, %v1260
        %v1263 = vmax.f32 %v1119, %v1262
        %v1264 = vadd.f32 %v1258, %v1189
        %v1265 = vadd.f32 %v1259, %v1191
        %v1266 = vadd.f32 %v1260, %v1193
        %v1267 = vmin.f32 %v1264, %v1265
        %v1268 = vmin.f32 %v1267, %v1266
        %v1269 = vmax.f32 %v1125, %v1268
        %v1270 = vadd.f32 %v1264, %v1189
        %v1271 = vadd.f32 %v1265, %v1191
        %v1272 = vadd.f32 %v1266, %v1193
        %v1273 = vmin.f32 %v1270, %v1271
        %v1274 = vmin.f32 %v1273, %v1272
        %v1275 = vmax.f32 %v1131, %v1274
        %v1276 = vadd.f32 %v1270, %v1189
        %v1277 = vadd.f32 %v1271, %v1191
        %v1278 = vadd.f32 %v1272, %v1193
        %v1279 = vmin.f32 %v1276, %v1277
        %v1280 = vmin.f32 %v1279, %v1278
        %v1281 = vmax.f32 %v1137, %v1280
        %s1282 = sadd.s32 %s130, 72
        %s1283 = sld [smem:[#allocation2 + %s1282]]
        %s1284 = sadd.s32 %s130, 73
        %s1285 = sld [smem:[#allocation2 + %s1284]]
        %s1286 = sadd.s32 %s130, 74
        %s1287 = sld [smem:[#allocation2 + %s1286]]
        %s1288 = smul.f32 %s1285, %s123
        %s1289 = sadd.f32 %s1287, %s1288
        %s1290 = sadd.s32 %s130, 75
        %s1291 = sld [smem:[#allocation2 + %s1290]]
        %s1292 = sadd.s32 %s130, 76
        %s1293 = sld [smem:[#allocation2 + %s1292]]
        %s1294 = sadd.s32 %s130, 77
        %s1295 = sld [smem:[#allocation2 + %s1294]]
        %s1296 = smul.f32 %s1293, %s123
        %s1297 = sadd.f32 %s1295, %s1296
        %s1298 = sadd.s32 %s130, 78
        %s1299 = sld [smem:[#allocation2 + %s1298]]
        %s1300 = sadd.s32 %s130, 79
        %s1301 = sld [smem:[#allocation2 + %s1300]]
        %s1302 = sadd.s32 %s130, 80
        %s1303 = sld [smem:[#allocation2 + %s1302]]
        %s1304 = smul.f32 %s1301, %s123
        %s1305 = sadd.f32 %s1303, %s1304
        %v1306 = vstv %s1283
        %v1307 = vmul.f32 %v1306, %v126
        %v1308 = vstv %s1285
        %v1309 = vmul.f32 %v1308, %v129
        %v1310 = vstv %s1289
        %v1311 = vadd.f32 %v1309, %v1310
        %v1312 = vadd.f32 %v1307, %v1311
        %v1313 = vstv %s1291
        %v1314 = vmul.f32 %v1313, %v126
        %v1315 = vstv %s1293
        %v1316 = vmul.f32 %v1315, %v129
        %v1317 = vstv %s1297
        %v1318 = vadd.f32 %v1316, %v1317
        %v1319 = vadd.f32 %v1314, %v1318
        %v1320 = vstv %s1299
        %v1321 = vmul.f32 %v1320, %v126
        %v1322 = vstv %s1301
        %v1323 = vmul.f32 %v1322, %v129
        %v1324 = vstv %s1305
        %v1325 = vadd.f32 %v1323, %v1324
        %v1326 = vadd.f32 %v1321, %v1325
        %s1327 = smul.f32 %s1285, 8.0
        %s1328 = smul.f32 %s1293, 8.0
        %s1329 = smul.f32 %s1301, 8.0
        %v1330 = vmin.f32 %v1312, %v1319
        %v1331 = vmin.f32 %v1330, %v1326
        %v1332 = vmax.f32 %v1188, %v1331
        %v1333 = vstv %s1327
        %v1334 = vadd.f32 %v1312, %v1333
        %v1335 = vstv %s1328
        %v1336 = vadd.f32 %v1319, %v1335
        %v1337 = vstv %s1329
        %v1338 = vadd.f32 %v1326, %v1337
        %v1339 = vmin.f32 %v1334, %v1336
        %v1340 = vmin.f32 %v1339, %v1338
        %v1341 = vmax.f32 %v1197, %v1340
        %v1342 = vadd.f32 %v1334, %v1333
        %v1343 = vadd.f32 %v1336, %v1335
        %v1344 = vadd.f32 %v1338, %v1337
        %v1345 = vmin.f32 %v1342, %v1343
        %v1346 = vmin.f32 %v1345, %v1344
        %v1347 = vmax.f32 %v1203, %v1346
        %v1348 = vadd.f32 %v1342, %v1333
        %v1349 = vadd.f32 %v1343, %v1335
        %v1350 = vadd.f32 %v1344, %v1337
        %v1351 = vmin.f32 %v1348, %v1349
        %v1352 = vmin.f32 %v1351, %v1350
        %v1353 = vmax.f32 %v1209, %v1352
        %v1354 = vadd.f32 %v1348, %v1333
        %v1355 = vadd.f32 %v1349, %v1335
        %v1356 = vadd.f32 %v1350, %v1337
        %v1357 = vmin.f32 %v1354, %v1355
        %v1358 = vmin.f32 %v1357, %v1356
        %v1359 = vmax.f32 %v1215, %v1358
        %v1360 = vadd.f32 %v1354, %v1333
        %v1361 = vadd.f32 %v1355, %v1335
        %v1362 = vadd.f32 %v1356, %v1337
        %v1363 = vmin.f32 %v1360, %v1361
        %v1364 = vmin.f32 %v1363, %v1362
        %v1365 = vmax.f32 %v1221, %v1364
        %v1366 = vadd.f32 %v1360, %v1333
        %v1367 = vadd.f32 %v1361, %v1335
        %v1368 = vadd.f32 %v1362, %v1337
        %v1369 = vmin.f32 %v1366, %v1367
        %v1370 = vmin.f32 %v1369, %v1368
        %v1371 = vmax.f32 %v1227, %v1370
        %v1372 = vadd.f32 %v1366, %v1333
        %v1373 = vadd.f32 %v1367, %v1335
        %v1374 = vadd.f32 %v1368, %v1337
        %v1375 = vmin.f32 %v1372, %v1373
        %v1376 = vmin.f32 %v1375, %v1374
        %v1377 = vmax.f32 %v1233, %v1376
        %v1378 = vadd.f32 %v1372, %v1333
        %v1379 = vadd.f32 %v1373, %v1335
        %v1380 = vadd.f32 %v1374, %v1337
        %v1381 = vmin.f32 %v1378, %v1379
        %v1382 = vmin.f32 %v1381, %v1380
        %v1383 = vmax.f32 %v1239, %v1382
        %v1384 = vadd.f32 %v1378, %v1333
        %v1385 = vadd.f32 %v1379, %v1335
        %v1386 = vadd.f32 %v1380, %v1337
        %v1387 = vmin.f32 %v1384, %v1385
        %v1388 = vmin.f32 %v1387, %v1386
        %v1389 = vmax.f32 %v1245, %v1388
        %v1390 = vadd.f32 %v1384, %v1333
        %v1391 = vadd.f32 %v1385, %v1335
        %v1392 = vadd.f32 %v1386, %v1337
        %v1393 = vmin.f32 %v1390, %v1391
        %v1394 = vmin.f32 %v1393, %v1392
        %v1395 = vmax.f32 %v1251, %v1394
        %v1396 = vadd.f32 %v1390, %v1333
        %v1397 = vadd.f32 %v1391, %v1335
        %v1398 = vadd.f32 %v1392, %v1337
        %v1399 = vmin.f32 %v1396, %v1397
        %v1400 = vmin.f32 %v1399, %v1398
        %v1401 = vmax.f32 %v1257, %v1400
        %v1402 = vadd.f32 %v1396, %v1333
        %v1403 = vadd.f32 %v1397, %v1335
        %v1404 = vadd.f32 %v1398, %v1337
        %v1405 = vmin.f32 %v1402, %v1403
        %v1406 = vmin.f32 %v1405, %v1404
        %v1407 = vmax.f32 %v1263, %v1406
        %v1408 = vadd.f32 %v1402, %v1333
        %v1409 = vadd.f32 %v1403, %v1335
        %v1410 = vadd.f32 %v1404, %v1337
        %v1411 = vmin.f32 %v1408, %v1409
        %v1412 = vmin.f32 %v1411, %v1410
        %v1413 = vmax.f32 %v1269, %v1412
        %v1414 = vadd.f32 %v1408, %v1333
        %v1415 = vadd.f32 %v1409, %v1335
        %v1416 = vadd.f32 %v1410, %v1337
        %v1417 = vmin.f32 %v1414, %v1415
        %v1418 = vmin.f32 %v1417, %v1416
        %v1419 = vmax.f32 %v1275, %v1418
        %v1420 = vadd.f32 %v1414, %v1333
        %v1421 = vadd.f32 %v1415, %v1335
        %v1422 = vadd.f32 %v1416, %v1337
        %v1423 = vmin.f32 %v1420, %v1421
        %v1424 = vmin.f32 %v1423, %v1422
        %v1425 = vmax.f32 %v1281, %v1424
        %s1426 = sadd.s32 %s130, 81
        %s1427 = sld [smem:[#allocation2 + %s1426]]
        %s1428 = sadd.s32 %s130, 82
        %s1429 = sld [smem:[#allocation2 + %s1428]]
        %s1430 = sadd.s32 %s130, 83
        %s1431 = sld [smem:[#allocation2 + %s1430]]
        %s1432 = smul.f32 %s1429, %s123
        %s1433 = sadd.f32 %s1431, %s1432
        %s1434 = sadd.s32 %s130, 84
        %s1435 = sld [smem:[#allocation2 + %s1434]]
        %s1436 = sadd.s32 %s130, 85
        %s1437 = sld [smem:[#allocation2 + %s1436]]
        %s1438 = sadd.s32 %s130, 86
        %s1439 = sld [smem:[#allocation2 + %s1438]]
        %s1440 = smul.f32 %s1437, %s123
        %s1441 = sadd.f32 %s1439, %s1440
        %s1442 = sadd.s32 %s130, 87
        %s1443 = sld [smem:[#allocation2 + %s1442]]
        %s1444 = sadd.s32 %s130, 88
        %s1445 = sld [smem:[#allocation2 + %s1444]]
        %s1446 = sadd.s32 %s130, 89
        %s1447 = sld [smem:[#allocation2 + %s1446]]
        %s1448 = smul.f32 %s1445, %s123
        %s1449 = sadd.f32 %s1447, %s1448
        %v1450 = vstv %s1427
        %v1451 = vmul.f32 %v1450, %v126
        %v1452 = vstv %s1429
        %v1453 = vmul.f32 %v1452, %v129
        %v1454 = vstv %s1433
        %v1455 = vadd.f32 %v1453, %v1454
        %v1456 = vadd.f32 %v1451, %v1455
        %v1457 = vstv %s1435
        %v1458 = vmul.f32 %v1457, %v126
        %v1459 = vstv %s1437
        %v1460 = vmul.f32 %v1459, %v129
        %v1461 = vstv %s1441
        %v1462 = vadd.f32 %v1460, %v1461
        %v1463 = vadd.f32 %v1458, %v1462
        %v1464 = vstv %s1443
        %v1465 = vmul.f32 %v1464, %v126
        %v1466 = vstv %s1445
        %v1467 = vmul.f32 %v1466, %v129
        %v1468 = vstv %s1449
        %v1469 = vadd.f32 %v1467, %v1468
        %v1470 = vadd.f32 %v1465, %v1469
        %s1471 = smul.f32 %s1429, 8.0
        %s1472 = smul.f32 %s1437, 8.0
        %s1473 = smul.f32 %s1445, 8.0
        %v1474 = vmin.f32 %v1456, %v1463
        %v1475 = vmin.f32 %v1474, %v1470
        %v1476 = vmax.f32 %v1332, %v1475
        %v1477 = vstv %s1471
        %v1478 = vadd.f32 %v1456, %v1477
        %v1479 = vstv %s1472
        %v1480 = vadd.f32 %v1463, %v1479
        %v1481 = vstv %s1473
        %v1482 = vadd.f32 %v1470, %v1481
        %v1483 = vmin.f32 %v1478, %v1480
        %v1484 = vmin.f32 %v1483, %v1482
        %v1485 = vmax.f32 %v1341, %v1484
        %v1486 = vadd.f32 %v1478, %v1477
        %v1487 = vadd.f32 %v1480, %v1479
        %v1488 = vadd.f32 %v1482, %v1481
        %v1489 = vmin.f32 %v1486, %v1487
        %v1490 = vmin.f32 %v1489, %v1488
        %v1491 = vmax.f32 %v1347, %v1490
        %v1492 = vadd.f32 %v1486, %v1477
        %v1493 = vadd.f32 %v1487, %v1479
        %v1494 = vadd.f32 %v1488, %v1481
        %v1495 = vmin.f32 %v1492, %v1493
        %v1496 = vmin.f32 %v1495, %v1494
        %v1497 = vmax.f32 %v1353, %v1496
        %v1498 = vadd.f32 %v1492, %v1477
        %v1499 = vadd.f32 %v1493, %v1479
        %v1500 = vadd.f32 %v1494, %v1481
        %v1501 = vmin.f32 %v1498, %v1499
        %v1502 = vmin.f32 %v1501, %v1500
        %v1503 = vmax.f32 %v1359, %v1502
        %v1504 = vadd.f32 %v1498, %v1477
        %v1505 = vadd.f32 %v1499, %v1479
        %v1506 = vadd.f32 %v1500, %v1481
        %v1507 = vmin.f32 %v1504, %v1505
        %v1508 = vmin.f32 %v1507, %v1506
        %v1509 = vmax.f32 %v1365, %v1508
        %v1510 = vadd.f32 %v1504, %v1477
        %v1511 = vadd.f32 %v1505, %v1479
        %v1512 = vadd.f32 %v1506, %v1481
        %v1513 = vmin.f32 %v1510, %v1511
        %v1514 = vmin.f32 %v1513, %v1512
        %v1515 = vmax.f32 %v1371, %v1514
        %v1516 = vadd.f32 %v1510, %v1477
        %v1517 = vadd.f32 %v1511, %v1479
        %v1518 = vadd.f32 %v1512, %v1481
        %v1519 = vmin.f32 %v1516, %v1517
        %v1520 = vmin.f32 %v1519, %v1518
        %v1521 = vmax.f32 %v1377, %v1520
        %v1522 = vadd.f32 %v1516, %v1477
        %v1523 = vadd.f32 %v1517, %v1479
        %v1524 = vadd.f32 %v1518, %v1481
        %v1525 = vmin.f32 %v1522, %v1523
        %v1526 = vmin.f32 %v1525, %v1524
        %v1527 = vmax.f32 %v1383, %v1526
        %v1528 = vadd.f32 %v1522, %v1477
        %v1529 = vadd.f32 %v1523, %v1479
        %v1530 = vadd.f32 %v1524, %v1481
        %v1531 = vmin.f32 %v1528, %v1529
        %v1532 = vmin.f32 %v1531, %v1530
        %v1533 = vmax.f32 %v1389, %v1532
        %v1534 = vadd.f32 %v1528, %v1477
        %v1535 = vadd.f32 %v1529, %v1479
        %v1536 = vadd.f32 %v1530, %v1481
        %v1537 = vmin.f32 %v1534, %v1535
        %v1538 = vmin.f32 %v1537, %v1536
        %v1539 = vmax.f32 %v1395, %v1538
        %v1540 = vadd.f32 %v1534, %v1477
        %v1541 = vadd.f32 %v1535, %v1479
        %v1542 = vadd.f32 %v1536, %v1481
        %v1543 = vmin.f32 %v1540, %v1541
        %v1544 = vmin.f32 %v1543, %v1542
        %v1545 = vmax.f32 %v1401, %v1544
        %v1546 = vadd.f32 %v1540, %v1477
        %v1547 = vadd.f32 %v1541, %v1479
        %v1548 = vadd.f32 %v1542, %v1481
        %v1549 = vmin.f32 %v1546, %v1547
        %v1550 = vmin.f32 %v1549, %v1548
        %v1551 = vmax.f32 %v1407, %v1550
        %v1552 = vadd.f32 %v1546, %v1477
        %v1553 = vadd.f32 %v1547, %v1479
        %v1554 = vadd.f32 %v1548, %v1481
        %v1555 = vmin.f32 %v1552, %v1553
        %v1556 = vmin.f32 %v1555, %v1554
        %v1557 = vmax.f32 %v1413, %v1556
        %v1558 = vadd.f32 %v1552, %v1477
        %v1559 = vadd.f32 %v1553, %v1479
        %v1560 = vadd.f32 %v1554, %v1481
        %v1561 = vmin.f32 %v1558, %v1559
        %v1562 = vmin.f32 %v1561, %v1560
        %v1563 = vmax.f32 %v1419, %v1562
        %v1564 = vadd.f32 %v1558, %v1477
        %v1565 = vadd.f32 %v1559, %v1479
        %v1566 = vadd.f32 %v1560, %v1481
        %v1567 = vmin.f32 %v1564, %v1565
        %v1568 = vmin.f32 %v1567, %v1566
        %v1569 = vmax.f32 %v1425, %v1568
        %s1570 = sadd.s32 %s130, 90
        %s1571 = sld [smem:[#allocation2 + %s1570]]
        %s1572 = sadd.s32 %s130, 91
        %s1573 = sld [smem:[#allocation2 + %s1572]]
        %s1574 = sadd.s32 %s130, 92
        %s1575 = sld [smem:[#allocation2 + %s1574]]
        %s1576 = smul.f32 %s1573, %s123
        %s1577 = sadd.f32 %s1575, %s1576
        %s1578 = sadd.s32 %s130, 93
        %s1579 = sld [smem:[#allocation2 + %s1578]]
        %s1580 = sadd.s32 %s130, 94
        %s1581 = sld [smem:[#allocation2 + %s1580]]
        %s1582 = sadd.s32 %s130, 95
        %s1583 = sld [smem:[#allocation2 + %s1582]]
        %s1584 = smul.f32 %s1581, %s123
        %s1585 = sadd.f32 %s1583, %s1584
        %s1586 = sadd.s32 %s130, 96
        %s1587 = sld [smem:[#allocation2 + %s1586]]
        %s1588 = sadd.s32 %s130, 97
        %s1589 = sld [smem:[#allocation2 + %s1588]]
        %s1590 = sadd.s32 %s130, 98
        %s1591 = sld [smem:[#allocation2 + %s1590]]
        %s1592 = smul.f32 %s1589, %s123
        %s1593 = sadd.f32 %s1591, %s1592
        %v1594 = vstv %s1571
        %v1595 = vmul.f32 %v1594, %v126
        %v1596 = vstv %s1573
        %v1597 = vmul.f32 %v1596, %v129
        %v1598 = vstv %s1577
        %v1599 = vadd.f32 %v1597, %v1598
        %v1600 = vadd.f32 %v1595, %v1599
        %v1601 = vstv %s1579
        %v1602 = vmul.f32 %v1601, %v126
        %v1603 = vstv %s1581
        %v1604 = vmul.f32 %v1603, %v129
        %v1605 = vstv %s1585
        %v1606 = vadd.f32 %v1604, %v1605
        %v1607 = vadd.f32 %v1602, %v1606
        %v1608 = vstv %s1587
        %v1609 = vmul.f32 %v1608, %v126
        %v1610 = vstv %s1589
        %v1611 = vmul.f32 %v1610, %v129
        %v1612 = vstv %s1593
        %v1613 = vadd.f32 %v1611, %v1612
        %v1614 = vadd.f32 %v1609, %v1613
        %s1615 = smul.f32 %s1573, 8.0
        %s1616 = smul.f32 %s1581, 8.0
        %s1617 = smul.f32 %s1589, 8.0
        %v1618 = vmin.f32 %v1600, %v1607
        %v1619 = vmin.f32 %v1618, %v1614
        %v1620 = vmax.f32 %v1476, %v1619
        %v1621 = vstv %s1615
        %v1622 = vadd.f32 %v1600, %v1621
        %v1623 = vstv %s1616
        %v1624 = vadd.f32 %v1607, %v1623
        %v1625 = vstv %s1617
        %v1626 = vadd.f32 %v1614, %v1625
        %v1627 = vmin.f32 %v1622, %v1624
        %v1628 = vmin.f32 %v1627, %v1626
        %v1629 = vmax.f32 %v1485, %v1628
        %v1630 = vadd.f32 %v1622, %v1621
        %v1631 = vadd.f32 %v1624, %v1623
        %v1632 = vadd.f32 %v1626, %v1625
        %v1633 = vmin.f32 %v1630, %v1631
        %v1634 = vmin.f32 %v1633, %v1632
        %v1635 = vmax.f32 %v1491, %v1634
        %v1636 = vadd.f32 %v1630, %v1621
        %v1637 = vadd.f32 %v1631, %v1623
        %v1638 = vadd.f32 %v1632, %v1625
        %v1639 = vmin.f32 %v1636, %v1637
        %v1640 = vmin.f32 %v1639, %v1638
        %v1641 = vmax.f32 %v1497, %v1640
        %v1642 = vadd.f32 %v1636, %v1621
        %v1643 = vadd.f32 %v1637, %v1623
        %v1644 = vadd.f32 %v1638, %v1625
        %v1645 = vmin.f32 %v1642, %v1643
        %v1646 = vmin.f32 %v1645, %v1644
        %v1647 = vmax.f32 %v1503, %v1646
        %v1648 = vadd.f32 %v1642, %v1621
        %v1649 = vadd.f32 %v1643, %v1623
        %v1650 = vadd.f32 %v1644, %v1625
        %v1651 = vmin.f32 %v1648, %v1649
        %v1652 = vmin.f32 %v1651, %v1650
        %v1653 = vmax.f32 %v1509, %v1652
        %v1654 = vadd.f32 %v1648, %v1621
        %v1655 = vadd.f32 %v1649, %v1623
        %v1656 = vadd.f32 %v1650, %v1625
        %v1657 = vmin.f32 %v1654, %v1655
        %v1658 = vmin.f32 %v1657, %v1656
        %v1659 = vmax.f32 %v1515, %v1658
        %v1660 = vadd.f32 %v1654, %v1621
        %v1661 = vadd.f32 %v1655, %v1623
        %v1662 = vadd.f32 %v1656, %v1625
        %v1663 = vmin.f32 %v1660, %v1661
        %v1664 = vmin.f32 %v1663, %v1662
        %v1665 = vmax.f32 %v1521, %v1664
        %v1666 = vadd.f32 %v1660, %v1621
        %v1667 = vadd.f32 %v1661, %v1623
        %v1668 = vadd.f32 %v1662, %v1625
        %v1669 = vmin.f32 %v1666, %v1667
        %v1670 = vmin.f32 %v1669, %v1668
        %v1671 = vmax.f32 %v1527, %v1670
        %v1672 = vadd.f32 %v1666, %v1621
        %v1673 = vadd.f32 %v1667, %v1623
        %v1674 = vadd.f32 %v1668, %v1625
        %v1675 = vmin.f32 %v1672, %v1673
        %v1676 = vmin.f32 %v1675, %v1674
        %v1677 = vmax.f32 %v1533, %v1676
        %v1678 = vadd.f32 %v1672, %v1621
        %v1679 = vadd.f32 %v1673, %v1623
        %v1680 = vadd.f32 %v1674, %v1625
        %v1681 = vmin.f32 %v1678, %v1679
        %v1682 = vmin.f32 %v1681, %v1680
        %v1683 = vmax.f32 %v1539, %v1682
        %v1684 = vadd.f32 %v1678, %v1621
        %v1685 = vadd.f32 %v1679, %v1623
        %v1686 = vadd.f32 %v1680, %v1625
        %v1687 = vmin.f32 %v1684, %v1685
        %v1688 = vmin.f32 %v1687, %v1686
        %v1689 = vmax.f32 %v1545, %v1688
        %v1690 = vadd.f32 %v1684, %v1621
        %v1691 = vadd.f32 %v1685, %v1623
        %v1692 = vadd.f32 %v1686, %v1625
        %v1693 = vmin.f32 %v1690, %v1691
        %v1694 = vmin.f32 %v1693, %v1692
        %v1695 = vmax.f32 %v1551, %v1694
        %v1696 = vadd.f32 %v1690, %v1621
        %v1697 = vadd.f32 %v1691, %v1623
        %v1698 = vadd.f32 %v1692, %v1625
        %v1699 = vmin.f32 %v1696, %v1697
        %v1700 = vmin.f32 %v1699, %v1698
        %v1701 = vmax.f32 %v1557, %v1700
        %v1702 = vadd.f32 %v1696, %v1621
        %v1703 = vadd.f32 %v1697, %v1623
        %v1704 = vadd.f32 %v1698, %v1625
        %v1705 = vmin.f32 %v1702, %v1703
        %v1706 = vmin.f32 %v1705, %v1704
        %v1707 = vmax.f32 %v1563, %v1706
        %v1708 = vadd.f32 %v1702, %v1621
        %v1709 = vadd.f32 %v1703, %v1623
        %v1710 = vadd.f32 %v1704, %v1625
        %v1711 = vmin.f32 %v1708, %v1709
        %v1712 = vmin.f32 %v1711, %v1710
        %v1713 = vmax.f32 %v1569, %v1712
        %s1714 = sadd.s32 %s130, 99
        %s1715 = sld [smem:[#allocation2 + %s1714]]
        %s1716 = sadd.s32 %s130, 100
        %s1717 = sld [smem:[#allocation2 + %s1716]]
        %s1718 = sadd.s32 %s130, 101
        %s1719 = sld [smem:[#allocation2 + %s1718]]
        %s1720 = smul.f32 %s1717, %s123
        %s1721 = sadd.f32 %s1719, %s1720
        %s1722 = sadd.s32 %s130, 102
        %s1723 = sld [smem:[#allocation2 + %s1722]]
        %s1724 = sadd.s32 %s130, 103
        %s1725 = sld [smem:[#allocation2 + %s1724]]
        %s1726 = sadd.s32 %s130, 104
        %s1727 = sld [smem:[#allocation2 + %s1726]]
        %s1728 = smul.f32 %s1725, %s123
        %s1729 = sadd.f32 %s1727, %s1728
        %s1730 = sadd.s32 %s130, 105
        %s1731 = sld [smem:[#allocation2 + %s1730]]
        %s1732 = sadd.s32 %s130, 106
        %s1733 = sld [smem:[#allocation2 + %s1732]]
        %s1734 = sadd.s32 %s130, 107
        %s1735 = sld [smem:[#allocation2 + %s1734]]
        %s1736 = smul.f32 %s1733, %s123
        %s1737 = sadd.f32 %s1735, %s1736
        %v1738 = vstv %s1715
        %v1739 = vmul.f32 %v1738, %v126
        %v1740 = vstv %s1717
        %v1741 = vmul.f32 %v1740, %v129
        %v1742 = vstv %s1721
        %v1743 = vadd.f32 %v1741, %v1742
        %v1744 = vadd.f32 %v1739, %v1743
        %v1745 = vstv %s1723
        %v1746 = vmul.f32 %v1745, %v126
        %v1747 = vstv %s1725
        %v1748 = vmul.f32 %v1747, %v129
        %v1749 = vstv %s1729
        %v1750 = vadd.f32 %v1748, %v1749
        %v1751 = vadd.f32 %v1746, %v1750
        %v1752 = vstv %s1731
        %v1753 = vmul.f32 %v1752, %v126
        %v1754 = vstv %s1733
        %v1755 = vmul.f32 %v1754, %v129
        %v1756 = vstv %s1737
        %v1757 = vadd.f32 %v1755, %v1756
        %v1758 = vadd.f32 %v1753, %v1757
        %s1759 = smul.f32 %s1717, 8.0
        %s1760 = smul.f32 %s1725, 8.0
        %s1761 = smul.f32 %s1733, 8.0
        %v1762 = vmin.f32 %v1744, %v1751
        %v1763 = vmin.f32 %v1762, %v1758
        %v1764 = vmax.f32 %v1620, %v1763
        %v1765 = vstv %s1759
        %v1766 = vadd.f32 %v1744, %v1765
        %v1767 = vstv %s1760
        %v1768 = vadd.f32 %v1751, %v1767
        %v1769 = vstv %s1761
        %v1770 = vadd.f32 %v1758, %v1769
        %v1771 = vmin.f32 %v1766, %v1768
        %v1772 = vmin.f32 %v1771, %v1770
        %v1773 = vmax.f32 %v1629, %v1772
        %v1774 = vadd.f32 %v1766, %v1765
        %v1775 = vadd.f32 %v1768, %v1767
        %v1776 = vadd.f32 %v1770, %v1769
        %v1777 = vmin.f32 %v1774, %v1775
        %v1778 = vmin.f32 %v1777, %v1776
        %v1779 = vmax.f32 %v1635, %v1778
        %v1780 = vadd.f32 %v1774, %v1765
        %v1781 = vadd.f32 %v1775, %v1767
        %v1782 = vadd.f32 %v1776, %v1769
        %v1783 = vmin.f32 %v1780, %v1781
        %v1784 = vmin.f32 %v1783, %v1782
        %v1785 = vmax.f32 %v1641, %v1784
        %v1786 = vadd.f32 %v1780, %v1765
        %v1787 = vadd.f32 %v1781, %v1767
        %v1788 = vadd.f32 %v1782, %v1769
        %v1789 = vmin.f32 %v1786, %v1787
        %v1790 = vmin.f32 %v1789, %v1788
        %v1791 = vmax.f32 %v1647, %v1790
        %v1792 = vadd.f32 %v1786, %v1765
        %v1793 = vadd.f32 %v1787, %v1767
        %v1794 = vadd.f32 %v1788, %v1769
        %v1795 = vmin.f32 %v1792, %v1793
        %v1796 = vmin.f32 %v1795, %v1794
        %v1797 = vmax.f32 %v1653, %v1796
        %v1798 = vadd.f32 %v1792, %v1765
        %v1799 = vadd.f32 %v1793, %v1767
        %v1800 = vadd.f32 %v1794, %v1769
        %v1801 = vmin.f32 %v1798, %v1799
        %v1802 = vmin.f32 %v1801, %v1800
        %v1803 = vmax.f32 %v1659, %v1802
        %v1804 = vadd.f32 %v1798, %v1765
        %v1805 = vadd.f32 %v1799, %v1767
        %v1806 = vadd.f32 %v1800, %v1769
        %v1807 = vmin.f32 %v1804, %v1805
        %v1808 = vmin.f32 %v1807, %v1806
        %v1809 = vmax.f32 %v1665, %v1808
        %v1810 = vadd.f32 %v1804, %v1765
        %v1811 = vadd.f32 %v1805, %v1767
        %v1812 = vadd.f32 %v1806, %v1769
        %v1813 = vmin.f32 %v1810, %v1811
        %v1814 = vmin.f32 %v1813, %v1812
        %v1815 = vmax.f32 %v1671, %v1814
        %v1816 = vadd.f32 %v1810, %v1765
        %v1817 = vadd.f32 %v1811, %v1767
        %v1818 = vadd.f32 %v1812, %v1769
        %v1819 = vmin.f32 %v1816, %v1817
        %v1820 = vmin.f32 %v1819, %v1818
        %v1821 = vmax.f32 %v1677, %v1820
        %v1822 = vadd.f32 %v1816, %v1765
        %v1823 = vadd.f32 %v1817, %v1767
        %v1824 = vadd.f32 %v1818, %v1769
        %v1825 = vmin.f32 %v1822, %v1823
        %v1826 = vmin.f32 %v1825, %v1824
        %v1827 = vmax.f32 %v1683, %v1826
        %v1828 = vadd.f32 %v1822, %v1765
        %v1829 = vadd.f32 %v1823, %v1767
        %v1830 = vadd.f32 %v1824, %v1769
        %v1831 = vmin.f32 %v1828, %v1829
        %v1832 = vmin.f32 %v1831, %v1830
        %v1833 = vmax.f32 %v1689, %v1832
        %v1834 = vadd.f32 %v1828, %v1765
        %v1835 = vadd.f32 %v1829, %v1767
        %v1836 = vadd.f32 %v1830, %v1769
        %v1837 = vmin.f32 %v1834, %v1835
        %v1838 = vmin.f32 %v1837, %v1836
        %v1839 = vmax.f32 %v1695, %v1838
        %v1840 = vadd.f32 %v1834, %v1765
        %v1841 = vadd.f32 %v1835, %v1767
        %v1842 = vadd.f32 %v1836, %v1769
        %v1843 = vmin.f32 %v1840, %v1841
        %v1844 = vmin.f32 %v1843, %v1842
        %v1845 = vmax.f32 %v1701, %v1844
        %v1846 = vadd.f32 %v1840, %v1765
        %v1847 = vadd.f32 %v1841, %v1767
        %v1848 = vadd.f32 %v1842, %v1769
        %v1849 = vmin.f32 %v1846, %v1847
        %v1850 = vmin.f32 %v1849, %v1848
        %v1851 = vmax.f32 %v1707, %v1850
        %v1852 = vadd.f32 %v1846, %v1765
        %v1853 = vadd.f32 %v1847, %v1767
        %v1854 = vadd.f32 %v1848, %v1769
        %v1855 = vmin.f32 %v1852, %v1853
        %v1856 = vmin.f32 %v1855, %v1854
        %v1857 = vmax.f32 %v1713, %v1856
        %vm1858 = vcmp.ge.f32.partialorder %v1764, 0.0
        %v1859 = vsel %vm1858, 1.0, 0.0
        %1860 = vst [vmem:[%s120] sm:$0xff] %v1859
        %vm1861 = vcmp.ge.f32.partialorder %v1773, 0.0
        %v1862 = vsel %vm1861, 1.0, 0.0
        %1863 = vst [vmem:[%s120 + $0x8] sm:$0xff] %v1862
        %vm1864 = vcmp.ge.f32.partialorder %v1779, 0.0
        %v1865 = vsel %vm1864, 1.0, 0.0
        %1866 = vst [vmem:[%s120 + $0x10] sm:$0xff] %v1865
        %vm1867 = vcmp.ge.f32.partialorder %v1785, 0.0
        %v1868 = vsel %vm1867, 1.0, 0.0
        %1869 = vst [vmem:[%s120 + $0x18] sm:$0xff] %v1868
        %vm1870 = vcmp.ge.f32.partialorder %v1791, 0.0
        %v1871 = vsel %vm1870, 1.0, 0.0
        %1872 = vst [vmem:[%s120 + $0x20] sm:$0xff] %v1871
        %vm1873 = vcmp.ge.f32.partialorder %v1797, 0.0
        %v1874 = vsel %vm1873, 1.0, 0.0
        %1875 = vst [vmem:[%s120 + $0x28] sm:$0xff] %v1874
        %vm1876 = vcmp.ge.f32.partialorder %v1803, 0.0
        %v1877 = vsel %vm1876, 1.0, 0.0
        %1878 = vst [vmem:[%s120 + $0x30] sm:$0xff] %v1877
        %vm1879 = vcmp.ge.f32.partialorder %v1809, 0.0
        %v1880 = vsel %vm1879, 1.0, 0.0
        %1881 = vst [vmem:[%s120 + $0x38] sm:$0xff] %v1880
        %vm1882 = vcmp.ge.f32.partialorder %v1815, 0.0
        %v1883 = vsel %vm1882, 1.0, 0.0
        %1884 = vst [vmem:[%s120 + $0x40] sm:$0xff] %v1883
        %vm1885 = vcmp.ge.f32.partialorder %v1821, 0.0
        %v1886 = vsel %vm1885, 1.0, 0.0
        %1887 = vst [vmem:[%s120 + $0x48] sm:$0xff] %v1886
        %vm1888 = vcmp.ge.f32.partialorder %v1827, 0.0
        %v1889 = vsel %vm1888, 1.0, 0.0
        %1890 = vst [vmem:[%s120 + $0x50] sm:$0xff] %v1889
        %vm1891 = vcmp.ge.f32.partialorder %v1833, 0.0
        %v1892 = vsel %vm1891, 1.0, 0.0
        %1893 = vst [vmem:[%s120 + $0x58] sm:$0xff] %v1892
        %vm1894 = vcmp.ge.f32.partialorder %v1839, 0.0
        %v1895 = vsel %vm1894, 1.0, 0.0
        %1896 = vst [vmem:[%s120 + $0x60] sm:$0xff] %v1895
        %vm1897 = vcmp.ge.f32.partialorder %v1845, 0.0
        %v1898 = vsel %vm1897, 1.0, 0.0
        %1899 = vst [vmem:[%s120 + $0x68] sm:$0xff] %v1898
        %vm1900 = vcmp.ge.f32.partialorder %v1851, 0.0
        %v1901 = vsel %vm1900, 1.0, 0.0
        %1902 = vst [vmem:[%s120 + $0x70] sm:$0xff] %v1901
        %vm1903 = vcmp.ge.f32.partialorder %v1857, 0.0
        %v1904 = vsel %vm1903, 1.0, 0.0
        %1905 = vst [vmem:[%s120 + $0x78] sm:$0xff] %v1904
        %s1906 = sand.u32 %s59, 1
        %s1907 = scalar_lea.sflag [#allocation3], %s1906
        %s1908 = sand.u32 %s59, 1
        %s1909 = smul.addr %s1908, 128
        %s1910 = scalar_lea.vmem [#allocation5], %s1909
        // Predicated region
        $region29: #{tpu_custom_call.1} parent=23 // pred_check
          %p1911 = pneg %p69
        $region30: #{tpu_custom_call.1} parent=23 // pred_check_branch
          %1913 = sbr.rel (%p1911) target = $region32
        $region31: #{tpu_custom_call.1} parent=23 // pred_region
          %s1914 = smul.u32 16, %s21
          %s1916 = ssub.s32 2048, 2048
          %1917 = vsyncadd %s1907, %s1916
          %s1918 = smul.addr %s20, 16
          %s1919 = sadd.s32 %s1914, %s1918
          %s1920 = smul.addr %s1919, 128
          %s1921 = scalar_lea.hbm %s1, %s1920
          %s1922 = sshll.u32 %s1910, 4
          %s1923 = int_to_ptr.vmem [resolvable:$true] %s1922
          %1928 = dma.vmem_to_hbm [thread:$0]  %s1923, 2048, %s1921, %s1907, 128, 128, 8
        $region32: #{tpu_custom_call.1} parent=23 // pred_fallthru
          _
      $region24: #{tpu_custom_call.1} parent=5 // pred_fallthru
        _
      %p1929 = scmp.le.s32.totalorder 2, %s11
      // Predicated region
      $region33: #{tpu_custom_call.1} parent=5 // pred_check
        %p1930 = pneg %p1929
      $region34: #{tpu_custom_call.1} parent=5 // pred_check_branch
        %1932 = sbr.rel (%p1930) target = $region36
      $region35: #{tpu_custom_call.1} parent=5 // pred_region
        %s1933 = ssub.s32 %s11, 2
        // Predicated region
        $region37: #{tpu_custom_call.1} parent=35 // pred_check
          %p1934 = pneg %p75
        $region38: #{tpu_custom_call.1} parent=35 // pred_check_branch
          %1936 = sbr.rel (%p1934) target = $region40
        $region39: #{tpu_custom_call.1} parent=35 // pred_region
          %s1937 = sand.u32 %s60, 1
          %s1938 = scalar_lea.sflag [#allocation3], %s1937
          %s1939 = sand.u32 %s60, 1
          %s1940 = smul.addr %s1939, 128
          %s1941 = scalar_lea.vmem [#allocation5], %s1940
          %1942 = dma.done %s1938, 2048
        $region40: #{tpu_custom_call.1} parent=35 // pred_fallthru
          _
      $region36: #{tpu_custom_call.1} parent=5 // pred_fallthru
        _
    $region6: #{tpu_custom_call.1} parent=1 // loop_footer
      %s15 = sadd.s32 1, %s11
    $region7: #{tpu_custom_call.1} parent=1 // loop_footer_branch
      %10 = sbr.rel target = $region3
    $region8: #{tpu_custom_call.1} parent=1 // loop_exit
      _
    %1943 = vsyncpa [#allocation3], 1
    %s1944 = scalar_lea.sflag [#allocation3], 1
    %1945 = vsyncpa %s1944, 1
    %1946 = vsyncpa [#allocation4], 1
    %s1947 = scalar_lea.sflag [#allocation4], 1
    %1948 = vsyncpa %s1947, 1

</llo_original>
